<compile_context>
chip_gen: v7x
topology: tpu7x:2x2x1
jax: 0.10.0
libtpu: 0.0.40
codegen_flags: <defaults>
</compile_context>

<pallas_src>
import math
from functools import partial

import jax
import jax.numpy as jnp
from jax import lax
from jax.experimental import pallas as pl
from jax.experimental.pallas import tpu as pltpu


# ---------------------------------------------------------------------------
# Fused flash-style kernel. Grid = (B, N//tq, M//tk), M innermost.
#   q_ref: (1, tq, Dq_in)           -- resident across the M axis
#   k_ref: (1, tk, Dq_in), v_ref: (1, tk, Dv_in)
#   wq_ref/wk_ref: (H, Dq_in, hkq)  -- head-major, pre-transposed, scale folded in wq
#   wv_ref:        (H, Dv_in, hv)
#   wo_ref:        (H, hv, v_dim_out)  (only if post_process)
#   o_ref: (1, tq, out_feat)        -- written only on the last M step
# Scratch: qh_sc (H, tq, hkq) [mxu dtype], m_sc/l_sc (H, tq, 1) f32,
#          acc_sc (H, tq, hv) f32.
# ---------------------------------------------------------------------------
def _mha_flash_kernel(*refs, n_heads: int, head_v: int, normalize: bool,
                      post_process: bool, mxu_dtype):
    if post_process:
        (q_ref, k_ref, v_ref, wq_ref, wk_ref, wv_ref, wo_ref, o_ref,
         qh_sc, m_sc, l_sc, acc_sc) = refs
    else:
        (q_ref, k_ref, v_ref, wq_ref, wk_ref, wv_ref, o_ref,
         qh_sc, m_sc, l_sc, acc_sc) = refs
        wo_ref = None

    m_idx = pl.program_id(2)
    num_m = pl.num_programs(2)

    # ---- init on the first M step of each (b, n) tile ----------------------
    @pl.when(m_idx == 0)
    def _init():
        q = q_ref[0].astype(mxu_dtype)                      # (tq, Dq_in)
        # Q projection once per query tile; head-major weights => leading-axis
        # index per head, no lane slicing of a packed activation.
        for h in range(n_heads):
            qh_sc[h] = jnp.dot(q, wq_ref[h],
                               preferred_element_type=jnp.float32
                               ).astype(qh_sc.dtype)        # (tq, hkq)
        if normalize:
            m_sc[...] = jnp.full_like(m_sc, -jnp.inf)
            l_sc[...] = jnp.zeros_like(l_sc)
        acc_sc[...] = jnp.zeros_like(acc_sc)

    # ---- one K/V block ------------------------------------------------------
    k = k_ref[0].astype(mxu_dtype)                          # (tk, Dq_in)
    v = v_ref[0].astype(mxu_dtype)                          # (tk, Dv_in)

    # n_heads is small -> static unrolled loop.
    # TODO(synk): switch to lax.fori_loop(unroll=True) for large head counts.
    for h in range(n_heads):
        kh = jnp.dot(k, wk_ref[h],
                     preferred_element_type=jnp.float32).astype(mxu_dtype)  # (tk, hkq)
        vh = jnp.dot(v, wv_ref[h],
                     preferred_element_type=jnp.float32).astype(mxu_dtype)  # (tk, hv)
        qh = qh_sc[h]                                        # (tq, hkq)

        # scores = qh @ kh^T (scale already folded into wq), no explicit transpose.
        s = lax.dot_general(qh, kh, (((1,), (1,)), ((), ())),
                            preferred_element_type=jnp.float32)             # (tq, tk)

        if normalize:
            # online softmax (f32 stats)
            m_prev = m_sc[h]                                 # (tq, 1)
            m_new = jnp.maximum(m_prev, jnp.max(s, axis=-1, keepdims=True))
            alpha = jnp.exp(m_prev - m_new)
            p = jnp.exp(s - m_new)
            l_sc[h] = alpha * l_sc[h] + jnp.sum(p, axis=-1, keepdims=True)
            acc_sc[h] = alpha * acc_sc[h] + jnp.dot(
                p.astype(mxu_dtype), vh, preferred_element_type=jnp.float32)
            m_sc[h] = m_new
        else:
            # sigmoid is elementwise -> plain accumulation over M tiles.
            p = jax.nn.sigmoid(s)
            acc_sc[h] = acc_sc[h] + jnp.dot(
                p.astype(mxu_dtype), vh, preferred_element_type=jnp.float32)

    # ---- finalize on the last M step ----------------------------------------
    @pl.when(m_idx == num_m - 1)
    def _finalize():
        tq = o_ref.shape[1]
        out_feat = o_ref.shape[2]
        if post_process:
            # Accumulate the output projection per head (no lane concat).
            out = jnp.zeros((tq, out_feat), jnp.float32)
            for h in range(n_heads):
                head = acc_sc[h]
                if normalize:
                    head = head * pl.reciprocal(l_sc[h], approx=True)
                out = out + jnp.dot(head.astype(mxu_dtype), wo_ref[h],
                                    preferred_element_type=jnp.float32)
            o_ref[0] = out.astype(o_ref.dtype)
        else:
            # No output projection: emit the head-concatenated layout directly.
            heads = []
            for h in range(n_heads):
                head = acc_sc[h]
                if normalize:
                    head = head * pl.reciprocal(l_sc[h], approx=True)
                heads.append(head)
            o_ref[0] = jnp.concatenate(heads, axis=-1).astype(o_ref.dtype)


def multi_head_attention(q, k, v, params, *, n_heads: int,
                         normalize: bool = True, post_process: bool = True,
                         mxu_dtype=None, tq_max: int = 128, tk_max: int = 128):
    """q: (B, N, Dq_in), k: (B, M, Dq_in), v: (B, M, Dv_in).

    params["wq"], params["wk"]: (n_heads, head_kq, Dq_in)    (torch Linear layout)
    params["wv"]:               (n_heads, head_v,  Dv_in)
    params["wo"]:               (v_dim_out, n_heads*head_v)  (only if post_process)

    mxu_dtype: dtype used for MXU operands (default: input dtype).  Pass
    jnp.bfloat16 on v6e/v7x for ~2-3x matmul throughput; softmax stats and
    accumulators always stay f32.
    """
    if mxu_dtype is None:
        mxu_dtype = q.dtype

    wq, wk, wv = params["wq"], params["wk"], params["wv"]
    B, N, Dq_in = q.shape
    _, M, _ = k.shape
    Dv_in = v.shape[-1]
    head_kq = wq.shape[1]
    head_v = wv.shape[1]
    Hv = n_heads * head_v

    # Head-major, (in, out)-transposed weights; fold 1/sqrt(head_kq) into wq.
    # (Tiny one-time host-side weight reshapes, not per-step kernel work.)
    scale = 1.0 / math.sqrt(float(head_kq))
    wq_hm = (jnp.transpose(wq, (0, 2, 1)) * scale).astype(mxu_dtype)  # (H, Dq_in, hkq)
    wk_hm = jnp.transpose(wk, (0, 2, 1)).astype(mxu_dtype)            # (H, Dq_in, hkq)
    wv_hm = jnp.transpose(wv, (0, 2, 1)).astype(mxu_dtype)            # (H, Dv_in, hv)

    # Tile sizes (per-generation tuning via tq_max/tk_max; see module docstring).
    tq = N if N <= tq_max else tq_max
    tk = M if M <= tk_max else tk_max
    assert N % tq == 0 and M % tk == 0, "wrapper assumes divisible tiles"
    grid = (B, N // tq, M // tk)

    kernel = partial(_mha_flash_kernel, n_heads=n_heads, head_v=head_v,
                     normalize=normalize, post_process=post_process,
                     mxu_dtype=mxu_dtype)

    in_specs = [
        pl.BlockSpec((1, tq, Dq_in), lambda b, n, m: (b, n, 0)),
        pl.BlockSpec((1, tk, Dq_in), lambda b, n, m: (b, m, 0)),
        pl.BlockSpec((1, tk, Dv_in), lambda b, n, m: (b, m, 0)),
        pl.BlockSpec((n_heads, Dq_in, head_kq), lambda b, n, m: (0, 0, 0)),
        pl.BlockSpec((n_heads, Dq_in, head_kq), lambda b, n, m: (0, 0, 0)),
        pl.BlockSpec((n_heads, Dv_in, head_v), lambda b, n, m: (0, 0, 0)),
    ]
    operands = [q, k, v, wq_hm, wk_hm, wv_hm]

    if post_process:
        wo = params["wo"]                                    # (v_dim_out, H*hv)
        v_dim_out = wo.shape[0]
        wo_hm = jnp.transpose(wo, (1, 0)).reshape(
            n_heads, head_v, v_dim_out).astype(mxu_dtype)    # (H, hv, v_dim_out)
        in_specs.append(
            pl.BlockSpec((n_heads, head_v, v_dim_out), lambda b, n, m: (0, 0, 0)))
        operands.append(wo_hm)
        out_feat = v_dim_out
    else:
        out_feat = Hv

    scratch_shapes = [
        pltpu.VMEM((n_heads, tq, head_kq), mxu_dtype),   # cached Q projection
        pltpu.VMEM((n_heads, tq, 1), jnp.float32),       # running max (m)
        pltpu.VMEM((n_heads, tq, 1), jnp.float32),       # running denom (l)
        pltpu.VMEM((n_heads, tq, head_v), jnp.float32),  # per-head output acc
    ]

    return pl.pallas_call(
        kernel,
        out_shape=jax.ShapeDtypeStruct((B, N, out_feat), q.dtype),
        grid_spec=pltpu.PrefetchScalarGridSpec(
            num_scalar_prefetch=0,
            grid=grid,
            in_specs=in_specs,
            out_specs=pl.BlockSpec((1, tq, out_feat), lambda b, n, m: (b, n, 0)),
            scratch_shapes=scratch_shapes,
        ),
        compiler_params=pltpu.CompilerParams(
            # B and N tiles are independent (megacore-shardable); M is the
            # online-softmax reduction axis.
            dimension_semantics=("parallel", "parallel", "arbitrary"),
            # Above the v5e 16 MiB default, safely under v7x's 64 MiB physical VMEM.
            vmem_limit_bytes=48 * 1024 * 1024,
        ),
    )(*operands)


# ---------------------------------------------------------------------------
# Pure-JAX reference (mirrors the torch module) for correctness checks.
# ---------------------------------------------------------------------------
def _reference(q, k, v, params, *, n_heads, normalize=True, post_process=True):
    wq, wk, wv = params["wq"], params["wk"], params["wv"]
    outs = []
    for h in range(n_heads):
        qh = q @ wq[h].T
        kh = k @ wk[h].T
        vh = v @ wv[h].T
        s = jnp.einsum("bnd,bmd->bnm", qh, kh) / jnp.sqrt(jnp.float32(kh.shape[-1]))
        a = jax.nn.softmax(s, axis=-1) if normalize else jax.nn.sigmoid(s)
        outs.append(jnp.einsum("bnm,bmd->bnd", a, vh))
    out = jnp.concatenate(outs, axis=-1)
    if post_process:
        out = out @ params["wo"].T
    return out


if __name__ == "__main__":
    # Module hyper-parameters (small / toy shapes)
    kq_dim_in, kq_dim_out = 16, 32
    v_dim_in, v_dim_out = 24, 32
    n_heads = 4
    head_kq = kq_dim_out // n_heads   # 8
    head_v = v_dim_out // n_heads     # 8

    B, N, M = 2, 8, 8

    key = jax.random.PRNGKey(0)
    kq_, kk_, kv_, kwq, kwk, kwv, kwo = jax.random.split(key, 7)

    q = jax.random.normal(kq_, (B, N, kq_dim_in), dtype=jnp.float32)
    k = jax.random.normal(kk_, (B, M, kq_dim_in), dtype=jnp.float32)
    v = jax.random.normal(kv_, (B, M, v_dim_in), dtype=jnp.float32)

    # Deterministic synthetic weights (torch.nn.Linear layout: (out, in)), no bias.
    params = {
        "wq": 0.1 * jax.random.normal(kwq, (n_heads, head_kq, kq_dim_in), jnp.float32),
        "wk": 0.1 * jax.random.normal(kwk, (n_heads, head_kq, kq_dim_in), jnp.float32),
        "wv": 0.1 * jax.random.normal(kwv, (n_heads, head_v, v_dim_in), jnp.float32),
        "wo": 0.1 * jax.random.normal(kwo, (v_dim_out, n_heads * head_v), jnp.float32),
    }

    # Main path: softmax + output projection (f32 MXU operands).
    out = multi_head_attention(q, k, v, params, n_heads=n_heads,
                               normalize=True, post_process=True)
    out = jax.block_until_ready(out)
    ref = _reference(q, k, v, params, n_heads=n_heads,
                     normalize=True, post_process=True)
    assert out.shape == (B, N, v_dim_out), out.shape
    # approx reciprocal (EUP) in the softmax denominator -> slightly looser tol.
    assert jnp.allclose(out, ref, atol=2e-3, rtol=2e-3), \
        "mismatch vs reference (softmax path)"

    # Secondary path: sigmoid scores, no output projection.
    out2 = multi_head_attention(q, k, v, params, n_heads=n_heads,
                                normalize=False, post_process=False)
    out2 = jax.block_until_ready(out2)
    ref2 = _reference(q, k, v, params, n_heads=n_heads,
                      normalize=False, post_process=False)
    assert out2.shape == (B, N, n_heads * head_v), out2.shape
    assert jnp.allclose(out2, ref2, atol=2e-3, rtol=2e-3), \
        "mismatch vs reference (sigmoid path)"

    # bf16 MXU-operand path (v6e/v7x optimization); f32 stats, looser tolerance.
    out3 = multi_head_attention(q, k, v, params, n_heads=n_heads,
                                normalize=True, post_process=True,
                                mxu_dtype=jnp.bfloat16)
    out3 = jax.block_until_ready(out3)
    assert out3.shape == (B, N, v_dim_out), out3.shape
    assert jnp.allclose(out3, ref, atol=5e-2, rtol=5e-2), \
        "mismatch vs reference (bf16 MXU path)"

    print("KERNEL_OK")
</pallas_src>

<mosaic_0001>
module attributes {stable_mosaic.version = 11 : i64} {
  func.func @_mha_flash_kernel(%arg0: i32, %arg1: i32, %arg2: i32, %arg3: memref<1x8x16xf32, #tpu.memory_space<vmem>>, %arg4: memref<1x8x16xf32, #tpu.memory_space<vmem>>, %arg5: memref<1x8x24xf32, #tpu.memory_space<vmem>>, %arg6: memref<4x16x8xf32, #tpu.memory_space<vmem>>, %arg7: memref<4x16x8xf32, #tpu.memory_space<vmem>>, %arg8: memref<4x24x8xf32, #tpu.memory_space<vmem>>, %arg9: memref<4x8x32xf32, #tpu.memory_space<vmem>>, %arg10: memref<1x8x32xf32, #tpu.memory_space<vmem>>, %arg11: memref<4x8x8xf32, #tpu.memory_space<vmem>>, %arg12: memref<4x8x1xf32, #tpu.memory_space<vmem>>, %arg13: memref<4x8x1xf32, #tpu.memory_space<vmem>>, %arg14: memref<4x8x8xf32, #tpu.memory_space<vmem>>) attributes {dimension_semantics = [#tpu.dimension_semantics<parallel>, #tpu.dimension_semantics<parallel>, #tpu.dimension_semantics<arbitrary>], iteration_bounds = array<i64: 2, 1, 1>, scalar_prefetch = 0 : i64, scratch_operands = 4 : i64, tpu.core_type = #tpu.core_type<tc>, window_params = [{transform_indices = @transform_0, window_bounds = array<i64: 1, 8, 16>}, {transform_indices = @transform_1, window_bounds = array<i64: 1, 8, 16>}, {transform_indices = @transform_2, window_bounds = array<i64: 1, 8, 24>}, {pipeline_mode = #tpu.pipeline_mode<synchronous>, transform_indices = @transform_3, window_bounds = array<i64: 4, 16, 8>}, {pipeline_mode = #tpu.pipeline_mode<synchronous>, transform_indices = @transform_4, window_bounds = array<i64: 4, 16, 8>}, {pipeline_mode = #tpu.pipeline_mode<synchronous>, transform_indices = @transform_5, window_bounds = array<i64: 4, 24, 8>}, {pipeline_mode = #tpu.pipeline_mode<synchronous>, transform_indices = @transform_6, window_bounds = array<i64: 4, 8, 32>}, {transform_indices = @transform_7, window_bounds = array<i64: 1, 8, 32>}]} {
    %c0_i32 = arith.constant 0 : i32
    %0 = arith.cmpi eq, %arg2, %c0_i32 : i32
    %1 = arith.extui %0 : i1 to i32
    %c0_i32_0 = arith.constant 0 : i32
    %2 = arith.cmpi ne, %1, %c0_i32_0 : i32
    scf.if %2 {
      %c0_136 = arith.constant 0 : index
      %c0_137 = arith.constant 0 : index
      %c0_138 = arith.constant 0 : index
      %170 = vector.load %arg3[%c0_136, %c0_137, %c0_138] : memref<1x8x16xf32, #tpu.memory_space<vmem>>, vector<1x8x16xf32>
      %171 = vector.shape_cast %170 : vector<1x8x16xf32> to vector<8x16xf32>
      %c0_139 = arith.constant 0 : index
      %c0_140 = arith.constant 0 : index
      %c0_141 = arith.constant 0 : index
      %172 = vector.load %arg6[%c0_139, %c0_140, %c0_141] : memref<4x16x8xf32, #tpu.memory_space<vmem>>, vector<1x16x8xf32>
      %173 = vector.shape_cast %172 : vector<1x16x8xf32> to vector<16x8xf32>
      %cst_142 = arith.constant dense<0.000000e+00> : vector<8x8xf32>
      %174 = tpu.matmul %171, %173, %cst_142 {dimension_numbers = #tpu.dot_dimension_numbers<[1], [0], [0], [1], [0, 0, 1, 1], [], []>} : vector<8x16xf32>, vector<16x8xf32>, vector<8x8xf32> -> vector<8x8xf32>
      %c0_143 = arith.constant 0 : index
      %c0_144 = arith.constant 0 : index
      %c0_145 = arith.constant 0 : index
      %175 = vector.load %arg11[%c0_143, %c0_144, %c0_145] : memref<4x8x8xf32, #tpu.memory_space<vmem>>, vector<1x8x8xf32>
      %176 = vector.shape_cast %175 : vector<1x8x8xf32> to vector<8x8xf32>
      %177 = vector.shape_cast %174 : vector<8x8xf32> to vector<1x8x8xf32>
      tpu.vector_store %arg11[%c0_143, %c0_144, %c0_145], %177 {strides = array<i32>} : memref<4x8x8xf32, #tpu.memory_space<vmem>>, vector<1x8x8xf32>,
      %c1_146 = arith.constant 1 : index
      %c0_147 = arith.constant 0 : index
      %c0_148 = arith.constant 0 : index
      %178 = vector.load %arg6[%c1_146, %c0_147, %c0_148] : memref<4x16x8xf32, #tpu.memory_space<vmem>>, vector<1x16x8xf32>
      %179 = vector.shape_cast %178 : vector<1x16x8xf32> to vector<16x8xf32>
      %cst_149 = arith.constant dense<0.000000e+00> : vector<8x8xf32>
      %180 = tpu.matmul %171, %179, %cst_149 {dimension_numbers = #tpu.dot_dimension_numbers<[1], [0], [0], [1], [0, 0, 1, 1], [], []>} : vector<8x16xf32>, vector<16x8xf32>, vector<8x8xf32> -> vector<8x8xf32>
      %c1_150 = arith.constant 1 : index
      %c0_151 = arith.constant 0 : index
      %c0_152 = arith.constant 0 : index
      %181 = vector.load %arg11[%c1_150, %c0_151, %c0_152] : memref<4x8x8xf32, #tpu.memory_space<vmem>>, vector<1x8x8xf32>
      %182 = vector.shape_cast %181 : vector<1x8x8xf32> to vector<8x8xf32>
      %183 = vector.shape_cast %180 : vector<8x8xf32> to vector<1x8x8xf32>
      tpu.vector_store %arg11[%c1_150, %c0_151, %c0_152], %183 {strides = array<i32>} : memref<4x8x8xf32, #tpu.memory_space<vmem>>, vector<1x8x8xf32>,
      %c2_153 = arith.constant 2 : index
      %c0_154 = arith.constant 0 : index
      %c0_155 = arith.constant 0 : index
      %184 = vector.load %arg6[%c2_153, %c0_154, %c0_155] : memref<4x16x8xf32, #tpu.memory_space<vmem>>, vector<1x16x8xf32>
      %185 = vector.shape_cast %184 : vector<1x16x8xf32> to vector<16x8xf32>
      %cst_156 = arith.constant dense<0.000000e+00> : vector<8x8xf32>
      %186 = tpu.matmul %171, %185, %cst_156 {dimension_numbers = #tpu.dot_dimension_numbers<[1], [0], [0], [1], [0, 0, 1, 1], [], []>} : vector<8x16xf32>, vector<16x8xf32>, vector<8x8xf32> -> vector<8x8xf32>
      %c2_157 = arith.constant 2 : index
      %c0_158 = arith.constant 0 : index
      %c0_159 = arith.constant 0 : index
      %187 = vector.load %arg11[%c2_157, %c0_158, %c0_159] : memref<4x8x8xf32, #tpu.memory_space<vmem>>, vector<1x8x8xf32>
      %188 = vector.shape_cast %187 : vector<1x8x8xf32> to vector<8x8xf32>
      %189 = vector.shape_cast %186 : vector<8x8xf32> to vector<1x8x8xf32>
      tpu.vector_store %arg11[%c2_157, %c0_158, %c0_159], %189 {strides = array<i32>} : memref<4x8x8xf32, #tpu.memory_space<vmem>>, vector<1x8x8xf32>,
      %c3_160 = arith.constant 3 : index
      %c0_161 = arith.constant 0 : index
      %c0_162 = arith.constant 0 : index
      %190 = vector.load %arg6[%c3_160, %c0_161, %c0_162] : memref<4x16x8xf32, #tpu.memory_space<vmem>>, vector<1x16x8xf32>
      %191 = vector.shape_cast %190 : vector<1x16x8xf32> to vector<16x8xf32>
      %cst_163 = arith.constant dense<0.000000e+00> : vector<8x8xf32>
      %192 = tpu.matmul %171, %191, %cst_163 {dimension_numbers = #tpu.dot_dimension_numbers<[1], [0], [0], [1], [0, 0, 1, 1], [], []>} : vector<8x16xf32>, vector<16x8xf32>, vector<8x8xf32> -> vector<8x8xf32>
      %c3_164 = arith.constant 3 : index
      %c0_165 = arith.constant 0 : index
      %c0_166 = arith.constant 0 : index
      %193 = vector.load %arg11[%c3_164, %c0_165, %c0_166] : memref<4x8x8xf32, #tpu.memory_space<vmem>>, vector<1x8x8xf32>
      %194 = vector.shape_cast %193 : vector<1x8x8xf32> to vector<8x8xf32>
      %195 = vector.shape_cast %192 : vector<8x8xf32> to vector<1x8x8xf32>
      tpu.vector_store %arg11[%c3_164, %c0_165, %c0_166], %195 {strides = array<i32>} : memref<4x8x8xf32, #tpu.memory_space<vmem>>, vector<1x8x8xf32>,
      %cst_167 = arith.constant 0xFF800000 : f32
      %196 = vector.broadcast %cst_167 : f32 to vector<4x8x1xf32>
      %c0_168 = arith.constant 0 : index
      %c0_169 = arith.constant 0 : index
      %c0_170 = arith.constant 0 : index
      %197 = vector.load %arg12[%c0_168, %c0_169, %c0_170] : memref<4x8x1xf32, #tpu.memory_space<vmem>>, vector<4x8x1xf32>
      tpu.vector_store %arg12[%c0_168, %c0_169, %c0_170], %196 {strides = array<i32>} : memref<4x8x1xf32, #tpu.memory_space<vmem>>, vector<4x8x1xf32>,
      %cst_171 = arith.constant 0.000000e+00 : f32
      %198 = vector.broadcast %cst_171 : f32 to vector<4x8x1xf32>
      %c0_172 = arith.constant 0 : index
      %c0_173 = arith.constant 0 : index
      %c0_174 = arith.constant 0 : index
      %199 = vector.load %arg13[%c0_172, %c0_173, %c0_174] : memref<4x8x1xf32, #tpu.memory_space<vmem>>, vector<4x8x1xf32>
      tpu.vector_store %arg13[%c0_172, %c0_173, %c0_174], %198 {strides = array<i32>} : memref<4x8x1xf32, #tpu.memory_space<vmem>>, vector<4x8x1xf32>,
      %cst_175 = arith.constant 0.000000e+00 : f32
      %200 = vector.broadcast %cst_175 : f32 to vector<4x8x8xf32>
      %c0_176 = arith.constant 0 : index
      %c0_177 = arith.constant 0 : index
      %c0_178 = arith.constant 0 : index
      %201 = vector.load %arg14[%c0_176, %c0_177, %c0_178] : memref<4x8x8xf32, #tpu.memory_space<vmem>>, vector<4x8x8xf32>
      tpu.vector_store %arg14[%c0_176, %c0_177, %c0_178], %200 {strides = array<i32>} : memref<4x8x8xf32, #tpu.memory_space<vmem>>, vector<4x8x8xf32>,
    } else {
    }
    %c0 = arith.constant 0 : index
    %c0_1 = arith.constant 0 : index
    %c0_2 = arith.constant 0 : index
    %3 = vector.load %arg4[%c0, %c0_1, %c0_2] : memref<1x8x16xf32, #tpu.memory_space<vmem>>, vector<1x8x16xf32>
    %4 = vector.shape_cast %3 : vector<1x8x16xf32> to vector<8x16xf32>
    %c0_3 = arith.constant 0 : index
    %c0_4 = arith.constant 0 : index
    %c0_5 = arith.constant 0 : index
    %5 = vector.load %arg5[%c0_3, %c0_4, %c0_5] : memref<1x8x24xf32, #tpu.memory_space<vmem>>, vector<1x8x24xf32>
    %6 = vector.shape_cast %5 : vector<1x8x24xf32> to vector<8x24xf32>
    %c0_6 = arith.constant 0 : index
    %c0_7 = arith.constant 0 : index
    %c0_8 = arith.constant 0 : index
    %7 = vector.load %arg7[%c0_6, %c0_7, %c0_8] : memref<4x16x8xf32, #tpu.memory_space<vmem>>, vector<1x16x8xf32>
    %8 = vector.shape_cast %7 : vector<1x16x8xf32> to vector<16x8xf32>
    %cst = arith.constant dense<0.000000e+00> : vector<8x8xf32>
    %9 = tpu.matmul %4, %8, %cst {dimension_numbers = #tpu.dot_dimension_numbers<[1], [0], [0], [1], [0, 0, 1, 1], [], []>} : vector<8x16xf32>, vector<16x8xf32>, vector<8x8xf32> -> vector<8x8xf32>
    %c0_9 = arith.constant 0 : index
    %c0_10 = arith.constant 0 : index
    %c0_11 = arith.constant 0 : index
    %10 = vector.load %arg8[%c0_9, %c0_10, %c0_11] : memref<4x24x8xf32, #tpu.memory_space<vmem>>, vector<1x24x8xf32>
    %11 = vector.shape_cast %10 : vector<1x24x8xf32> to vector<24x8xf32>
    %cst_12 = arith.constant dense<0.000000e+00> : vector<8x8xf32>
    %12 = tpu.matmul %6, %11, %cst_12 {dimension_numbers = #tpu.dot_dimension_numbers<[1], [0], [0], [1], [0, 0, 1, 1], [], []>} : vector<8x24xf32>, vector<24x8xf32>, vector<8x8xf32> -> vector<8x8xf32>
    %c0_13 = arith.constant 0 : index
    %c0_14 = arith.constant 0 : index
    %c0_15 = arith.constant 0 : index
    %13 = vector.load %arg11[%c0_13, %c0_14, %c0_15] : memref<4x8x8xf32, #tpu.memory_space<vmem>>, vector<1x8x8xf32>
    %14 = vector.shape_cast %13 : vector<1x8x8xf32> to vector<8x8xf32>
    %cst_16 = arith.constant dense<0.000000e+00> : vector<8x8xf32>
    %15 = tpu.matmul %14, %9, %cst_16 {dimension_numbers = #tpu.dot_dimension_numbers<[1], [1], [0], [0], [0, 0, 1, 0], [], []>} : vector<8x8xf32>, vector<8x8xf32>, vector<8x8xf32> -> vector<8x8xf32>
    %c0_17 = arith.constant 0 : index
    %c0_18 = arith.constant 0 : index
    %c0_19 = arith.constant 0 : index
    %16 = vector.load %arg12[%c0_17, %c0_18, %c0_19] : memref<4x8x1xf32, #tpu.memory_space<vmem>>, vector<1x8x1xf32>
    %17 = vector.shape_cast %16 : vector<1x8x1xf32> to vector<8x1xf32>
    %cst_20 = arith.constant dense<0xFF800000> : vector<8xf32>
    %18 = vector.multi_reduction <maximumf>, %15, %cst_20 [1] : vector<8x8xf32> to vector<8xf32>
    %19 = vector.shape_cast %18 : vector<8xf32> to vector<8x1xf32>
    %20 = arith.maximumf %17, %19 : vector<8x1xf32>
    %21 = arith.subf %17, %20 : vector<8x1xf32>
    %22 = math.exp %21 : vector<8x1xf32>
    %23 = vector.broadcast %20 : vector<8x1xf32> to vector<8x8xf32>
    %24 = arith.subf %15, %23 : vector<8x8xf32>
    %25 = math.exp %24 : vector<8x8xf32>
    %c0_21 = arith.constant 0 : index
    %c0_22 = arith.constant 0 : index
    %c0_23 = arith.constant 0 : index
    %26 = vector.load %arg13[%c0_21, %c0_22, %c0_23] : memref<4x8x1xf32, #tpu.memory_space<vmem>>, vector<1x8x1xf32>
    %27 = vector.shape_cast %26 : vector<1x8x1xf32> to vector<8x1xf32>
    %28 = arith.mulf %22, %27 : vector<8x1xf32>
    %cst_24 = arith.constant dense<0.000000e+00> : vector<8xf32>
    %29 = vector.multi_reduction <add>, %25, %cst_24 [1] : vector<8x8xf32> to vector<8xf32>
    %30 = vector.shape_cast %29 : vector<8xf32> to vector<8x1xf32>
    %31 = arith.addf %28, %30 : vector<8x1xf32>
    %c0_25 = arith.constant 0 : index
    %c0_26 = arith.constant 0 : index
    %c0_27 = arith.constant 0 : index
    %32 = vector.load %arg13[%c0_25, %c0_26, %c0_27] : memref<4x8x1xf32, #tpu.memory_space<vmem>>, vector<1x8x1xf32>
    %33 = vector.shape_cast %32 : vector<1x8x1xf32> to vector<8x1xf32>
    %34 = vector.shape_cast %31 : vector<8x1xf32> to vector<1x8x1xf32>
    tpu.vector_store %arg13[%c0_25, %c0_26, %c0_27], %34 {strides = array<i32>} : memref<4x8x1xf32, #tpu.memory_space<vmem>>, vector<1x8x1xf32>,
    %c0_28 = arith.constant 0 : index
    %c0_29 = arith.constant 0 : index
    %c0_30 = arith.constant 0 : index
    %35 = vector.load %arg14[%c0_28, %c0_29, %c0_30] : memref<4x8x8xf32, #tpu.memory_space<vmem>>, vector<1x8x8xf32>
    %36 = vector.shape_cast %35 : vector<1x8x8xf32> to vector<8x8xf32>
    %37 = vector.broadcast %22 : vector<8x1xf32> to vector<8x8xf32>
    %38 = arith.mulf %37, %36 : vector<8x8xf32>
    %cst_31 = arith.constant dense<0.000000e+00> : vector<8x8xf32>
    %39 = tpu.matmul %25, %12, %cst_31 {dimension_numbers = #tpu.dot_dimension_numbers<[1], [0], [0], [1], [0, 0, 1, 1], [], []>} : vector<8x8xf32>, vector<8x8xf32>, vector<8x8xf32> -> vector<8x8xf32>
    %40 = arith.addf %38, %39 : vector<8x8xf32>
    %c0_32 = arith.constant 0 : index
    %c0_33 = arith.constant 0 : index
    %c0_34 = arith.constant 0 : index
    %41 = vector.load %arg14[%c0_32, %c0_33, %c0_34] : memref<4x8x8xf32, #tpu.memory_space<vmem>>, vector<1x8x8xf32>
    %42 = vector.shape_cast %41 : vector<1x8x8xf32> to vector<8x8xf32>
    %43 = vector.shape_cast %40 : vector<8x8xf32> to vector<1x8x8xf32>
    tpu.vector_store %arg14[%c0_32, %c0_33, %c0_34], %43 {strides = array<i32>} : memref<4x8x8xf32, #tpu.memory_space<vmem>>, vector<1x8x8xf32>,
    %c0_35 = arith.constant 0 : index
    %c0_36 = arith.constant 0 : index
    %c0_37 = arith.constant 0 : index
    %44 = vector.load %arg12[%c0_35, %c0_36, %c0_37] : memref<4x8x1xf32, #tpu.memory_space<vmem>>, vector<1x8x1xf32>
    %45 = vector.shape_cast %44 : vector<1x8x1xf32> to vector<8x1xf32>
    %46 = vector.shape_cast %20 : vector<8x1xf32> to vector<1x8x1xf32>
    tpu.vector_store %arg12[%c0_35, %c0_36, %c0_37], %46 {strides = array<i32>} : memref<4x8x1xf32, #tpu.memory_space<vmem>>, vector<1x8x1xf32>,
    %c1 = arith.constant 1 : index
    %c0_38 = arith.constant 0 : index
    %c0_39 = arith.constant 0 : index
    %47 = vector.load %arg7[%c1, %c0_38, %c0_39] : memref<4x16x8xf32, #tpu.memory_space<vmem>>, vector<1x16x8xf32>
    %48 = vector.shape_cast %47 : vector<1x16x8xf32> to vector<16x8xf32>
    %cst_40 = arith.constant dense<0.000000e+00> : vector<8x8xf32>
    %49 = tpu.matmul %4, %48, %cst_40 {dimension_numbers = #tpu.dot_dimension_numbers<[1], [0], [0], [1], [0, 0, 1, 1], [], []>} : vector<8x16xf32>, vector<16x8xf32>, vector<8x8xf32> -> vector<8x8xf32>
    %c1_41 = arith.constant 1 : index
    %c0_42 = arith.constant 0 : index
    %c0_43 = arith.constant 0 : index
    %50 = vector.load %arg8[%c1_41, %c0_42, %c0_43] : memref<4x24x8xf32, #tpu.memory_space<vmem>>, vector<1x24x8xf32>
    %51 = vector.shape_cast %50 : vector<1x24x8xf32> to vector<24x8xf32>
    %cst_44 = arith.constant dense<0.000000e+00> : vector<8x8xf32>
    %52 = tpu.matmul %6, %51, %cst_44 {dimension_numbers = #tpu.dot_dimension_numbers<[1], [0], [0], [1], [0, 0, 1, 1], [], []>} : vector<8x24xf32>, vector<24x8xf32>, vector<8x8xf32> -> vector<8x8xf32>
    %c1_45 = arith.constant 1 : index
    %c0_46 = arith.constant 0 : index
    %c0_47 = arith.constant 0 : index
    %53 = vector.load %arg11[%c1_45, %c0_46, %c0_47] : memref<4x8x8xf32, #tpu.memory_space<vmem>>, vector<1x8x8xf32>
    %54 = vector.shape_cast %53 : vector<1x8x8xf32> to vector<8x8xf32>
    %cst_48 = arith.constant dense<0.000000e+00> : vector<8x8xf32>
    %55 = tpu.matmul %54, %49, %cst_48 {dimension_numbers = #tpu.dot_dimension_numbers<[1], [1], [0], [0], [0, 0, 1, 0], [], []>} : vector<8x8xf32>, vector<8x8xf32>, vector<8x8xf32> -> vector<8x8xf32>
    %c1_49 = arith.constant 1 : index
    %c0_50 = arith.constant 0 : index
    %c0_51 = arith.constant 0 : index
    %56 = vector.load %arg12[%c1_49, %c0_50, %c0_51] : memref<4x8x1xf32, #tpu.memory_space<vmem>>, vector<1x8x1xf32>
    %57 = vector.shape_cast %56 : vector<1x8x1xf32> to vector<8x1xf32>
    %cst_52 = arith.constant dense<0xFF800000> : vector<8xf32>
    %58 = vector.multi_reduction <maximumf>, %55, %cst_52 [1] : vector<8x8xf32> to vector<8xf32>
    %59 = vector.shape_cast %58 : vector<8xf32> to vector<8x1xf32>
    %60 = arith.maximumf %57, %59 : vector<8x1xf32>
    %61 = arith.subf %57, %60 : vector<8x1xf32>
    %62 = math.exp %61 : vector<8x1xf32>
    %63 = vector.broadcast %60 : vector<8x1xf32> to vector<8x8xf32>
    %64 = arith.subf %55, %63 : vector<8x8xf32>
    %65 = math.exp %64 : vector<8x8xf32>
    %c1_53 = arith.constant 1 : index
    %c0_54 = arith.constant 0 : index
    %c0_55 = arith.constant 0 : index
    %66 = vector.load %arg13[%c1_53, %c0_54, %c0_55] : memref<4x8x1xf32, #tpu.memory_space<vmem>>, vector<1x8x1xf32>
    %67 = vector.shape_cast %66 : vector<1x8x1xf32> to vector<8x1xf32>
    %68 = arith.mulf %62, %67 : vector<8x1xf32>
    %cst_56 = arith.constant dense<0.000000e+00> : vector<8xf32>
    %69 = vector.multi_reduction <add>, %65, %cst_56 [1] : vector<8x8xf32> to vector<8xf32>
    %70 = vector.shape_cast %69 : vector<8xf32> to vector<8x1xf32>
    %71 = arith.addf %68, %70 : vector<8x1xf32>
    %c1_57 = arith.constant 1 : index
    %c0_58 = arith.constant 0 : index
    %c0_59 = arith.constant 0 : index
    %72 = vector.load %arg13[%c1_57, %c0_58, %c0_59] : memref<4x8x1xf32, #tpu.memory_space<vmem>>, vector<1x8x1xf32>
    %73 = vector.shape_cast %72 : vector<1x8x1xf32> to vector<8x1xf32>
    %74 = vector.shape_cast %71 : vector<8x1xf32> to vector<1x8x1xf32>
    tpu.vector_store %arg13[%c1_57, %c0_58, %c0_59], %74 {strides = array<i32>} : memref<4x8x1xf32, #tpu.memory_space<vmem>>, vector<1x8x1xf32>,
    %c1_60 = arith.constant 1 : index
    %c0_61 = arith.constant 0 : index
    %c0_62 = arith.constant 0 : index
    %75 = vector.load %arg14[%c1_60, %c0_61, %c0_62] : memref<4x8x8xf32, #tpu.memory_space<vmem>>, vector<1x8x8xf32>
    %76 = vector.shape_cast %75 : vector<1x8x8xf32> to vector<8x8xf32>
    %77 = vector.broadcast %62 : vector<8x1xf32> to vector<8x8xf32>
    %78 = arith.mulf %77, %76 : vector<8x8xf32>
    %cst_63 = arith.constant dense<0.000000e+00> : vector<8x8xf32>
    %79 = tpu.matmul %65, %52, %cst_63 {dimension_numbers = #tpu.dot_dimension_numbers<[1], [0], [0], [1], [0, 0, 1, 1], [], []>} : vector<8x8xf32>, vector<8x8xf32>, vector<8x8xf32> -> vector<8x8xf32>
    %80 = arith.addf %78, %79 : vector<8x8xf32>
    %c1_64 = arith.constant 1 : index
    %c0_65 = arith.constant 0 : index
    %c0_66 = arith.constant 0 : index
    %81 = vector.load %arg14[%c1_64, %c0_65, %c0_66] : memref<4x8x8xf32, #tpu.memory_space<vmem>>, vector<1x8x8xf32>
    %82 = vector.shape_cast %81 : vector<1x8x8xf32> to vector<8x8xf32>
    %83 = vector.shape_cast %80 : vector<8x8xf32> to vector<1x8x8xf32>
    tpu.vector_store %arg14[%c1_64, %c0_65, %c0_66], %83 {strides = array<i32>} : memref<4x8x8xf32, #tpu.memory_space<vmem>>, vector<1x8x8xf32>,
    %c1_67 = arith.constant 1 : index
    %c0_68 = arith.constant 0 : index
    %c0_69 = arith.constant 0 : index
    %84 = vector.load %arg12[%c1_67, %c0_68, %c0_69] : memref<4x8x1xf32, #tpu.memory_space<vmem>>, vector<1x8x1xf32>
    %85 = vector.shape_cast %84 : vector<1x8x1xf32> to vector<8x1xf32>
    %86 = vector.shape_cast %60 : vector<8x1xf32> to vector<1x8x1xf32>
    tpu.vector_store %arg12[%c1_67, %c0_68, %c0_69], %86 {strides = array<i32>} : memref<4x8x1xf32, #tpu.memory_space<vmem>>, vector<1x8x1xf32>,
    %c2 = arith.constant 2 : index
    %c0_70 = arith.constant 0 : index
    %c0_71 = arith.constant 0 : index
    %87 = vector.load %arg7[%c2, %c0_70, %c0_71] : memref<4x16x8xf32, #tpu.memory_space<vmem>>, vector<1x16x8xf32>
    %88 = vector.shape_cast %87 : vector<1x16x8xf32> to vector<16x8xf32>
    %cst_72 = arith.constant dense<0.000000e+00> : vector<8x8xf32>
    %89 = tpu.matmul %4, %88, %cst_72 {dimension_numbers = #tpu.dot_dimension_numbers<[1], [0], [0], [1], [0, 0, 1, 1], [], []>} : vector<8x16xf32>, vector<16x8xf32>, vector<8x8xf32> -> vector<8x8xf32>
    %c2_73 = arith.constant 2 : index
    %c0_74 = arith.constant 0 : index
    %c0_75 = arith.constant 0 : index
    %90 = vector.load %arg8[%c2_73, %c0_74, %c0_75] : memref<4x24x8xf32, #tpu.memory_space<vmem>>, vector<1x24x8xf32>
    %91 = vector.shape_cast %90 : vector<1x24x8xf32> to vector<24x8xf32>
    %cst_76 = arith.constant dense<0.000000e+00> : vector<8x8xf32>
    %92 = tpu.matmul %6, %91, %cst_76 {dimension_numbers = #tpu.dot_dimension_numbers<[1], [0], [0], [1], [0, 0, 1, 1], [], []>} : vector<8x24xf32>, vector<24x8xf32>, vector<8x8xf32> -> vector<8x8xf32>
    %c2_77 = arith.constant 2 : index
    %c0_78 = arith.constant 0 : index
    %c0_79 = arith.constant 0 : index
    %93 = vector.load %arg11[%c2_77, %c0_78, %c0_79] : memref<4x8x8xf32, #tpu.memory_space<vmem>>, vector<1x8x8xf32>
    %94 = vector.shape_cast %93 : vector<1x8x8xf32> to vector<8x8xf32>
    %cst_80 = arith.constant dense<0.000000e+00> : vector<8x8xf32>
    %95 = tpu.matmul %94, %89, %cst_80 {dimension_numbers = #tpu.dot_dimension_numbers<[1], [1], [0], [0], [0, 0, 1, 0], [], []>} : vector<8x8xf32>, vector<8x8xf32>, vector<8x8xf32> -> vector<8x8xf32>
    %c2_81 = arith.constant 2 : index
    %c0_82 = arith.constant 0 : index
    %c0_83 = arith.constant 0 : index
    %96 = vector.load %arg12[%c2_81, %c0_82, %c0_83] : memref<4x8x1xf32, #tpu.memory_space<vmem>>, vector<1x8x1xf32>
    %97 = vector.shape_cast %96 : vector<1x8x1xf32> to vector<8x1xf32>
    %cst_84 = arith.constant dense<0xFF800000> : vector<8xf32>
    %98 = vector.multi_reduction <maximumf>, %95, %cst_84 [1] : vector<8x8xf32> to vector<8xf32>
    %99 = vector.shape_cast %98 : vector<8xf32> to vector<8x1xf32>
    %100 = arith.maximumf %97, %99 : vector<8x1xf32>
    %101 = arith.subf %97, %100 : vector<8x1xf32>
    %102 = math.exp %101 : vector<8x1xf32>
    %103 = vector.broadcast %100 : vector<8x1xf32> to vector<8x8xf32>
    %104 = arith.subf %95, %103 : vector<8x8xf32>
    %105 = math.exp %104 : vector<8x8xf32>
    %c2_85 = arith.constant 2 : index
    %c0_86 = arith.constant 0 : index
    %c0_87 = arith.constant 0 : index
    %106 = vector.load %arg13[%c2_85, %c0_86, %c0_87] : memref<4x8x1xf32, #tpu.memory_space<vmem>>, vector<1x8x1xf32>
    %107 = vector.shape_cast %106 : vector<1x8x1xf32> to vector<8x1xf32>
    %108 = arith.mulf %102, %107 : vector<8x1xf32>
    %cst_88 = arith.constant dense<0.000000e+00> : vector<8xf32>
    %109 = vector.multi_reduction <add>, %105, %cst_88 [1] : vector<8x8xf32> to vector<8xf32>
    %110 = vector.shape_cast %109 : vector<8xf32> to vector<8x1xf32>
    %111 = arith.addf %108, %110 : vector<8x1xf32>
    %c2_89 = arith.constant 2 : index
    %c0_90 = arith.constant 0 : index
    %c0_91 = arith.constant 0 : index
    %112 = vector.load %arg13[%c2_89, %c0_90, %c0_91] : memref<4x8x1xf32, #tpu.memory_space<vmem>>, vector<1x8x1xf32>
    %113 = vector.shape_cast %112 : vector<1x8x1xf32> to vector<8x1xf32>
    %114 = vector.shape_cast %111 : vector<8x1xf32> to vector<1x8x1xf32>
    tpu.vector_store %arg13[%c2_89, %c0_90, %c0_91], %114 {strides = array<i32>} : memref<4x8x1xf32, #tpu.memory_space<vmem>>, vector<1x8x1xf32>,
    %c2_92 = arith.constant 2 : index
    %c0_93 = arith.constant 0 : index
    %c0_94 = arith.constant 0 : index
    %115 = vector.load %arg14[%c2_92, %c0_93, %c0_94] : memref<4x8x8xf32, #tpu.memory_space<vmem>>, vector<1x8x8xf32>
    %116 = vector.shape_cast %115 : vector<1x8x8xf32> to vector<8x8xf32>
    %117 = vector.broadcast %102 : vector<8x1xf32> to vector<8x8xf32>
    %118 = arith.mulf %117, %116 : vector<8x8xf32>
    %cst_95 = arith.constant dense<0.000000e+00> : vector<8x8xf32>
    %119 = tpu.matmul %105, %92, %cst_95 {dimension_numbers = #tpu.dot_dimension_numbers<[1], [0], [0], [1], [0, 0, 1, 1], [], []>} : vector<8x8xf32>, vector<8x8xf32>, vector<8x8xf32> -> vector<8x8xf32>
    %120 = arith.addf %118, %119 : vector<8x8xf32>
    %c2_96 = arith.constant 2 : index
    %c0_97 = arith.constant 0 : index
    %c0_98 = arith.constant 0 : index
    %121 = vector.load %arg14[%c2_96, %c0_97, %c0_98] : memref<4x8x8xf32, #tpu.memory_space<vmem>>, vector<1x8x8xf32>
    %122 = vector.shape_cast %121 : vector<1x8x8xf32> to vector<8x8xf32>
    %123 = vector.shape_cast %120 : vector<8x8xf32> to vector<1x8x8xf32>
    tpu.vector_store %arg14[%c2_96, %c0_97, %c0_98], %123 {strides = array<i32>} : memref<4x8x8xf32, #tpu.memory_space<vmem>>, vector<1x8x8xf32>,
    %c2_99 = arith.constant 2 : index
    %c0_100 = arith.constant 0 : index
    %c0_101 = arith.constant 0 : index
    %124 = vector.load %arg12[%c2_99, %c0_100, %c0_101] : memref<4x8x1xf32, #tpu.memory_space<vmem>>, vector<1x8x1xf32>
    %125 = vector.shape_cast %124 : vector<1x8x1xf32> to vector<8x1xf32>
    %126 = vector.shape_cast %100 : vector<8x1xf32> to vector<1x8x1xf32>
    tpu.vector_store %arg12[%c2_99, %c0_100, %c0_101], %126 {strides = array<i32>} : memref<4x8x1xf32, #tpu.memory_space<vmem>>, vector<1x8x1xf32>,
    %c3 = arith.constant 3 : index
    %c0_102 = arith.constant 0 : index
    %c0_103 = arith.constant 0 : index
    %127 = vector.load %arg7[%c3, %c0_102, %c0_103] : memref<4x16x8xf32, #tpu.memory_space<vmem>>, vector<1x16x8xf32>
    %128 = vector.shape_cast %127 : vector<1x16x8xf32> to vector<16x8xf32>
    %cst_104 = arith.constant dense<0.000000e+00> : vector<8x8xf32>
    %129 = tpu.matmul %4, %128, %cst_104 {dimension_numbers = #tpu.dot_dimension_numbers<[1], [0], [0], [1], [0, 0, 1, 1], [], []>} : vector<8x16xf32>, vector<16x8xf32>, vector<8x8xf32> -> vector<8x8xf32>
    %c3_105 = arith.constant 3 : index
    %c0_106 = arith.constant 0 : index
    %c0_107 = arith.constant 0 : index
    %130 = vector.load %arg8[%c3_105, %c0_106, %c0_107] : memref<4x24x8xf32, #tpu.memory_space<vmem>>, vector<1x24x8xf32>
    %131 = vector.shape_cast %130 : vector<1x24x8xf32> to vector<24x8xf32>
    %cst_108 = arith.constant dense<0.000000e+00> : vector<8x8xf32>
    %132 = tpu.matmul %6, %131, %cst_108 {dimension_numbers = #tpu.dot_dimension_numbers<[1], [0], [0], [1], [0, 0, 1, 1], [], []>} : vector<8x24xf32>, vector<24x8xf32>, vector<8x8xf32> -> vector<8x8xf32>
    %c3_109 = arith.constant 3 : index
    %c0_110 = arith.constant 0 : index
    %c0_111 = arith.constant 0 : index
    %133 = vector.load %arg11[%c3_109, %c0_110, %c0_111] : memref<4x8x8xf32, #tpu.memory_space<vmem>>, vector<1x8x8xf32>
    %134 = vector.shape_cast %133 : vector<1x8x8xf32> to vector<8x8xf32>
    %cst_112 = arith.constant dense<0.000000e+00> : vector<8x8xf32>
    %135 = tpu.matmul %134, %129, %cst_112 {dimension_numbers = #tpu.dot_dimension_numbers<[1], [1], [0], [0], [0, 0, 1, 0], [], []>} : vector<8x8xf32>, vector<8x8xf32>, vector<8x8xf32> -> vector<8x8xf32>
    %c3_113 = arith.constant 3 : index
    %c0_114 = arith.constant 0 : index
    %c0_115 = arith.constant 0 : index
    %136 = vector.load %arg12[%c3_113, %c0_114, %c0_115] : memref<4x8x1xf32, #tpu.memory_space<vmem>>, vector<1x8x1xf32>
    %137 = vector.shape_cast %136 : vector<1x8x1xf32> to vector<8x1xf32>
    %cst_116 = arith.constant dense<0xFF800000> : vector<8xf32>
    %138 = vector.multi_reduction <maximumf>, %135, %cst_116 [1] : vector<8x8xf32> to vector<8xf32>
    %139 = vector.shape_cast %138 : vector<8xf32> to vector<8x1xf32>
    %140 = arith.maximumf %137, %139 : vector<8x1xf32>
    %141 = arith.subf %137, %140 : vector<8x1xf32>
    %142 = math.exp %141 : vector<8x1xf32>
    %143 = vector.broadcast %140 : vector<8x1xf32> to vector<8x8xf32>
    %144 = arith.subf %135, %143 : vector<8x8xf32>
    %145 = math.exp %144 : vector<8x8xf32>
    %c3_117 = arith.constant 3 : index
    %c0_118 = arith.constant 0 : index
    %c0_119 = arith.constant 0 : index
    %146 = vector.load %arg13[%c3_117, %c0_118, %c0_119] : memref<4x8x1xf32, #tpu.memory_space<vmem>>, vector<1x8x1xf32>
    %147 = vector.shape_cast %146 : vector<1x8x1xf32> to vector<8x1xf32>
    %148 = arith.mulf %142, %147 : vector<8x1xf32>
    %cst_120 = arith.constant dense<0.000000e+00> : vector<8xf32>
    %149 = vector.multi_reduction <add>, %145, %cst_120 [1] : vector<8x8xf32> to vector<8xf32>
    %150 = vector.shape_cast %149 : vector<8xf32> to vector<8x1xf32>
    %151 = arith.addf %148, %150 : vector<8x1xf32>
    %c3_121 = arith.constant 3 : index
    %c0_122 = arith.constant 0 : index
    %c0_123 = arith.constant 0 : index
    %152 = vector.load %arg13[%c3_121, %c0_122, %c0_123] : memref<4x8x1xf32, #tpu.memory_space<vmem>>, vector<1x8x1xf32>
    %153 = vector.shape_cast %152 : vector<1x8x1xf32> to vector<8x1xf32>
    %154 = vector.shape_cast %151 : vector<8x1xf32> to vector<1x8x1xf32>
    tpu.vector_store %arg13[%c3_121, %c0_122, %c0_123], %154 {strides = array<i32>} : memref<4x8x1xf32, #tpu.memory_space<vmem>>, vector<1x8x1xf32>,
    %c3_124 = arith.constant 3 : index
    %c0_125 = arith.constant 0 : index
    %c0_126 = arith.constant 0 : index
    %155 = vector.load %arg14[%c3_124, %c0_125, %c0_126] : memref<4x8x8xf32, #tpu.memory_space<vmem>>, vector<1x8x8xf32>
    %156 = vector.shape_cast %155 : vector<1x8x8xf32> to vector<8x8xf32>
    %157 = vector.broadcast %142 : vector<8x1xf32> to vector<8x8xf32>
    %158 = arith.mulf %157, %156 : vector<8x8xf32>
    %cst_127 = arith.constant dense<0.000000e+00> : vector<8x8xf32>
    %159 = tpu.matmul %145, %132, %cst_127 {dimension_numbers = #tpu.dot_dimension_numbers<[1], [0], [0], [1], [0, 0, 1, 1], [], []>} : vector<8x8xf32>, vector<8x8xf32>, vector<8x8xf32> -> vector<8x8xf32>
    %160 = arith.addf %158, %159 : vector<8x8xf32>
    %c3_128 = arith.constant 3 : index
    %c0_129 = arith.constant 0 : index
    %c0_130 = arith.constant 0 : index
    %161 = vector.load %arg14[%c3_128, %c0_129, %c0_130] : memref<4x8x8xf32, #tpu.memory_space<vmem>>, vector<1x8x8xf32>
    %162 = vector.shape_cast %161 : vector<1x8x8xf32> to vector<8x8xf32>
    %163 = vector.shape_cast %160 : vector<8x8xf32> to vector<1x8x8xf32>
    tpu.vector_store %arg14[%c3_128, %c0_129, %c0_130], %163 {strides = array<i32>} : memref<4x8x8xf32, #tpu.memory_space<vmem>>, vector<1x8x8xf32>,
    %c3_131 = arith.constant 3 : index
    %c0_132 = arith.constant 0 : index
    %c0_133 = arith.constant 0 : index
    %164 = vector.load %arg12[%c3_131, %c0_132, %c0_133] : memref<4x8x1xf32, #tpu.memory_space<vmem>>, vector<1x8x1xf32>
    %165 = vector.shape_cast %164 : vector<1x8x1xf32> to vector<8x1xf32>
    %166 = vector.shape_cast %140 : vector<8x1xf32> to vector<1x8x1xf32>
    tpu.vector_store %arg12[%c3_131, %c0_132, %c0_133], %166 {strides = array<i32>} : memref<4x8x1xf32, #tpu.memory_space<vmem>>, vector<1x8x1xf32>,
    %c0_i32_134 = arith.constant 0 : i32
    %167 = arith.cmpi eq, %arg2, %c0_i32_134 : i32
    %168 = arith.extui %167 : i1 to i32
    %c0_i32_135 = arith.constant 0 : i32
    %169 = arith.cmpi ne, %168, %c0_i32_135 : i32
    scf.if %169 {
      %cst_136 = arith.constant 0.000000e+00 : f32
      %170 = vector.broadcast %cst_136 : f32 to vector<8x32xf32>
      %c0_137 = arith.constant 0 : index
      %c0_138 = arith.constant 0 : index
      %c0_139 = arith.constant 0 : index
      %171 = vector.load %arg14[%c0_137, %c0_138, %c0_139] : memref<4x8x8xf32, #tpu.memory_space<vmem>>, vector<1x8x8xf32>
      %172 = vector.shape_cast %171 : vector<1x8x8xf32> to vector<8x8xf32>
      %c0_140 = arith.constant 0 : index
      %c0_141 = arith.constant 0 : index
      %c0_142 = arith.constant 0 : index
      %173 = vector.load %arg13[%c0_140, %c0_141, %c0_142] : memref<4x8x1xf32, #tpu.memory_space<vmem>>, vector<1x8x1xf32>
      %174 = vector.shape_cast %173 : vector<1x8x1xf32> to vector<8x1xf32>
      %175 = tpu.reciprocal %174 {approx = true} : vector<8x1xf32> -> vector<8x1xf32>
      %176 = vector.broadcast %175 : vector<8x1xf32> to vector<8x8xf32>
      %177 = arith.mulf %172, %176 : vector<8x8xf32>
      %c0_143 = arith.constant 0 : index
      %c0_144 = arith.constant 0 : index
      %c0_145 = arith.constant 0 : index
      %178 = vector.load %arg9[%c0_143, %c0_144, %c0_145] : memref<4x8x32xf32, #tpu.memory_space<vmem>>, vector<1x8x32xf32>
      %179 = vector.shape_cast %178 : vector<1x8x32xf32> to vector<8x32xf32>
      %cst_146 = arith.constant dense<0.000000e+00> : vector<8x32xf32>
      %180 = tpu.matmul %177, %179, %cst_146 {dimension_numbers = #tpu.dot_dimension_numbers<[1], [0], [0], [1], [0, 0, 1, 1], [], []>} : vector<8x8xf32>, vector<8x32xf32>, vector<8x32xf32> -> vector<8x32xf32>
      %181 = arith.addf %170, %180 : vector<8x32xf32>
      %c1_147 = arith.constant 1 : index
      %c0_148 = arith.constant 0 : index
      %c0_149 = arith.constant 0 : index
      %182 = vector.load %arg14[%c1_147, %c0_148, %c0_149] : memref<4x8x8xf32, #tpu.memory_space<vmem>>, vector<1x8x8xf32>
      %183 = vector.shape_cast %182 : vector<1x8x8xf32> to vector<8x8xf32>
      %c1_150 = arith.constant 1 : index
      %c0_151 = arith.constant 0 : index
      %c0_152 = arith.constant 0 : index
      %184 = vector.load %arg13[%c1_150, %c0_151, %c0_152] : memref<4x8x1xf32, #tpu.memory_space<vmem>>, vector<1x8x1xf32>
      %185 = vector.shape_cast %184 : vector<1x8x1xf32> to vector<8x1xf32>
      %186 = tpu.reciprocal %185 {approx = true} : vector<8x1xf32> -> vector<8x1xf32>
      %187 = vector.broadcast %186 : vector<8x1xf32> to vector<8x8xf32>
      %188 = arith.mulf %183, %187 : vector<8x8xf32>
      %c1_153 = arith.constant 1 : index
      %c0_154 = arith.constant 0 : index
      %c0_155 = arith.constant 0 : index
      %189 = vector.load %arg9[%c1_153, %c0_154, %c0_155] : memref<4x8x32xf32, #tpu.memory_space<vmem>>, vector<1x8x32xf32>
      %190 = vector.shape_cast %189 : vector<1x8x32xf32> to vector<8x32xf32>
      %cst_156 = arith.constant dense<0.000000e+00> : vector<8x32xf32>
      %191 = tpu.matmul %188, %190, %cst_156 {dimension_numbers = #tpu.dot_dimension_numbers<[1], [0], [0], [1], [0, 0, 1, 1], [], []>} : vector<8x8xf32>, vector<8x32xf32>, vector<8x32xf32> -> vector<8x32xf32>
      %192 = arith.addf %181, %191 : vector<8x32xf32>
      %c2_157 = arith.constant 2 : index
      %c0_158 = arith.constant 0 : index
      %c0_159 = arith.constant 0 : index
      %193 = vector.load %arg14[%c2_157, %c0_158, %c0_159] : memref<4x8x8xf32, #tpu.memory_space<vmem>>, vector<1x8x8xf32>
      %194 = vector.shape_cast %193 : vector<1x8x8xf32> to vector<8x8xf32>
      %c2_160 = arith.constant 2 : index
      %c0_161 = arith.constant 0 : index
      %c0_162 = arith.constant 0 : index
      %195 = vector.load %arg13[%c2_160, %c0_161, %c0_162] : memref<4x8x1xf32, #tpu.memory_space<vmem>>, vector<1x8x1xf32>
      %196 = vector.shape_cast %195 : vector<1x8x1xf32> to vector<8x1xf32>
      %197 = tpu.reciprocal %196 {approx = true} : vector<8x1xf32> -> vector<8x1xf32>
      %198 = vector.broadcast %197 : vector<8x1xf32> to vector<8x8xf32>
      %199 = arith.mulf %194, %198 : vector<8x8xf32>
      %c2_163 = arith.constant 2 : index
      %c0_164 = arith.constant 0 : index
      %c0_165 = arith.constant 0 : index
      %200 = vector.load %arg9[%c2_163, %c0_164, %c0_165] : memref<4x8x32xf32, #tpu.memory_space<vmem>>, vector<1x8x32xf32>
      %201 = vector.shape_cast %200 : vector<1x8x32xf32> to vector<8x32xf32>
      %cst_166 = arith.constant dense<0.000000e+00> : vector<8x32xf32>
      %202 = tpu.matmul %199, %201, %cst_166 {dimension_numbers = #tpu.dot_dimension_numbers<[1], [0], [0], [1], [0, 0, 1, 1], [], []>} : vector<8x8xf32>, vector<8x32xf32>, vector<8x32xf32> -> vector<8x32xf32>
      %203 = arith.addf %192, %202 : vector<8x32xf32>
      %c3_167 = arith.constant 3 : index
      %c0_168 = arith.constant 0 : index
      %c0_169 = arith.constant 0 : index
      %204 = vector.load %arg14[%c3_167, %c0_168, %c0_169] : memref<4x8x8xf32, #tpu.memory_space<vmem>>, vector<1x8x8xf32>
      %205 = vector.shape_cast %204 : vector<1x8x8xf32> to vector<8x8xf32>
      %c3_170 = arith.constant 3 : index
      %c0_171 = arith.constant 0 : index
      %c0_172 = arith.constant 0 : index
      %206 = vector.load %arg13[%c3_170, %c0_171, %c0_172] : memref<4x8x1xf32, #tpu.memory_space<vmem>>, vector<1x8x1xf32>
      %207 = vector.shape_cast %206 : vector<1x8x1xf32> to vector<8x1xf32>
      %208 = tpu.reciprocal %207 {approx = true} : vector<8x1xf32> -> vector<8x1xf32>
      %209 = vector.broadcast %208 : vector<8x1xf32> to vector<8x8xf32>
      %210 = arith.mulf %205, %209 : vector<8x8xf32>
      %c3_173 = arith.constant 3 : index
      %c0_174 = arith.constant 0 : index
      %c0_175 = arith.constant 0 : index
      %211 = vector.load %arg9[%c3_173, %c0_174, %c0_175] : memref<4x8x32xf32, #tpu.memory_space<vmem>>, vector<1x8x32xf32>
      %212 = vector.shape_cast %211 : vector<1x8x32xf32> to vector<8x32xf32>
      %cst_176 = arith.constant dense<0.000000e+00> : vector<8x32xf32>
      %213 = tpu.matmul %210, %212, %cst_176 {dimension_numbers = #tpu.dot_dimension_numbers<[1], [0], [0], [1], [0, 0, 1, 1], [], []>} : vector<8x8xf32>, vector<8x32xf32>, vector<8x32xf32> -> vector<8x32xf32>
      %214 = arith.addf %203, %213 : vector<8x32xf32>
      %c0_177 = arith.constant 0 : index
      %c0_178 = arith.constant 0 : index
      %c0_179 = arith.constant 0 : index
      %215 = vector.load %arg10[%c0_177, %c0_178, %c0_179] : memref<1x8x32xf32, #tpu.memory_space<vmem>>, vector<1x8x32xf32>
      %216 = vector.shape_cast %215 : vector<1x8x32xf32> to vector<8x32xf32>
      %217 = vector.shape_cast %214 : vector<8x32xf32> to vector<1x8x32xf32>
      tpu.vector_store %arg10[%c0_177, %c0_178, %c0_179], %217 {strides = array<i32>} : memref<1x8x32xf32, #tpu.memory_space<vmem>>, vector<1x8x32xf32>,
    } else {
    }
    return
  }
  func.func @transform_0(%arg0: i32, %arg1: i32, %arg2: i32) -> (i32, i32, i32) {
    %c0_i32 = arith.constant 0 : i32
    %c0_i32_0 = arith.constant 0 : i32
    return %arg0, %arg1, %c0_i32 : i32, i32, i32
  }
  func.func @transform_1(%arg0: i32, %arg1: i32, %arg2: i32) -> (i32, i32, i32) {
    %c0_i32 = arith.constant 0 : i32
    %c0_i32_0 = arith.constant 0 : i32
    return %arg0, %arg2, %c0_i32 : i32, i32, i32
  }
  func.func @transform_2(%arg0: i32, %arg1: i32, %arg2: i32) -> (i32, i32, i32) {
    %c0_i32 = arith.constant 0 : i32
    %c0_i32_0 = arith.constant 0 : i32
    return %arg0, %arg2, %c0_i32 : i32, i32, i32
  }
  func.func @transform_3(%arg0: i32, %arg1: i32, %arg2: i32) -> (i32, i32, i32) {
    %c0_i32 = arith.constant 0 : i32
    %c0_i32_0 = arith.constant 0 : i32
    %c0_i32_1 = arith.constant 0 : i32
    %c0_i32_2 = arith.constant 0 : i32
    return %c0_i32, %c0_i32_0, %c0_i32_1 : i32, i32, i32
  }
  func.func @transform_4(%arg0: i32, %arg1: i32, %arg2: i32) -> (i32, i32, i32) {
    %c0_i32 = arith.constant 0 : i32
    %c0_i32_0 = arith.constant 0 : i32
    %c0_i32_1 = arith.constant 0 : i32
    %c0_i32_2 = arith.constant 0 : i32
    return %c0_i32, %c0_i32_0, %c0_i32_1 : i32, i32, i32
  }
  func.func @transform_5(%arg0: i32, %arg1: i32, %arg2: i32) -> (i32, i32, i32) {
    %c0_i32 = arith.constant 0 : i32
    %c0_i32_0 = arith.constant 0 : i32
    %c0_i32_1 = arith.constant 0 : i32
    %c0_i32_2 = arith.constant 0 : i32
    return %c0_i32, %c0_i32_0, %c0_i32_1 : i32, i32, i32
  }
  func.func @transform_6(%arg0: i32, %arg1: i32, %arg2: i32) -> (i32, i32, i32) {
    %c0_i32 = arith.constant 0 : i32
    %c0_i32_0 = arith.constant 0 : i32
    %c0_i32_1 = arith.constant 0 : i32
    %c0_i32_2 = arith.constant 0 : i32
    return %c0_i32, %c0_i32_0, %c0_i32_1 : i32, i32, i32
  }
  func.func @transform_7(%arg0: i32, %arg1: i32, %arg2: i32) -> (i32, i32, i32) {
    %c0_i32 = arith.constant 0 : i32
    %c0_i32_0 = arith.constant 0 : i32
    return %arg0, %arg1, %c0_i32 : i32, i32, i32
  }
}

</mosaic_0001>

<llo_original>
// kernel: tpu_custom_call.1
$region0: #{tpu_custom_call.1}
  #allocation0 [shape = 'u32[]', space=smem, size = 0x4, offset = 0x4, fixed_abs, tag = 'smem constant byte address 0x4 - core index']
  #allocation1 [shape = 'u32[144,128]{1,0:T(1,128)}', space=vmem, size = 0x12000, scoped, tag = 'internal scratch']
  #allocation2 [shape = 'f32[4,8,8]{2,1,0:T(8,128)}', space=vmem, size = 0x4000, scoped, tag = 'scratch operand']
  #allocation3 [shape = 'f32[4,8,1]{2,1,0:T(8,128)}', space=vmem, size = 0x4000, scoped, tag = 'scratch operand']
  #allocation4 [shape = 'f32[4,8,1]{2,1,0:T(8,128)}', space=vmem, size = 0x4000, scoped, tag = 'scratch operand']
  #allocation5 [shape = 'f32[4,8,8]{2,1,0:T(8,128)}', space=vmem, size = 0x4000, scoped, tag = 'scratch operand']
  %s0 = inlined_call_operand.vmem [shape: f32[2,8,16], index: 0, kind: input, shape index: {}]
  %s1 = inlined_call_operand.vmem [shape: f32[2,8,16], index: 1, kind: input, shape index: {}]
  %s2 = inlined_call_operand.vmem [shape: f32[2,8,24], index: 2, kind: input, shape index: {}]
  %s3 = inlined_call_operand.vmem [shape: f32[4,16,8], index: 3, kind: input, shape index: {}]
  %s4 = inlined_call_operand.vmem [shape: f32[4,16,8], index: 4, kind: input, shape index: {}]
  %s5 = inlined_call_operand.vmem [shape: f32[4,24,8], index: 5, kind: input, shape index: {}]
  %s6 = inlined_call_operand.vmem [shape: f32[4,8,32], index: 6, kind: input, shape index: {}]
  %s7 = inlined_call_operand.hbm [shape: f32[2,8,32], index: 7, kind: output, shape index: {}]
  %s8 = sld [smem:[#allocation0]]
  $region69: #{tpu_custom_call.1} parent=0
    _
  %s10 = ssub.s32 1, %s8
  %s11 = scalar_select 0, %s10, %s8
  $region1: #{tpu_custom_call.1} parent=0
    #allocation6 [shape = 'u8[8192]{0}', space=vmem, size = 0x2000, scoped, tag = 'output window, operand 0']
    #allocation7 [shape = 's32[2]{0}', space=sflag, size = 0x8, scoped, tag = 'scoped memory for tpu_custom_call.1']
    %12 = vsyncpa [#allocation7], 0
    %s13 = scalar_lea.sflag [#allocation7], 1
    %14 = vsyncpa %s13, 0
    loop: start=0, step=1, limit=4
    $region2: #{tpu_custom_call.1} parent=1 // loop_pre_header
      _
    $region3: #{tpu_custom_call.1} parent=1 // loop_header
      %s16 = sphi 0, %s20
      %p17 = scmp.ge.s32.totalorder %s16, 4
      %s23 = sphi 0, %s42
      %s24 = sphi 0, %s38
      %s25 = sphi 0, %s34
      %s26 = sphi 0, %s23
      %s27 = sphi 0, %s24
      %s28 = sphi 0, %s25
      %s29 = sphi 0, %s26
      %s30 = sphi 0, %s27
      %s31 = sphi 0, %s28
      %s47 = sphi 0, %s49
      %s50 = sphi 0, %s47
      %s51 = sphi 0, %s50
      %s67 = sphi 0, %s51
      %s75 = sphi 0, %s77
      %s78 = sphi 0, %s75
      %s79 = sphi 0, %s78
      %s95 = sphi 0, %s79
      %s103 = sphi 0, %s105
      %s106 = sphi 0, %s103
      %s107 = sphi 0, %s106
      %s123 = sphi 0, %s107
      %s127 = sphi 0, %s127
      %s129 = sphi 0, %s127
      %s130 = sphi 0, %s129
      %s144 = sphi 0, %s130
      %s148 = sphi 0, %s148
      %s150 = sphi 0, %s148
      %s151 = sphi 0, %s150
      %s165 = sphi 0, %s151
      %s169 = sphi 0, %s169
      %s171 = sphi 0, %s169
      %s172 = sphi 0, %s171
      %s186 = sphi 0, %s172
      %s190 = sphi 0, %s190
      %s192 = sphi 0, %s190
      %s193 = sphi 0, %s192
      %s207 = sphi 0, %s193
      %s215 = sphi 0, %s217
      %s218 = sphi 0, %s215
      %s219 = sphi 0, %s218
      %s235 = sphi 0, %s219
    $region4: #{tpu_custom_call.1} parent=1 // loop_header_branch
      %19 = sbr.rel (%p17) target = $region8
    $region5: #{tpu_custom_call.1} parent=1 // loop_body
      %s21 = ssub.s32 %s16, 1
      %s22 = ssub.s32 %s16, 2
      %s32 = sadd.s32 1, %s25
      %p33 = scmp.ge.s32.totalorder %s32, 1
      %s34 = scalar_select %p33, 0, %s32
      %s35 = sadd.s32 1, %s24
      %s36 = scalar_select %p33, %s35, %s24
      %p37 = scmp.ge.s32.totalorder %s36, 1
      %s38 = scalar_select %p37, 0, %s36
      %s39 = sadd.s32 1, %s23
      %s40 = scalar_select %p37, %s39, %s23
      %p41 = scmp.ge.s32.totalorder %s40, 2
      %s42 = scalar_select %p41, 0, %s40
      %s43 = ssub.s32 %s23, %s42
      %s44 = ssub.s32 %s24, %s38
      %s45 = sor.u32 %s43, %s44
      %p46 = scmp.eq.s32.totalorder %s45, 0
      %s48 = sadd.s32 %s47, 1
      %s49 = scalar_select %p46, %s47, %s48
      %p52 = pneg %p46
      %p53 = scmp.eq.s32.totalorder %s16, 1
      %p54 = por %p52, %p53
      %p55 = scmp.ne.s32.totalorder %s47, %s50
      %p56 = scmp.eq.s32.totalorder %s16, 0
      %p57 = por %p55, %p56
      %p58 = scmp.ne.s32.totalorder %s47, %s50
      %p59 = scmp.eq.s32.totalorder %s21, 1
      %p60 = por %p58, %p59
      %p61 = scmp.ne.s32.totalorder %s50, %s51
      %p62 = scmp.eq.s32.totalorder %s21, 0
      %p63 = por %p61, %p62
      %p64 = scmp.ne.s32.totalorder %s50, %s51
      %p65 = scmp.eq.s32.totalorder %s22, 1
      %p66 = por %p64, %p65
      %p68 = scmp.ne.s32.totalorder %s51, %s67
      %p69 = scmp.eq.s32.totalorder %s22, 0
      %p70 = por %p68, %p69
      %s71 = ssub.s32 %s23, %s42
      %s72 = ssub.s32 %s25, %s34
      %s73 = sor.u32 %s71, %s72
      %p74 = scmp.eq.s32.totalorder %s73, 0
      %s76 = sadd.s32 %s75, 1
      %s77 = scalar_select %p74, %s75, %s76
      %p80 = pneg %p74
      %p81 = scmp.eq.s32.totalorder %s16, 1
      %p82 = por %p80, %p81
      %p83 = scmp.ne.s32.totalorder %s75, %s78
      %p84 = scmp.eq.s32.totalorder %s16, 0
      %p85 = por %p83, %p84
      %p86 = scmp.ne.s32.totalorder %s75, %s78
      %p87 = scmp.eq.s32.totalorder %s21, 1
      %p88 = por %p86, %p87
      %p89 = scmp.ne.s32.totalorder %s78, %s79
      %p90 = scmp.eq.s32.totalorder %s21, 0
      %p91 = por %p89, %p90
      %p92 = scmp.ne.s32.totalorder %s78, %s79
      %p93 = scmp.eq.s32.totalorder %s22, 1
      %p94 = por %p92, %p93
      %p96 = scmp.ne.s32.totalorder %s79, %s95
      %p97 = scmp.eq.s32.totalorder %s22, 0
      %p98 = por %p96, %p97
      %s99 = ssub.s32 %s23, %s42
      %s100 = ssub.s32 %s25, %s34
      %s101 = sor.u32 %s99, %s100
      %p102 = scmp.eq.s32.totalorder %s101, 0
      %s104 = sadd.s32 %s103, 1
      %s105 = scalar_select %p102, %s103, %s104
      %p108 = pneg %p102
      %p109 = scmp.eq.s32.totalorder %s16, 1
      %p110 = por %p108, %p109
      %p111 = scmp.ne.s32.totalorder %s103, %s106
      %p112 = scmp.eq.s32.totalorder %s16, 0
      %p113 = por %p111, %p112
      %p114 = scmp.ne.s32.totalorder %s103, %s106
      %p115 = scmp.eq.s32.totalorder %s21, 1
      %p116 = por %p114, %p115
      %p117 = scmp.ne.s32.totalorder %s106, %s107
      %p118 = scmp.eq.s32.totalorder %s21, 0
      %p119 = por %p117, %p118
      %p120 = scmp.ne.s32.totalorder %s106, %s107
      %p121 = scmp.eq.s32.totalorder %s22, 1
      %p122 = por %p120, %p121
      %p124 = scmp.ne.s32.totalorder %s107, %s123
      %p125 = scmp.eq.s32.totalorder %s22, 0
      %p126 = por %p124, %p125
      %s128 = sadd.s32 %s127, 1
      %p131 = scmp.eq.s32.totalorder %s16, 1
      %p132 = scmp.ne.s32.totalorder %s127, %s129
      %p133 = scmp.eq.s32.totalorder %s16, 0
      %p134 = por %p132, %p133
      %p135 = scmp.ne.s32.totalorder %s127, %s129
      %p136 = scmp.eq.s32.totalorder %s21, 1
      %p137 = por %p135, %p136
      %p138 = scmp.ne.s32.totalorder %s129, %s130
      %p139 = scmp.eq.s32.totalorder %s21, 0
      %p140 = por %p138, %p139
      %p141 = scmp.ne.s32.totalorder %s129, %s130
      %p142 = scmp.eq.s32.totalorder %s22, 1
      %p143 = por %p141, %p142
      %p145 = scmp.ne.s32.totalorder %s130, %s144
      %p146 = scmp.eq.s32.totalorder %s22, 0
      %p147 = por %p145, %p146
      %s149 = sadd.s32 %s148, 1
      %p152 = scmp.eq.s32.totalorder %s16, 1
      %p153 = scmp.ne.s32.totalorder %s148, %s150
      %p154 = scmp.eq.s32.totalorder %s16, 0
      %p155 = por %p153, %p154
      %p156 = scmp.ne.s32.totalorder %s148, %s150
      %p157 = scmp.eq.s32.totalorder %s21, 1
      %p158 = por %p156, %p157
      %p159 = scmp.ne.s32.totalorder %s150, %s151
      %p160 = scmp.eq.s32.totalorder %s21, 0
      %p161 = por %p159, %p160
      %p162 = scmp.ne.s32.totalorder %s150, %s151
      %p163 = scmp.eq.s32.totalorder %s22, 1
      %p164 = por %p162, %p163
      %p166 = scmp.ne.s32.totalorder %s151, %s165
      %p167 = scmp.eq.s32.totalorder %s22, 0
      %p168 = por %p166, %p167
      %s170 = sadd.s32 %s169, 1
      %p173 = scmp.eq.s32.totalorder %s16, 1
      %p174 = scmp.ne.s32.totalorder %s169, %s171
      %p175 = scmp.eq.s32.totalorder %s16, 0
      %p176 = por %p174, %p175
      %p177 = scmp.ne.s32.totalorder %s169, %s171
      %p178 = scmp.eq.s32.totalorder %s21, 1
      %p179 = por %p177, %p178
      %p180 = scmp.ne.s32.totalorder %s171, %s172
      %p181 = scmp.eq.s32.totalorder %s21, 0
      %p182 = por %p180, %p181
      %p183 = scmp.ne.s32.totalorder %s171, %s172
      %p184 = scmp.eq.s32.totalorder %s22, 1
      %p185 = por %p183, %p184
      %p187 = scmp.ne.s32.totalorder %s172, %s186
      %p188 = scmp.eq.s32.totalorder %s22, 0
      %p189 = por %p187, %p188
      %s191 = sadd.s32 %s190, 1
      %p194 = scmp.eq.s32.totalorder %s16, 1
      %p195 = scmp.ne.s32.totalorder %s190, %s192
      %p196 = scmp.eq.s32.totalorder %s16, 0
      %p197 = por %p195, %p196
      %p198 = scmp.ne.s32.totalorder %s190, %s192
      %p199 = scmp.eq.s32.totalorder %s21, 1
      %p200 = por %p198, %p199
      %p201 = scmp.ne.s32.totalorder %s192, %s193
      %p202 = scmp.eq.s32.totalorder %s21, 0
      %p203 = por %p201, %p202
      %p204 = scmp.ne.s32.totalorder %s192, %s193
      %p205 = scmp.eq.s32.totalorder %s22, 1
      %p206 = por %p204, %p205
      %p208 = scmp.ne.s32.totalorder %s193, %s207
      %p209 = scmp.eq.s32.totalorder %s22, 0
      %p210 = por %p208, %p209
      %s211 = ssub.s32 %s23, %s42
      %s212 = ssub.s32 %s24, %s38
      %s213 = sor.u32 %s211, %s212
      %p214 = scmp.eq.s32.totalorder %s213, 0
      %s216 = sadd.s32 %s215, 1
      %s217 = scalar_select %p214, %s215, %s216
      %p220 = pneg %p214
      %p221 = scmp.eq.s32.totalorder %s16, 1
      %p222 = por %p220, %p221
      %p223 = scmp.ne.s32.totalorder %s215, %s218
      %p224 = scmp.eq.s32.totalorder %s16, 0
      %p225 = por %p223, %p224
      %p226 = scmp.ne.s32.totalorder %s215, %s218
      %p227 = scmp.eq.s32.totalorder %s21, 1
      %p228 = por %p226, %p227
      %p229 = scmp.ne.s32.totalorder %s218, %s219
      %p230 = scmp.eq.s32.totalorder %s21, 0
      %p231 = por %p229, %p230
      %p232 = scmp.ne.s32.totalorder %s218, %s219
      %p233 = scmp.eq.s32.totalorder %s22, 1
      %p234 = por %p232, %p233
      %p236 = scmp.ne.s32.totalorder %s219, %s235
      %p237 = scmp.eq.s32.totalorder %s22, 0
      %p238 = por %p236, %p237
      %p239 = scmp.le.s32.totalorder 1, %s16
      %p240 = scmp.lt.s32.totalorder %s16, 3
      %p241 = pnand %p239, %p240
      %p242 = pneg %p241
      // Predicated region
      $region9: #{tpu_custom_call.1} parent=5 // pred_check
        _
      $region10: #{tpu_custom_call.1} parent=5 // pred_check_branch
        %244 = sbr.rel (%p241) target = $region12
      $region11: #{tpu_custom_call.1} parent=5 // pred_region
        %s245 = ssub.s32 %s16, 1
        // Predicated region
        $region13: #{tpu_custom_call.1} parent=11 // pred_check
          %p246 = pneg %p140
        $region14: #{tpu_custom_call.1} parent=11 // pred_check_branch
          %248 = sbr.rel (%p246) target = $region16
        $region15: #{tpu_custom_call.1} parent=11 // pred_region
          _
        $region16: #{tpu_custom_call.1} parent=11 // pred_fallthru
          _
        // Predicated region
        $region17: #{tpu_custom_call.1} parent=11 // pred_check
          %p249 = pneg %p161
        $region18: #{tpu_custom_call.1} parent=11 // pred_check_branch
          %251 = sbr.rel (%p249) target = $region20
        $region19: #{tpu_custom_call.1} parent=11 // pred_region
          _
        $region20: #{tpu_custom_call.1} parent=11 // pred_fallthru
          _
        // Predicated region
        $region21: #{tpu_custom_call.1} parent=11 // pred_check
          %p252 = pneg %p182
        $region22: #{tpu_custom_call.1} parent=11 // pred_check_branch
          %254 = sbr.rel (%p252) target = $region24
        $region23: #{tpu_custom_call.1} parent=11 // pred_region
          _
        $region24: #{tpu_custom_call.1} parent=11 // pred_fallthru
          _
        // Predicated region
        $region25: #{tpu_custom_call.1} parent=11 // pred_check
          %p255 = pneg %p203
        $region26: #{tpu_custom_call.1} parent=11 // pred_check_branch
          %257 = sbr.rel (%p255) target = $region28
        $region27: #{tpu_custom_call.1} parent=11 // pred_region
          _
        $region28: #{tpu_custom_call.1} parent=11 // pred_fallthru
          _
      $region12: #{tpu_custom_call.1} parent=5 // pred_fallthru
        _
      %p258 = scmp.lt.s32.totalorder %s16, 2
      // Predicated region
      $region29: #{tpu_custom_call.1} parent=5 // pred_check
        %p259 = pneg %p258
      $region30: #{tpu_custom_call.1} parent=5 // pred_check_branch
        %261 = sbr.rel (%p259) target = $region32
      $region31: #{tpu_custom_call.1} parent=5 // pred_region
        // Predicated region
        $region33: #{tpu_custom_call.1} parent=31 // pred_check
          %p262 = pneg %p57
        $region34: #{tpu_custom_call.1} parent=31 // pred_check_branch
          %264 = sbr.rel (%p262) target = $region36
        $region35: #{tpu_custom_call.1} parent=31 // pred_region
          %p265 = scmp.lt.s32.totalorder %s23, 1
          %s266 = scalar_select %p265, %s23, 1
          %p267 = scmp.lt.s32.totalorder %s24, 0
          %s268 = scalar_select %p267, %s24, 0
          %s269 = sadd.s32 %s268, %s266
          %s270 = smul.addr %s269, 8
          %s271 = scalar_lea.vmem %s0, %s270
        $region36: #{tpu_custom_call.1} parent=31 // pred_fallthru
          _
        // Predicated region
        $region37: #{tpu_custom_call.1} parent=31 // pred_check
          %p272 = pneg %p85
        $region38: #{tpu_custom_call.1} parent=31 // pred_check_branch
          %274 = sbr.rel (%p272) target = $region40
        $region39: #{tpu_custom_call.1} parent=31 // pred_region
          %p275 = scmp.lt.s32.totalorder %s23, 1
          %s276 = scalar_select %p275, %s23, 1
          %p277 = scmp.lt.s32.totalorder %s25, 0
          %s278 = scalar_select %p277, %s25, 0
          %s279 = sadd.s32 %s278, %s276
          %s280 = smul.addr %s279, 8
          %s281 = scalar_lea.vmem %s1, %s280
        $region40: #{tpu_custom_call.1} parent=31 // pred_fallthru
          _
        // Predicated region
        $region41: #{tpu_custom_call.1} parent=31 // pred_check
          %p282 = pneg %p113
        $region42: #{tpu_custom_call.1} parent=31 // pred_check_branch
          %284 = sbr.rel (%p282) target = $region44
        $region43: #{tpu_custom_call.1} parent=31 // pred_region
          %p285 = scmp.lt.s32.totalorder %s23, 1
          %s286 = scalar_select %p285, %s23, 1
          %p287 = scmp.lt.s32.totalorder %s25, 0
          %s288 = scalar_select %p287, %s25, 0
          %s289 = sadd.s32 %s288, %s286
          %s290 = smul.addr %s289, 8
          %s291 = scalar_lea.vmem %s2, %s290
        $region44: #{tpu_custom_call.1} parent=31 // pred_fallthru
          _
      $region32: #{tpu_custom_call.1} parent=5 // pred_fallthru
        _
      %p292 = scmp.le.s32.totalorder 1, %s16
      %p293 = scmp.lt.s32.totalorder %s16, 3
      %p294 = pnand %p292, %p293
      %p295 = pneg %p294
      // Predicated region
      $region45: #{tpu_custom_call.1} parent=5 // pred_check
        _
      $region46: #{tpu_custom_call.1} parent=5 // pred_check_branch
        %297 = sbr.rel (%p294) target = $region48
      $region47: #{tpu_custom_call.1} parent=5 // pred_region
        %s298 = ssub.s32 %s16, 1
        %p299 = scmp.lt.s32.totalorder %s26, 1
        %s300 = scalar_select %p299, %s26, 1
        %p301 = scmp.lt.s32.totalorder %s27, 0
        %s302 = scalar_select %p301, %s27, 0
        %s303 = sadd.s32 %s302, %s300
        %s304 = smul.addr %s303, 8
        %s305 = scalar_lea.vmem %s0, %s304
        %p306 = pneg %p63
        %p307 = pneg %p60
        %p308 = scmp.lt.s32.totalorder %s26, 1
        %s309 = scalar_select %p308, %s26, 1
        %p310 = scmp.lt.s32.totalorder %s28, 0
        %s311 = scalar_select %p310, %s28, 0
        %s312 = sadd.s32 %s311, %s309
        %s313 = smul.addr %s312, 8
        %s314 = scalar_lea.vmem %s1, %s313
        %p315 = pneg %p91
        %p316 = pneg %p88
        %p317 = scmp.lt.s32.totalorder %s26, 1
        %s318 = scalar_select %p317, %s26, 1
        %p319 = scmp.lt.s32.totalorder %s28, 0
        %s320 = scalar_select %p319, %s28, 0
        %s321 = sadd.s32 %s320, %s318
        %s322 = smul.addr %s321, 8
        %s323 = scalar_lea.vmem %s2, %s322
        %p324 = pneg %p119
        %p325 = pneg %p116
        %p326 = pneg %p140
        %p327 = pneg %p137
        %p328 = pneg %p161
        %p329 = pneg %p158
        %p330 = pneg %p182
        %p331 = pneg %p179
        %p332 = pneg %p203
        %p333 = pneg %p200
        %p334 = pneg %p231
        %p335 = pneg %p228
        %s336 = sand.u32 %s218, 1
        %s337 = scalar_lea.sflag [#allocation7], %s336
        %s338 = sand.u32 %s218, 1
        %s339 = smul.addr %s338, 8
        %s340 = scalar_lea.vmem [#allocation6], %s339
        %p341 = scmp.lt.s32.totalorder %s26, 1
        %s342 = scalar_select %p341, %s26, 1
        %p343 = scmp.lt.s32.totalorder %s27, 0
        %s344 = scalar_select %p343, %s27, 0
        %s345 = sadd.s32 %s344, %s342
        %s346 = smul.addr %s345, 8
        %s347 = scalar_lea.vmem %s0, %s346
        %p348 = scmp.lt.s32.totalorder %s26, 1
        %s349 = scalar_select %p348, %s26, 1
        %p350 = scmp.lt.s32.totalorder %s28, 0
        %s351 = scalar_select %p350, %s28, 0
        %s352 = sadd.s32 %s351, %s349
        %s353 = smul.addr %s352, 8
        %s354 = scalar_lea.vmem %s1, %s353
        %p355 = scmp.lt.s32.totalorder %s26, 1
        %s356 = scalar_select %p355, %s26, 1
        %p357 = scmp.lt.s32.totalorder %s28, 0
        %s358 = scalar_select %p357, %s28, 0
        %s359 = sadd.s32 %s358, %s356
        %s360 = smul.addr %s359, 8
        %s361 = scalar_lea.vmem %s2, %s360
        %p362 = scmp.eq.s32.totalorder %s28, 0
        // Predicated region
        $region49: #{tpu_custom_call.1} parent=47 // pred_check
          %p363 = pneg %p362
        $region50: #{tpu_custom_call.1} parent=47 // pred_check_branch
          %365 = sbr.rel (%p363) target = $region52
        $region51: #{tpu_custom_call.1} parent=47 // pred_region
          %v366 = vld [vmem:[%s347] sm:$0xff]
          %v367 = vld [vmem:[%s3] sm:$0xff]
          %v368 = vld [vmem:[%s3 + $0x8] sm:$0xff]
          %vm369 = vcmask 130048
          %v371 = vsel %vm369, %v366, 0
          %373 = vmatprep.subr.mxu0 0.0
          %374 = vmatpush1.msra.mxu0 %v367
          %375 = vmatprep.subr.mxu0 0.0
          %376 = vmatpush1.msra.mxu0 %v368
          %377 = vmatprep.subr.mxu0 0.0
          %378 = vmatpush1.msra.mxu0 0.0
          %379 = vmatprep.subr.mxu0 0.0
          %380 = vmatpush1.msra.mxu0 0.0
          %381 = vmatprep.subr.mxu0 0.0
          %382 = vmatpush1.msra.mxu0 0.0
          %383 = vmatprep.subr.mxu0 0.0
          %384 = vmatpush1.msra.mxu0 0.0
          %385 = vmatprep.subr.mxu0 0.0
          %386 = vmatpush1.msra.mxu0 0.0
          %387 = vmatprep.subr.mxu0 0.0
          %388 = vmatpush1.msra.mxu0 0.0
          %389 = vmatprep.subr.mxu0 0.0
          %390 = vmatpush1.msra.mxu0 0.0
          %391 = vmatprep.subr.mxu0 0.0
          %392 = vmatpush1.msra.mxu0 0.0
          %393 = vmatprep.subr.mxu0 0.0
          %394 = vmatpush1.msra.mxu0 0.0
          %395 = vmatprep.subr.mxu0 0.0
          %396 = vmatpush1.msra.mxu0 0.0
          %397 = vmatprep.subr.mxu0 0.0
          %398 = vmatpush1.msra.mxu0 0.0
          %399 = vmatprep.subr.mxu0 0.0
          %400 = vmatpush1.msra.mxu0 0.0
          %401 = vmatprep.subr.mxu0 0.0
          %402 = vmatpush1.msra.mxu0 0.0
          %403 = vmatprep.subr.mxu0 0.0
          %404 = vmatpush1.msra.mxu0 0.0
          %405 = vmatprep.subr.mxu0 0.0
          %406 = vmatpush1.msra.mxu0 0.0
          %407 = vmatprep.subr.mxu0 0.0
          %408 = vmatpush1.msra.mxu0 0.0
          %409 = vmatprep.subr.mxu0 0.0
          %410 = vmatpush1.msra.mxu0 0.0
          %411 = vmatprep.subr.mxu0 0.0
          %412 = vmatpush1.msra.mxu0 0.0
          %413 = vmatprep.subr.mxu0 0.0
          %414 = vmatpush1.msra.mxu0 0.0
          %415 = vmatprep.subr.mxu0 0.0
          %416 = vmatpush1.msra.mxu0 0.0
          %417 = vmatprep.subr.mxu0 0.0
          %418 = vmatpush1.msra.mxu0 0.0
          %419 = vmatprep.subr.mxu0 0.0
          %420 = vmatpush1.msra.mxu0 0.0
          %421 = vmatprep.subr.mxu0 0.0
          %422 = vmatpush1.msra.mxu0 0.0
          %423 = vmatprep.subr.mxu0 0.0
          %424 = vmatpush1.msra.mxu0 0.0
          %425 = vmatprep.subr.mxu0 0.0
          %426 = vmatpush1.msra.mxu0 0.0
          %427 = vmatprep.subr.mxu0 0.0
          %428 = vmatpush1.msra.mxu0 0.0
          %429 = vmatprep.subr.mxu0 0.0
          %430 = vmatpush1.msra.mxu0 0.0
          %431 = vmatprep.subr.mxu0 0.0
          %432 = vmatpush1.msra.mxu0 0.0
          %433 = vmatprep.subr.mxu0 0.0
          %434 = vmatpush1.msra.mxu0 0.0
          %435 = vmatprep.subr.mxu0 0.0
          %436 = vmatpush1.msra.mxu0 0.0
          %437 = vmatprep.mubr.f32.mxu0 0.0
          %438 = vmatmul.mubr.f32.gmra.mrb[0].mxu0 %v371
          %v439 = vpop.f32.mrb[0].mxu0
          %v440 = vadd.f32 0.0, %v439
          %v441 = vpop.f32.mrb[0].mxu0
          %442 = vdwg.mxu0
          %vm443 = vcmask 64512
          %444 = vst.msk [vmem:[#allocation2] sm:$0xff] %vm443, %v440
          %s445 = scalar_lea.vmem %s3, 16
          %v446 = vld [vmem:[%s445] sm:$0xff]
          %v447 = vld [vmem:[%s445 + $0x8] sm:$0xff]
          %448 = vmatprep.subr.mxu0 0.0
          %449 = vmatpush1.msra.mxu0 %v446
          %450 = vmatprep.subr.mxu0 0.0
          %451 = vmatpush1.msra.mxu0 %v447
          %452 = vmatprep.subr.mxu0 0.0
          %453 = vmatpush1.msra.mxu0 0.0
          %454 = vmatprep.subr.mxu0 0.0
          %455 = vmatpush1.msra.mxu0 0.0
          %456 = vmatprep.subr.mxu0 0.0
          %457 = vmatpush1.msra.mxu0 0.0
          %458 = vmatprep.subr.mxu0 0.0
          %459 = vmatpush1.msra.mxu0 0.0
          %460 = vmatprep.subr.mxu0 0.0
          %461 = vmatpush1.msra.mxu0 0.0
          %462 = vmatprep.subr.mxu0 0.0
          %463 = vmatpush1.msra.mxu0 0.0
          %464 = vmatprep.subr.mxu0 0.0
          %465 = vmatpush1.msra.mxu0 0.0
          %466 = vmatprep.subr.mxu0 0.0
          %467 = vmatpush1.msra.mxu0 0.0
          %468 = vmatprep.subr.mxu0 0.0
          %469 = vmatpush1.msra.mxu0 0.0
          %470 = vmatprep.subr.mxu0 0.0
          %471 = vmatpush1.msra.mxu0 0.0
          %472 = vmatprep.subr.mxu0 0.0
          %473 = vmatpush1.msra.mxu0 0.0
          %474 = vmatprep.subr.mxu0 0.0
          %475 = vmatpush1.msra.mxu0 0.0
          %476 = vmatprep.subr.mxu0 0.0
          %477 = vmatpush1.msra.mxu0 0.0
          %478 = vmatprep.subr.mxu0 0.0
          %479 = vmatpush1.msra.mxu0 0.0
          %480 = vmatprep.subr.mxu0 0.0
          %481 = vmatpush1.msra.mxu0 0.0
          %482 = vmatprep.subr.mxu0 0.0
          %483 = vmatpush1.msra.mxu0 0.0
          %484 = vmatprep.subr.mxu0 0.0
          %485 = vmatpush1.msra.mxu0 0.0
          %486 = vmatprep.subr.mxu0 0.0
          %487 = vmatpush1.msra.mxu0 0.0
          %488 = vmatprep.subr.mxu0 0.0
          %489 = vmatpush1.msra.mxu0 0.0
          %490 = vmatprep.subr.mxu0 0.0
          %491 = vmatpush1.msra.mxu0 0.0
          %492 = vmatprep.subr.mxu0 0.0
          %493 = vmatpush1.msra.mxu0 0.0
          %494 = vmatprep.subr.mxu0 0.0
          %495 = vmatpush1.msra.mxu0 0.0
          %496 = vmatprep.subr.mxu0 0.0
          %497 = vmatpush1.msra.mxu0 0.0
          %498 = vmatprep.subr.mxu0 0.0
          %499 = vmatpush1.msra.mxu0 0.0
          %500 = vmatprep.subr.mxu0 0.0
          %501 = vmatpush1.msra.mxu0 0.0
          %502 = vmatprep.subr.mxu0 0.0
          %503 = vmatpush1.msra.mxu0 0.0
          %504 = vmatprep.subr.mxu0 0.0
          %505 = vmatpush1.msra.mxu0 0.0
          %506 = vmatprep.subr.mxu0 0.0
          %507 = vmatpush1.msra.mxu0 0.0
          %508 = vmatprep.subr.mxu0 0.0
          %509 = vmatpush1.msra.mxu0 0.0
          %510 = vmatprep.subr.mxu0 0.0
          %511 = vmatpush1.msra.mxu0 0.0
          %512 = vmatprep.mubr.f32.mxu0 0.0
          %513 = vmatmul.mubr.f32.gmra.mrb[0].mxu0 %v371
          %v514 = vpop.f32.mrb[0].mxu0
          %v515 = vadd.f32 0.0, %v514
          %v516 = vpop.f32.mrb[0].mxu0
          %517 = vdwg.mxu0
          %s518 = scalar_lea.vmem [#allocation2], 8
          %519 = vst.msk [vmem:[%s518] sm:$0xff] %vm443, %v515
          %s520 = scalar_lea.vmem %s3, 32
          %v521 = vld [vmem:[%s520] sm:$0xff]
          %v522 = vld [vmem:[%s520 + $0x8] sm:$0xff]
          %523 = vmatprep.subr.mxu0 0.0
          %524 = vmatpush1.msra.mxu0 %v521
          %525 = vmatprep.subr.mxu0 0.0
          %526 = vmatpush1.msra.mxu0 %v522
          %527 = vmatprep.subr.mxu0 0.0
          %528 = vmatpush1.msra.mxu0 0.0
          %529 = vmatprep.subr.mxu0 0.0
          %530 = vmatpush1.msra.mxu0 0.0
          %531 = vmatprep.subr.mxu0 0.0
          %532 = vmatpush1.msra.mxu0 0.0
          %533 = vmatprep.subr.mxu0 0.0
          %534 = vmatpush1.msra.mxu0 0.0
          %535 = vmatprep.subr.mxu0 0.0
          %536 = vmatpush1.msra.mxu0 0.0
          %537 = vmatprep.subr.mxu0 0.0
          %538 = vmatpush1.msra.mxu0 0.0
          %539 = vmatprep.subr.mxu0 0.0
          %540 = vmatpush1.msra.mxu0 0.0
          %541 = vmatprep.subr.mxu0 0.0
          %542 = vmatpush1.msra.mxu0 0.0
          %543 = vmatprep.subr.mxu0 0.0
          %544 = vmatpush1.msra.mxu0 0.0
          %545 = vmatprep.subr.mxu0 0.0
          %546 = vmatpush1.msra.mxu0 0.0
          %547 = vmatprep.subr.mxu0 0.0
          %548 = vmatpush1.msra.mxu0 0.0
          %549 = vmatprep.subr.mxu0 0.0
          %550 = vmatpush1.msra.mxu0 0.0
          %551 = vmatprep.subr.mxu0 0.0
          %552 = vmatpush1.msra.mxu0 0.0
          %553 = vmatprep.subr.mxu0 0.0
          %554 = vmatpush1.msra.mxu0 0.0
          %555 = vmatprep.subr.mxu0 0.0
          %556 = vmatpush1.msra.mxu0 0.0
          %557 = vmatprep.subr.mxu0 0.0
          %558 = vmatpush1.msra.mxu0 0.0
          %559 = vmatprep.subr.mxu0 0.0
          %560 = vmatpush1.msra.mxu0 0.0
          %561 = vmatprep.subr.mxu0 0.0
          %562 = vmatpush1.msra.mxu0 0.0
          %563 = vmatprep.subr.mxu0 0.0
          %564 = vmatpush1.msra.mxu0 0.0
          %565 = vmatprep.subr.mxu0 0.0
          %566 = vmatpush1.msra.mxu0 0.0
          %567 = vmatprep.subr.mxu0 0.0
          %568 = vmatpush1.msra.mxu0 0.0
          %569 = vmatprep.subr.mxu0 0.0
          %570 = vmatpush1.msra.mxu0 0.0
          %571 = vmatprep.subr.mxu0 0.0
          %572 = vmatpush1.msra.mxu0 0.0
          %573 = vmatprep.subr.mxu0 0.0
          %574 = vmatpush1.msra.mxu0 0.0
          %575 = vmatprep.subr.mxu0 0.0
          %576 = vmatpush1.msra.mxu0 0.0
          %577 = vmatprep.subr.mxu0 0.0
          %578 = vmatpush1.msra.mxu0 0.0
          %579 = vmatprep.subr.mxu0 0.0
          %580 = vmatpush1.msra.mxu0 0.0
          %581 = vmatprep.subr.mxu0 0.0
          %582 = vmatpush1.msra.mxu0 0.0
          %583 = vmatprep.subr.mxu0 0.0
          %584 = vmatpush1.msra.mxu0 0.0
          %585 = vmatprep.subr.mxu0 0.0
          %586 = vmatpush1.msra.mxu0 0.0
          %587 = vmatprep.mubr.f32.mxu0 0.0
          %588 = vmatmul.mubr.f32.gmra.mrb[0].mxu0 %v371
          %v589 = vpop.f32.mrb[0].mxu0
          %v590 = vadd.f32 0.0, %v589
          %v591 = vpop.f32.mrb[0].mxu0
          %592 = vdwg.mxu0
          %s593 = scalar_lea.vmem [#allocation2], 16
          %594 = vst.msk [vmem:[%s593] sm:$0xff] %vm443, %v590
          %s595 = scalar_lea.vmem %s3, 48
          %v596 = vld [vmem:[%s595] sm:$0xff]
          %v597 = vld [vmem:[%s595 + $0x8] sm:$0xff]
          %598 = vmatprep.subr.mxu0 0.0
          %599 = vmatpush1.msra.mxu0 %v596
          %600 = vmatprep.subr.mxu0 0.0
          %601 = vmatpush1.msra.mxu0 %v597
          %602 = vmatprep.subr.mxu0 0.0
          %603 = vmatpush1.msra.mxu0 0.0
          %604 = vmatprep.subr.mxu0 0.0
          %605 = vmatpush1.msra.mxu0 0.0
          %606 = vmatprep.subr.mxu0 0.0
          %607 = vmatpush1.msra.mxu0 0.0
          %608 = vmatprep.subr.mxu0 0.0
          %609 = vmatpush1.msra.mxu0 0.0
          %610 = vmatprep.subr.mxu0 0.0
          %611 = vmatpush1.msra.mxu0 0.0
          %612 = vmatprep.subr.mxu0 0.0
          %613 = vmatpush1.msra.mxu0 0.0
          %614 = vmatprep.subr.mxu0 0.0
          %615 = vmatpush1.msra.mxu0 0.0
          %616 = vmatprep.subr.mxu0 0.0
          %617 = vmatpush1.msra.mxu0 0.0
          %618 = vmatprep.subr.mxu0 0.0
          %619 = vmatpush1.msra.mxu0 0.0
          %620 = vmatprep.subr.mxu0 0.0
          %621 = vmatpush1.msra.mxu0 0.0
          %622 = vmatprep.subr.mxu0 0.0
          %623 = vmatpush1.msra.mxu0 0.0
          %624 = vmatprep.subr.mxu0 0.0
          %625 = vmatpush1.msra.mxu0 0.0
          %626 = vmatprep.subr.mxu0 0.0
          %627 = vmatpush1.msra.mxu0 0.0
          %628 = vmatprep.subr.mxu0 0.0
          %629 = vmatpush1.msra.mxu0 0.0
          %630 = vmatprep.subr.mxu0 0.0
          %631 = vmatpush1.msra.mxu0 0.0
          %632 = vmatprep.subr.mxu0 0.0
          %633 = vmatpush1.msra.mxu0 0.0
          %634 = vmatprep.subr.mxu0 0.0
          %635 = vmatpush1.msra.mxu0 0.0
          %636 = vmatprep.subr.mxu0 0.0
          %637 = vmatpush1.msra.mxu0 0.0
          %638 = vmatprep.subr.mxu0 0.0
          %639 = vmatpush1.msra.mxu0 0.0
          %640 = vmatprep.subr.mxu0 0.0
          %641 = vmatpush1.msra.mxu0 0.0
          %642 = vmatprep.subr.mxu0 0.0
          %643 = vmatpush1.msra.mxu0 0.0
          %644 = vmatprep.subr.mxu0 0.0
          %645 = vmatpush1.msra.mxu0 0.0
          %646 = vmatprep.subr.mxu0 0.0
          %647 = vmatpush1.msra.mxu0 0.0
          %648 = vmatprep.subr.mxu0 0.0
          %649 = vmatpush1.msra.mxu0 0.0
          %650 = vmatprep.subr.mxu0 0.0
          %651 = vmatpush1.msra.mxu0 0.0
          %652 = vmatprep.subr.mxu0 0.0
          %653 = vmatpush1.msra.mxu0 0.0
          %654 = vmatprep.subr.mxu0 0.0
          %655 = vmatpush1.msra.mxu0 0.0
          %656 = vmatprep.subr.mxu0 0.0
          %657 = vmatpush1.msra.mxu0 0.0
          %658 = vmatprep.subr.mxu0 0.0
          %659 = vmatpush1.msra.mxu0 0.0
          %660 = vmatprep.subr.mxu0 0.0
          %661 = vmatpush1.msra.mxu0 0.0
          %662 = vmatprep.mubr.f32.mxu0 0.0
          %663 = vmatmul.mubr.f32.gmra.mrb[0].mxu0 %v371
          %v664 = vpop.f32.mrb[0].mxu0
          %v665 = vadd.f32 0.0, %v664
          %v666 = vpop.f32.mrb[0].mxu0
          %667 = vdwg.mxu0
          %s668 = scalar_lea.vmem [#allocation2], 24
          %669 = vst.msk [vmem:[%s668] sm:$0xff] %vm443, %v665
          %vm670 = vcmask 7168
          %671 = vst.msk [vmem:[#allocation3] sm:$0xff] %vm670, -inf
          %672 = vst.msk [vmem:[#allocation3 + $0x8] sm:$0xff] %vm670, -inf
          %673 = vst.msk [vmem:[#allocation3 + $0x10] sm:$0xff] %vm670, -inf
          %674 = vst.msk [vmem:[#allocation3 + $0x18] sm:$0xff] %vm670, -inf
          %675 = vst.msk [vmem:[#allocation4] sm:$0xff] %vm670, 0.0
          %676 = vst.msk [vmem:[#allocation4 + $0x8] sm:$0xff] %vm670, 0.0
          %677 = vst.msk [vmem:[#allocation4 + $0x10] sm:$0xff] %vm670, 0.0
          %678 = vst.msk [vmem:[#allocation4 + $0x18] sm:$0xff] %vm670, 0.0
          %679 = vst.msk [vmem:[#allocation5] sm:$0xff] %vm443, 0.0
          %680 = vst.msk [vmem:[#allocation5 + $0x8] sm:$0xff] %vm443, 0.0
          %681 = vst.msk [vmem:[#allocation5 + $0x10] sm:$0xff] %vm443, 0.0
          %682 = vst.msk [vmem:[#allocation5 + $0x18] sm:$0xff] %vm443, 0.0
        $region52: #{tpu_custom_call.1} parent=47 // pred_fallthru
          _
        %v683 = vld [vmem:[%s354] sm:$0xff]
        %v684 = vld [vmem:[%s361] sm:$0xff]
        %v685 = vld [vmem:[%s4] sm:$0xff]
        %v686 = vld [vmem:[%s4 + $0x8] sm:$0xff]
        %vm687 = vcmask 130048
        %v689 = vsel %vm687, %v683, 0
        %691 = vmatprep.subr.mxu0 0.0
        %692 = vmatpush1.msra.mxu0 %v685
        %693 = vmatprep.subr.mxu0 0.0
        %694 = vmatpush1.msra.mxu0 %v686
        %695 = vmatprep.subr.mxu0 0.0
        %696 = vmatpush1.msra.mxu0 0.0
        %697 = vmatprep.subr.mxu0 0.0
        %698 = vmatpush1.msra.mxu0 0.0
        %699 = vmatprep.subr.mxu0 0.0
        %700 = vmatpush1.msra.mxu0 0.0
        %701 = vmatprep.subr.mxu0 0.0
        %702 = vmatpush1.msra.mxu0 0.0
        %703 = vmatprep.subr.mxu0 0.0
        %704 = vmatpush1.msra.mxu0 0.0
        %705 = vmatprep.subr.mxu0 0.0
        %706 = vmatpush1.msra.mxu0 0.0
        %707 = vmatprep.subr.mxu0 0.0
        %708 = vmatpush1.msra.mxu0 0.0
        %709 = vmatprep.subr.mxu0 0.0
        %710 = vmatpush1.msra.mxu0 0.0
        %711 = vmatprep.subr.mxu0 0.0
        %712 = vmatpush1.msra.mxu0 0.0
        %713 = vmatprep.subr.mxu0 0.0
        %714 = vmatpush1.msra.mxu0 0.0
        %715 = vmatprep.subr.mxu0 0.0
        %716 = vmatpush1.msra.mxu0 0.0
        %717 = vmatprep.subr.mxu0 0.0
        %718 = vmatpush1.msra.mxu0 0.0
        %719 = vmatprep.subr.mxu0 0.0
        %720 = vmatpush1.msra.mxu0 0.0
        %721 = vmatprep.subr.mxu0 0.0
        %722 = vmatpush1.msra.mxu0 0.0
        %723 = vmatprep.subr.mxu0 0.0
        %724 = vmatpush1.msra.mxu0 0.0
        %725 = vmatprep.subr.mxu0 0.0
        %726 = vmatpush1.msra.mxu0 0.0
        %727 = vmatprep.subr.mxu0 0.0
        %728 = vmatpush1.msra.mxu0 0.0
        %729 = vmatprep.subr.mxu0 0.0
        %730 = vmatpush1.msra.mxu0 0.0
        %731 = vmatprep.subr.mxu0 0.0
        %732 = vmatpush1.msra.mxu0 0.0
        %733 = vmatprep.subr.mxu0 0.0
        %734 = vmatpush1.msra.mxu0 0.0
        %735 = vmatprep.subr.mxu0 0.0
        %736 = vmatpush1.msra.mxu0 0.0
        %737 = vmatprep.subr.mxu0 0.0
        %738 = vmatpush1.msra.mxu0 0.0
        %739 = vmatprep.subr.mxu0 0.0
        %740 = vmatpush1.msra.mxu0 0.0
        %741 = vmatprep.subr.mxu0 0.0
        %742 = vmatpush1.msra.mxu0 0.0
        %743 = vmatprep.subr.mxu0 0.0
        %744 = vmatpush1.msra.mxu0 0.0
        %745 = vmatprep.subr.mxu0 0.0
        %746 = vmatpush1.msra.mxu0 0.0
        %747 = vmatprep.subr.mxu0 0.0
        %748 = vmatpush1.msra.mxu0 0.0
        %749 = vmatprep.subr.mxu0 0.0
        %750 = vmatpush1.msra.mxu0 0.0
        %751 = vmatprep.subr.mxu0 0.0
        %752 = vmatpush1.msra.mxu0 0.0
        %753 = vmatprep.subr.mxu0 0.0
        %754 = vmatpush1.msra.mxu0 0.0
        %755 = vmatprep.mubr.f32.mxu0 0.0
        %756 = vmatmul.mubr.f32.gmra.mrb[0].mxu0 %v689
        %v757 = vpop.f32.mrb[0].mxu0
        %v758 = vadd.f32 0.0, %v757
        %v759 = vpop.f32.mrb[0].mxu0
        %760 = vdwg.mxu0
        %v761 = vld [vmem:[%s5] sm:$0xff]
        %v762 = vld [vmem:[%s5 + $0x8] sm:$0xff]
        %v763 = vld [vmem:[%s5 + $0x10] sm:$0xff]
        %vm764 = vcmask 195584
        %v766 = vsel %vm764, %v684, 0
        %768 = vmatprep.subr.mxu0 0.0
        %769 = vmatpush1.msra.mxu0 %v761
        %770 = vmatprep.subr.mxu0 0.0
        %771 = vmatpush1.msra.mxu0 %v762
        %772 = vmatprep.subr.mxu0 0.0
        %773 = vmatpush1.msra.mxu0 %v763
        %774 = vmatprep.subr.mxu0 0.0
        %775 = vmatpush1.msra.mxu0 0.0
        %776 = vmatprep.subr.mxu0 0.0
        %777 = vmatpush1.msra.mxu0 0.0
        %778 = vmatprep.subr.mxu0 0.0
        %779 = vmatpush1.msra.mxu0 0.0
        %780 = vmatprep.subr.mxu0 0.0
        %781 = vmatpush1.msra.mxu0 0.0
        %782 = vmatprep.subr.mxu0 0.0
        %783 = vmatpush1.msra.mxu0 0.0
        %784 = vmatprep.subr.mxu0 0.0
        %785 = vmatpush1.msra.mxu0 0.0
        %786 = vmatprep.subr.mxu0 0.0
        %787 = vmatpush1.msra.mxu0 0.0
        %788 = vmatprep.subr.mxu0 0.0
        %789 = vmatpush1.msra.mxu0 0.0
        %790 = vmatprep.subr.mxu0 0.0
        %791 = vmatpush1.msra.mxu0 0.0
        %792 = vmatprep.subr.mxu0 0.0
        %793 = vmatpush1.msra.mxu0 0.0
        %794 = vmatprep.subr.mxu0 0.0
        %795 = vmatpush1.msra.mxu0 0.0
        %796 = vmatprep.subr.mxu0 0.0
        %797 = vmatpush1.msra.mxu0 0.0
        %798 = vmatprep.subr.mxu0 0.0
        %799 = vmatpush1.msra.mxu0 0.0
        %800 = vmatprep.subr.mxu0 0.0
        %801 = vmatpush1.msra.mxu0 0.0
        %802 = vmatprep.subr.mxu0 0.0
        %803 = vmatpush1.msra.mxu0 0.0
        %804 = vmatprep.subr.mxu0 0.0
        %805 = vmatpush1.msra.mxu0 0.0
        %806 = vmatprep.subr.mxu0 0.0
        %807 = vmatpush1.msra.mxu0 0.0
        %808 = vmatprep.subr.mxu0 0.0
        %809 = vmatpush1.msra.mxu0 0.0
        %810 = vmatprep.subr.mxu0 0.0
        %811 = vmatpush1.msra.mxu0 0.0
        %812 = vmatprep.subr.mxu0 0.0
        %813 = vmatpush1.msra.mxu0 0.0
        %814 = vmatprep.subr.mxu0 0.0
        %815 = vmatpush1.msra.mxu0 0.0
        %816 = vmatprep.subr.mxu0 0.0
        %817 = vmatpush1.msra.mxu0 0.0
        %818 = vmatprep.subr.mxu0 0.0
        %819 = vmatpush1.msra.mxu0 0.0
        %820 = vmatprep.subr.mxu0 0.0
        %821 = vmatpush1.msra.mxu0 0.0
        %822 = vmatprep.subr.mxu0 0.0
        %823 = vmatpush1.msra.mxu0 0.0
        %824 = vmatprep.subr.mxu0 0.0
        %825 = vmatpush1.msra.mxu0 0.0
        %826 = vmatprep.subr.mxu0 0.0
        %827 = vmatpush1.msra.mxu0 0.0
        %828 = vmatprep.subr.mxu0 0.0
        %829 = vmatpush1.msra.mxu0 0.0
        %830 = vmatprep.subr.mxu0 0.0
        %831 = vmatpush1.msra.mxu0 0.0
        %832 = vmatprep.mubr.f32.mxu0 0.0
        %833 = vmatmul.mubr.f32.gmra.mrb[0].mxu0 %v766
        %v834 = vpop.f32.mrb[0].mxu0
        %v835 = vadd.f32 0.0, %v834
        %v836 = vpop.f32.mrb[0].mxu0
        %837 = vdwg.mxu0
        %v838 = vld [vmem:[#allocation2] sm:$0xff]
        %vm839 = vcmask 64512
        %v841 = vsel %vm839, %v838, 0
        %v844 = vsel %vm839, %v758, 0
        %846 = vmatprep.subr.mxu0 0.0
        %847 = vmatpush1.xpose.msra.mxu0 %v844
        %848 = vmatprep.subr.mxu0 0.0
        %849 = vmatpush1.xpose.msra.mxu0 0.0
        %850 = vmatprep.subr.mxu0 0.0
        %851 = vmatpush1.xpose.msra.mxu0 0.0
        %852 = vmatprep.subr.mxu0 0.0
        %853 = vmatpush1.xpose.msra.mxu0 0.0
        %854 = vmatprep.subr.mxu0 0.0
        %855 = vmatpush1.xpose.msra.mxu0 0.0
        %856 = vmatprep.subr.mxu0 0.0
        %857 = vmatpush1.xpose.msra.mxu0 0.0
        %858 = vmatprep.subr.mxu0 0.0
        %859 = vmatpush1.xpose.msra.mxu0 0.0
        %860 = vmatprep.subr.mxu0 0.0
        %861 = vmatpush1.xpose.msra.mxu0 0.0
        %862 = vmatprep.subr.mxu0 0.0
        %863 = vmatpush1.xpose.msra.mxu0 0.0
        %864 = vmatprep.subr.mxu0 0.0
        %865 = vmatpush1.xpose.msra.mxu0 0.0
        %866 = vmatprep.subr.mxu0 0.0
        %867 = vmatpush1.xpose.msra.mxu0 0.0
        %868 = vmatprep.subr.mxu0 0.0
        %869 = vmatpush1.xpose.msra.mxu0 0.0
        %870 = vmatprep.subr.mxu0 0.0
        %871 = vmatpush1.xpose.msra.mxu0 0.0
        %872 = vmatprep.subr.mxu0 0.0
        %873 = vmatpush1.xpose.msra.mxu0 0.0
        %874 = vmatprep.subr.mxu0 0.0
        %875 = vmatpush1.xpose.msra.mxu0 0.0
        %876 = vmatprep.subr.mxu0 0.0
        %877 = vmatpush1.xpose.msra.mxu0 0.0
        %878 = vmatprep.subr.mxu0 0.0
        %879 = vmatpush1.xpose.msra.mxu0 0.0
        %880 = vmatprep.subr.mxu0 0.0
        %881 = vmatpush1.xpose.msra.mxu0 0.0
        %882 = vmatprep.subr.mxu0 0.0
        %883 = vmatpush1.xpose.msra.mxu0 0.0
        %884 = vmatprep.subr.mxu0 0.0
        %885 = vmatpush1.xpose.msra.mxu0 0.0
        %886 = vmatprep.subr.mxu0 0.0
        %887 = vmatpush1.xpose.msra.mxu0 0.0
        %888 = vmatprep.subr.mxu0 0.0
        %889 = vmatpush1.xpose.msra.mxu0 0.0
        %890 = vmatprep.subr.mxu0 0.0
        %891 = vmatpush1.xpose.msra.mxu0 0.0
        %892 = vmatprep.subr.mxu0 0.0
        %893 = vmatpush1.xpose.msra.mxu0 0.0
        %894 = vmatprep.subr.mxu0 0.0
        %895 = vmatpush1.xpose.msra.mxu0 0.0
        %896 = vmatprep.subr.mxu0 0.0
        %897 = vmatpush1.xpose.msra.mxu0 0.0
        %898 = vmatprep.subr.mxu0 0.0
        %899 = vmatpush1.xpose.msra.mxu0 0.0
        %900 = vmatprep.subr.mxu0 0.0
        %901 = vmatpush1.xpose.msra.mxu0 0.0
        %902 = vmatprep.subr.mxu0 0.0
        %903 = vmatpush1.xpose.msra.mxu0 0.0
        %904 = vmatprep.subr.mxu0 0.0
        %905 = vmatpush1.xpose.msra.mxu0 0.0
        %906 = vmatprep.subr.mxu0 0.0
        %907 = vmatpush1.xpose.msra.mxu0 0.0
        %908 = vmatprep.subr.mxu0 0.0
        %909 = vmatpush1.xpose.msra.mxu0 0.0
        %910 = vmatprep.mubr.f32.mxu0 0.0
        %911 = vmatmul.mubr.f32.gmra.mrb[0].mxu0 %v841
        %v912 = vpop.f32.mrb[0].mxu0
        %v913 = vadd.f32 0.0, %v912
        %v914 = vpop.f32.mrb[0].mxu0
        %915 = vdwg.mxu0
        %v916 = vld [vmem:[#allocation3] sm:$0xff]
        %v917 = vsel %vm839, %v913, -inf
        %918 = vmax.xlane.f32.xlu0 %v917
        %v919 = vpop.xlane.xlu0 %918
        %v920 = vmax.f32 %v916, %v919
        %v921 = vsub.f32 %v916, %v920
        %v922 = vmul.f32 %v921, 1.442695
        %v923 = vpow.pop %v922
        %925 = vset.pattern.permute.xlu0 0
        %926 = vperm.xlu0 %925, %v920
        %v927 = vpop.permute.xlu0 %926
        %v929 = vsub.f32 %v913, %v927
        %v930 = vmul.f32 %v929, 1.442695
        %v931 = vpow.pop %v930
        %v932 = vld [vmem:[#allocation4] sm:$0xff]
        %v933 = vmul.f32 %v923, %v932
        %v934 = vsel %vm839, %v931, 0.0
        %935 = vadd.xlane.f32.xlu0 %v934
        %v936 = vpop.xlane.xlu0 %935
        %v937 = vadd.f32 %v933, %v936
        %vm938 = vcmask 7168
        %939 = vst.msk [vmem:[#allocation4] sm:$0xff] %vm938, %v937
        %v940 = vld [vmem:[#allocation5] sm:$0xff]
        %942 = vset.pattern.permute.xlu0 0
        %943 = vperm.xlu0 %942, %v923
        %v944 = vpop.permute.xlu0 %943
        %v946 = vmul.f32 %v944, %v940
        %v948 = vsel %vm839, %v931, 0
        %950 = vmatprep.subr.mxu0 0.0
        %951 = vmatpush1.msra.mxu0 %v835
        %952 = vmatprep.subr.mxu0 0.0
        %953 = vmatpush1.msra.mxu0 0.0
        %954 = vmatprep.subr.mxu0 0.0
        %955 = vmatpush1.msra.mxu0 0.0
        %956 = vmatprep.subr.mxu0 0.0
        %957 = vmatpush1.msra.mxu0 0.0
        %958 = vmatprep.subr.mxu0 0.0
        %959 = vmatpush1.msra.mxu0 0.0
        %960 = vmatprep.subr.mxu0 0.0
        %961 = vmatpush1.msra.mxu0 0.0
        %962 = vmatprep.subr.mxu0 0.0
        %963 = vmatpush1.msra.mxu0 0.0
        %964 = vmatprep.subr.mxu0 0.0
        %965 = vmatpush1.msra.mxu0 0.0
        %966 = vmatprep.subr.mxu0 0.0
        %967 = vmatpush1.msra.mxu0 0.0
        %968 = vmatprep.subr.mxu0 0.0
        %969 = vmatpush1.msra.mxu0 0.0
        %970 = vmatprep.subr.mxu0 0.0
        %971 = vmatpush1.msra.mxu0 0.0
        %972 = vmatprep.subr.mxu0 0.0
        %973 = vmatpush1.msra.mxu0 0.0
        %974 = vmatprep.subr.mxu0 0.0
        %975 = vmatpush1.msra.mxu0 0.0
        %976 = vmatprep.subr.mxu0 0.0
        %977 = vmatpush1.msra.mxu0 0.0
        %978 = vmatprep.subr.mxu0 0.0
        %979 = vmatpush1.msra.mxu0 0.0
        %980 = vmatprep.subr.mxu0 0.0
        %981 = vmatpush1.msra.mxu0 0.0
        %982 = vmatprep.subr.mxu0 0.0
        %983 = vmatpush1.msra.mxu0 0.0
        %984 = vmatprep.subr.mxu0 0.0
        %985 = vmatpush1.msra.mxu0 0.0
        %986 = vmatprep.subr.mxu0 0.0
        %987 = vmatpush1.msra.mxu0 0.0
        %988 = vmatprep.subr.mxu0 0.0
        %989 = vmatpush1.msra.mxu0 0.0
        %990 = vmatprep.subr.mxu0 0.0
        %991 = vmatpush1.msra.mxu0 0.0
        %992 = vmatprep.subr.mxu0 0.0
        %993 = vmatpush1.msra.mxu0 0.0
        %994 = vmatprep.subr.mxu0 0.0
        %995 = vmatpush1.msra.mxu0 0.0
        %996 = vmatprep.subr.mxu0 0.0
        %997 = vmatpush1.msra.mxu0 0.0
        %998 = vmatprep.subr.mxu0 0.0
        %999 = vmatpush1.msra.mxu0 0.0
        %1000 = vmatprep.subr.mxu0 0.0
        %1001 = vmatpush1.msra.mxu0 0.0
        %1002 = vmatprep.subr.mxu0 0.0
        %1003 = vmatpush1.msra.mxu0 0.0
        %1004 = vmatprep.subr.mxu0 0.0
        %1005 = vmatpush1.msra.mxu0 0.0
        %1006 = vmatprep.subr.mxu0 0.0
        %1007 = vmatpush1.msra.mxu0 0.0
        %1008 = vmatprep.subr.mxu0 0.0
        %1009 = vmatpush1.msra.mxu0 0.0
        %1010 = vmatprep.subr.mxu0 0.0
        %1011 = vmatpush1.msra.mxu0 0.0
        %1012 = vmatprep.subr.mxu0 0.0
        %1013 = vmatpush1.msra.mxu0 0.0
        %1014 = vmatprep.mubr.f32.mxu0 0.0
        %1015 = vmatmul.mubr.f32.gmra.mrb[0].mxu0 %v948
        %v1016 = vpop.f32.mrb[0].mxu0
        %v1017 = vadd.f32 0.0, %v1016
        %v1018 = vpop.f32.mrb[0].mxu0
        %1019 = vdwg.mxu0
        %v1020 = vadd.f32 %v946, %v1017
        %1021 = vst.msk [vmem:[#allocation5] sm:$0xff] %vm839, %v1020
        %1022 = vst.msk [vmem:[#allocation3] sm:$0xff] %vm938, %v920
        %s1023 = scalar_lea.vmem %s4, 16
        %v1024 = vld [vmem:[%s1023] sm:$0xff]
        %v1025 = vld [vmem:[%s1023 + $0x8] sm:$0xff]
        %1026 = vmatprep.subr.mxu0 0.0
        %1027 = vmatpush1.msra.mxu0 %v1024
        %1028 = vmatprep.subr.mxu0 0.0
        %1029 = vmatpush1.msra.mxu0 %v1025
        %1030 = vmatprep.subr.mxu0 0.0
        %1031 = vmatpush1.msra.mxu0 0.0
        %1032 = vmatprep.subr.mxu0 0.0
        %1033 = vmatpush1.msra.mxu0 0.0
        %1034 = vmatprep.subr.mxu0 0.0
        %1035 = vmatpush1.msra.mxu0 0.0
        %1036 = vmatprep.subr.mxu0 0.0
        %1037 = vmatpush1.msra.mxu0 0.0
        %1038 = vmatprep.subr.mxu0 0.0
        %1039 = vmatpush1.msra.mxu0 0.0
        %1040 = vmatprep.subr.mxu0 0.0
        %1041 = vmatpush1.msra.mxu0 0.0
        %1042 = vmatprep.subr.mxu0 0.0
        %1043 = vmatpush1.msra.mxu0 0.0
        %1044 = vmatprep.subr.mxu0 0.0
        %1045 = vmatpush1.msra.mxu0 0.0
        %1046 = vmatprep.subr.mxu0 0.0
        %1047 = vmatpush1.msra.mxu0 0.0
        %1048 = vmatprep.subr.mxu0 0.0
        %1049 = vmatpush1.msra.mxu0 0.0
        %1050 = vmatprep.subr.mxu0 0.0
        %1051 = vmatpush1.msra.mxu0 0.0
        %1052 = vmatprep.subr.mxu0 0.0
        %1053 = vmatpush1.msra.mxu0 0.0
        %1054 = vmatprep.subr.mxu0 0.0
        %1055 = vmatpush1.msra.mxu0 0.0
        %1056 = vmatprep.subr.mxu0 0.0
        %1057 = vmatpush1.msra.mxu0 0.0
        %1058 = vmatprep.subr.mxu0 0.0
        %1059 = vmatpush1.msra.mxu0 0.0
        %1060 = vmatprep.subr.mxu0 0.0
        %1061 = vmatpush1.msra.mxu0 0.0
        %1062 = vmatprep.subr.mxu0 0.0
        %1063 = vmatpush1.msra.mxu0 0.0
        %1064 = vmatprep.subr.mxu0 0.0
        %1065 = vmatpush1.msra.mxu0 0.0
        %1066 = vmatprep.subr.mxu0 0.0
        %1067 = vmatpush1.msra.mxu0 0.0
        %1068 = vmatprep.subr.mxu0 0.0
        %1069 = vmatpush1.msra.mxu0 0.0
        %1070 = vmatprep.subr.mxu0 0.0
        %1071 = vmatpush1.msra.mxu0 0.0
        %1072 = vmatprep.subr.mxu0 0.0
        %1073 = vmatpush1.msra.mxu0 0.0
        %1074 = vmatprep.subr.mxu0 0.0
        %1075 = vmatpush1.msra.mxu0 0.0
        %1076 = vmatprep.subr.mxu0 0.0
        %1077 = vmatpush1.msra.mxu0 0.0
        %1078 = vmatprep.subr.mxu0 0.0
        %1079 = vmatpush1.msra.mxu0 0.0
        %1080 = vmatprep.subr.mxu0 0.0
        %1081 = vmatpush1.msra.mxu0 0.0
        %1082 = vmatprep.subr.mxu0 0.0
        %1083 = vmatpush1.msra.mxu0 0.0
        %1084 = vmatprep.subr.mxu0 0.0
        %1085 = vmatpush1.msra.mxu0 0.0
        %1086 = vmatprep.subr.mxu0 0.0
        %1087 = vmatpush1.msra.mxu0 0.0
        %1088 = vmatprep.subr.mxu0 0.0
        %1089 = vmatpush1.msra.mxu0 0.0
        %1090 = vmatprep.mubr.f32.mxu0 0.0
        %1091 = vmatmul.mubr.f32.gmra.mrb[0].mxu0 %v689
        %v1092 = vpop.f32.mrb[0].mxu0
        %v1093 = vadd.f32 0.0, %v1092
        %v1094 = vpop.f32.mrb[0].mxu0
        %1095 = vdwg.mxu0
        %s1096 = scalar_lea.vmem %s5, 24
        %v1097 = vld [vmem:[%s1096] sm:$0xff]
        %v1098 = vld [vmem:[%s1096 + $0x8] sm:$0xff]
        %v1099 = vld [vmem:[%s1096 + $0x10] sm:$0xff]
        %1100 = vmatprep.subr.mxu0 0.0
        %1101 = vmatpush1.msra.mxu0 %v1097
        %1102 = vmatprep.subr.mxu0 0.0
        %1103 = vmatpush1.msra.mxu0 %v1098
        %1104 = vmatprep.subr.mxu0 0.0
        %1105 = vmatpush1.msra.mxu0 %v1099
        %1106 = vmatprep.subr.mxu0 0.0
        %1107 = vmatpush1.msra.mxu0 0.0
        %1108 = vmatprep.subr.mxu0 0.0
        %1109 = vmatpush1.msra.mxu0 0.0
        %1110 = vmatprep.subr.mxu0 0.0
        %1111 = vmatpush1.msra.mxu0 0.0
        %1112 = vmatprep.subr.mxu0 0.0
        %1113 = vmatpush1.msra.mxu0 0.0
        %1114 = vmatprep.subr.mxu0 0.0
        %1115 = vmatpush1.msra.mxu0 0.0
        %1116 = vmatprep.subr.mxu0 0.0
        %1117 = vmatpush1.msra.mxu0 0.0
        %1118 = vmatprep.subr.mxu0 0.0
        %1119 = vmatpush1.msra.mxu0 0.0
        %1120 = vmatprep.subr.mxu0 0.0
        %1121 = vmatpush1.msra.mxu0 0.0
        %1122 = vmatprep.subr.mxu0 0.0
        %1123 = vmatpush1.msra.mxu0 0.0
        %1124 = vmatprep.subr.mxu0 0.0
        %1125 = vmatpush1.msra.mxu0 0.0
        %1126 = vmatprep.subr.mxu0 0.0
        %1127 = vmatpush1.msra.mxu0 0.0
        %1128 = vmatprep.subr.mxu0 0.0
        %1129 = vmatpush1.msra.mxu0 0.0
        %1130 = vmatprep.subr.mxu0 0.0
        %1131 = vmatpush1.msra.mxu0 0.0
        %1132 = vmatprep.subr.mxu0 0.0
        %1133 = vmatpush1.msra.mxu0 0.0
        %1134 = vmatprep.subr.mxu0 0.0
        %1135 = vmatpush1.msra.mxu0 0.0
        %1136 = vmatprep.subr.mxu0 0.0
        %1137 = vmatpush1.msra.mxu0 0.0
        %1138 = vmatprep.subr.mxu0 0.0
        %1139 = vmatpush1.msra.mxu0 0.0
        %1140 = vmatprep.subr.mxu0 0.0
        %1141 = vmatpush1.msra.mxu0 0.0
        %1142 = vmatprep.subr.mxu0 0.0
        %1143 = vmatpush1.msra.mxu0 0.0
        %1144 = vmatprep.subr.mxu0 0.0
        %1145 = vmatpush1.msra.mxu0 0.0
        %1146 = vmatprep.subr.mxu0 0.0
        %1147 = vmatpush1.msra.mxu0 0.0
        %1148 = vmatprep.subr.mxu0 0.0
        %1149 = vmatpush1.msra.mxu0 0.0
        %1150 = vmatprep.subr.mxu0 0.0
        %1151 = vmatpush1.msra.mxu0 0.0
        %1152 = vmatprep.subr.mxu0 0.0
        %1153 = vmatpush1.msra.mxu0 0.0
        %1154 = vmatprep.subr.mxu0 0.0
        %1155 = vmatpush1.msra.mxu0 0.0
        %1156 = vmatprep.subr.mxu0 0.0
        %1157 = vmatpush1.msra.mxu0 0.0
        %1158 = vmatprep.subr.mxu0 0.0
        %1159 = vmatpush1.msra.mxu0 0.0
        %1160 = vmatprep.subr.mxu0 0.0
        %1161 = vmatpush1.msra.mxu0 0.0
        %1162 = vmatprep.subr.mxu0 0.0
        %1163 = vmatpush1.msra.mxu0 0.0
        %1164 = vmatprep.mubr.f32.mxu0 0.0
        %1165 = vmatmul.mubr.f32.gmra.mrb[0].mxu0 %v766
        %v1166 = vpop.f32.mrb[0].mxu0
        %v1167 = vadd.f32 0.0, %v1166
        %v1168 = vpop.f32.mrb[0].mxu0
        %1169 = vdwg.mxu0
        %s1170 = scalar_lea.vmem [#allocation2], 8
        %v1171 = vld [vmem:[%s1170] sm:$0xff]
        %v1173 = vsel %vm839, %v1171, 0
        %v1176 = vsel %vm839, %v1093, 0
        %1178 = vmatprep.subr.mxu0 0.0
        %1179 = vmatpush1.xpose.msra.mxu0 %v1176
        %1180 = vmatprep.subr.mxu0 0.0
        %1181 = vmatpush1.xpose.msra.mxu0 0.0
        %1182 = vmatprep.subr.mxu0 0.0
        %1183 = vmatpush1.xpose.msra.mxu0 0.0
        %1184 = vmatprep.subr.mxu0 0.0
        %1185 = vmatpush1.xpose.msra.mxu0 0.0
        %1186 = vmatprep.subr.mxu0 0.0
        %1187 = vmatpush1.xpose.msra.mxu0 0.0
        %1188 = vmatprep.subr.mxu0 0.0
        %1189 = vmatpush1.xpose.msra.mxu0 0.0
        %1190 = vmatprep.subr.mxu0 0.0
        %1191 = vmatpush1.xpose.msra.mxu0 0.0
        %1192 = vmatprep.subr.mxu0 0.0
        %1193 = vmatpush1.xpose.msra.mxu0 0.0
        %1194 = vmatprep.subr.mxu0 0.0
        %1195 = vmatpush1.xpose.msra.mxu0 0.0
        %1196 = vmatprep.subr.mxu0 0.0
        %1197 = vmatpush1.xpose.msra.mxu0 0.0
        %1198 = vmatprep.subr.mxu0 0.0
        %1199 = vmatpush1.xpose.msra.mxu0 0.0
        %1200 = vmatprep.subr.mxu0 0.0
        %1201 = vmatpush1.xpose.msra.mxu0 0.0
        %1202 = vmatprep.subr.mxu0 0.0
        %1203 = vmatpush1.xpose.msra.mxu0 0.0
        %1204 = vmatprep.subr.mxu0 0.0
        %1205 = vmatpush1.xpose.msra.mxu0 0.0
        %1206 = vmatprep.subr.mxu0 0.0
        %1207 = vmatpush1.xpose.msra.mxu0 0.0
        %1208 = vmatprep.subr.mxu0 0.0
        %1209 = vmatpush1.xpose.msra.mxu0 0.0
        %1210 = vmatprep.subr.mxu0 0.0
        %1211 = vmatpush1.xpose.msra.mxu0 0.0
        %1212 = vmatprep.subr.mxu0 0.0
        %1213 = vmatpush1.xpose.msra.mxu0 0.0
        %1214 = vmatprep.subr.mxu0 0.0
        %1215 = vmatpush1.xpose.msra.mxu0 0.0
        %1216 = vmatprep.subr.mxu0 0.0
        %1217 = vmatpush1.xpose.msra.mxu0 0.0
        %1218 = vmatprep.subr.mxu0 0.0
        %1219 = vmatpush1.xpose.msra.mxu0 0.0
        %1220 = vmatprep.subr.mxu0 0.0
        %1221 = vmatpush1.xpose.msra.mxu0 0.0
        %1222 = vmatprep.subr.mxu0 0.0
        %1223 = vmatpush1.xpose.msra.mxu0 0.0
        %1224 = vmatprep.subr.mxu0 0.0
        %1225 = vmatpush1.xpose.msra.mxu0 0.0
        %1226 = vmatprep.subr.mxu0 0.0
        %1227 = vmatpush1.xpose.msra.mxu0 0.0
        %1228 = vmatprep.subr.mxu0 0.0
        %1229 = vmatpush1.xpose.msra.mxu0 0.0
        %1230 = vmatprep.subr.mxu0 0.0
        %1231 = vmatpush1.xpose.msra.mxu0 0.0
        %1232 = vmatprep.subr.mxu0 0.0
        %1233 = vmatpush1.xpose.msra.mxu0 0.0
        %1234 = vmatprep.subr.mxu0 0.0
        %1235 = vmatpush1.xpose.msra.mxu0 0.0
        %1236 = vmatprep.subr.mxu0 0.0
        %1237 = vmatpush1.xpose.msra.mxu0 0.0
        %1238 = vmatprep.subr.mxu0 0.0
        %1239 = vmatpush1.xpose.msra.mxu0 0.0
        %1240 = vmatprep.subr.mxu0 0.0
        %1241 = vmatpush1.xpose.msra.mxu0 0.0
        %1242 = vmatprep.mubr.f32.mxu0 0.0
        %1243 = vmatmul.mubr.f32.gmra.mrb[0].mxu0 %v1173
        %v1244 = vpop.f32.mrb[0].mxu0
        %v1245 = vadd.f32 0.0, %v1244
        %v1246 = vpop.f32.mrb[0].mxu0
        %1247 = vdwg.mxu0
        %s1248 = scalar_lea.vmem [#allocation3], 8
        %v1249 = vld [vmem:[%s1248] sm:$0xff]
        %v1250 = vsel %vm839, %v1245, -inf
        %1251 = vmax.xlane.f32.xlu0 %v1250
        %v1252 = vpop.xlane.xlu0 %1251
        %v1253 = vmax.f32 %v1249, %v1252
        %v1254 = vsub.f32 %v1249, %v1253
        %v1255 = vmul.f32 %v1254, 1.442695
        %v1256 = vpow.pop %v1255
        %1258 = vset.pattern.permute.xlu0 0
        %1259 = vperm.xlu0 %1258, %v1253
        %v1260 = vpop.permute.xlu0 %1259
        %v1262 = vsub.f32 %v1245, %v1260
        %v1263 = vmul.f32 %v1262, 1.442695
        %v1264 = vpow.pop %v1263
        %s1265 = scalar_lea.vmem [#allocation4], 8
        %v1266 = vld [vmem:[%s1265] sm:$0xff]
        %v1267 = vmul.f32 %v1256, %v1266
        %v1268 = vsel %vm839, %v1264, 0.0
        %1269 = vadd.xlane.f32.xlu0 %v1268
        %v1270 = vpop.xlane.xlu0 %1269
        %v1271 = vadd.f32 %v1267, %v1270
        %1272 = vst.msk [vmem:[%s1265] sm:$0xff] %vm938, %v1271
        %s1273 = scalar_lea.vmem [#allocation5], 8
        %v1274 = vld [vmem:[%s1273] sm:$0xff]
        %1276 = vset.pattern.permute.xlu0 0
        %1277 = vperm.xlu0 %1276, %v1256
        %v1278 = vpop.permute.xlu0 %1277
        %v1280 = vmul.f32 %v1278, %v1274
        %v1282 = vsel %vm839, %v1264, 0
        %1284 = vmatprep.subr.mxu0 0.0
        %1285 = vmatpush1.msra.mxu0 %v1167
        %1286 = vmatprep.subr.mxu0 0.0
        %1287 = vmatpush1.msra.mxu0 0.0
        %1288 = vmatprep.subr.mxu0 0.0
        %1289 = vmatpush1.msra.mxu0 0.0
        %1290 = vmatprep.subr.mxu0 0.0
        %1291 = vmatpush1.msra.mxu0 0.0
        %1292 = vmatprep.subr.mxu0 0.0
        %1293 = vmatpush1.msra.mxu0 0.0
        %1294 = vmatprep.subr.mxu0 0.0
        %1295 = vmatpush1.msra.mxu0 0.0
        %1296 = vmatprep.subr.mxu0 0.0
        %1297 = vmatpush1.msra.mxu0 0.0
        %1298 = vmatprep.subr.mxu0 0.0
        %1299 = vmatpush1.msra.mxu0 0.0
        %1300 = vmatprep.subr.mxu0 0.0
        %1301 = vmatpush1.msra.mxu0 0.0
        %1302 = vmatprep.subr.mxu0 0.0
        %1303 = vmatpush1.msra.mxu0 0.0
        %1304 = vmatprep.subr.mxu0 0.0
        %1305 = vmatpush1.msra.mxu0 0.0
        %1306 = vmatprep.subr.mxu0 0.0
        %1307 = vmatpush1.msra.mxu0 0.0
        %1308 = vmatprep.subr.mxu0 0.0
        %1309 = vmatpush1.msra.mxu0 0.0
        %1310 = vmatprep.subr.mxu0 0.0
        %1311 = vmatpush1.msra.mxu0 0.0
        %1312 = vmatprep.subr.mxu0 0.0
        %1313 = vmatpush1.msra.mxu0 0.0
        %1314 = vmatprep.subr.mxu0 0.0
        %1315 = vmatpush1.msra.mxu0 0.0
        %1316 = vmatprep.subr.mxu0 0.0
        %1317 = vmatpush1.msra.mxu0 0.0
        %1318 = vmatprep.subr.mxu0 0.0
        %1319 = vmatpush1.msra.mxu0 0.0
        %1320 = vmatprep.subr.mxu0 0.0
        %1321 = vmatpush1.msra.mxu0 0.0
        %1322 = vmatprep.subr.mxu0 0.0
        %1323 = vmatpush1.msra.mxu0 0.0
        %1324 = vmatprep.subr.mxu0 0.0
        %1325 = vmatpush1.msra.mxu0 0.0
        %1326 = vmatprep.subr.mxu0 0.0
        %1327 = vmatpush1.msra.mxu0 0.0
        %1328 = vmatprep.subr.mxu0 0.0
        %1329 = vmatpush1.msra.mxu0 0.0
        %1330 = vmatprep.subr.mxu0 0.0
        %1331 = vmatpush1.msra.mxu0 0.0
        %1332 = vmatprep.subr.mxu0 0.0
        %1333 = vmatpush1.msra.mxu0 0.0
        %1334 = vmatprep.subr.mxu0 0.0
        %1335 = vmatpush1.msra.mxu0 0.0
        %1336 = vmatprep.subr.mxu0 0.0
        %1337 = vmatpush1.msra.mxu0 0.0
        %1338 = vmatprep.subr.mxu0 0.0
        %1339 = vmatpush1.msra.mxu0 0.0
        %1340 = vmatprep.subr.mxu0 0.0
        %1341 = vmatpush1.msra.mxu0 0.0
        %1342 = vmatprep.subr.mxu0 0.0
        %1343 = vmatpush1.msra.mxu0 0.0
        %1344 = vmatprep.subr.mxu0 0.0
        %1345 = vmatpush1.msra.mxu0 0.0
        %1346 = vmatprep.subr.mxu0 0.0
        %1347 = vmatpush1.msra.mxu0 0.0
        %1348 = vmatprep.mubr.f32.mxu0 0.0
        %1349 = vmatmul.mubr.f32.gmra.mrb[0].mxu0 %v1282
        %v1350 = vpop.f32.mrb[0].mxu0
        %v1351 = vadd.f32 0.0, %v1350
        %v1352 = vpop.f32.mrb[0].mxu0
        %1353 = vdwg.mxu0
        %v1354 = vadd.f32 %v1280, %v1351
        %1355 = vst.msk [vmem:[%s1273] sm:$0xff] %vm839, %v1354
        %1356 = vst.msk [vmem:[%s1248] sm:$0xff] %vm938, %v1253
        %s1357 = scalar_lea.vmem %s4, 32
        %v1358 = vld [vmem:[%s1357] sm:$0xff]
        %v1359 = vld [vmem:[%s1357 + $0x8] sm:$0xff]
        %1360 = vmatprep.subr.mxu0 0.0
        %1361 = vmatpush1.msra.mxu0 %v1358
        %1362 = vmatprep.subr.mxu0 0.0
        %1363 = vmatpush1.msra.mxu0 %v1359
        %1364 = vmatprep.subr.mxu0 0.0
        %1365 = vmatpush1.msra.mxu0 0.0
        %1366 = vmatprep.subr.mxu0 0.0
        %1367 = vmatpush1.msra.mxu0 0.0
        %1368 = vmatprep.subr.mxu0 0.0
        %1369 = vmatpush1.msra.mxu0 0.0
        %1370 = vmatprep.subr.mxu0 0.0
        %1371 = vmatpush1.msra.mxu0 0.0
        %1372 = vmatprep.subr.mxu0 0.0
        %1373 = vmatpush1.msra.mxu0 0.0
        %1374 = vmatprep.subr.mxu0 0.0
        %1375 = vmatpush1.msra.mxu0 0.0
        %1376 = vmatprep.subr.mxu0 0.0
        %1377 = vmatpush1.msra.mxu0 0.0
        %1378 = vmatprep.subr.mxu0 0.0
        %1379 = vmatpush1.msra.mxu0 0.0
        %1380 = vmatprep.subr.mxu0 0.0
        %1381 = vmatpush1.msra.mxu0 0.0
        %1382 = vmatprep.subr.mxu0 0.0
        %1383 = vmatpush1.msra.mxu0 0.0
        %1384 = vmatprep.subr.mxu0 0.0
        %1385 = vmatpush1.msra.mxu0 0.0
        %1386 = vmatprep.subr.mxu0 0.0
        %1387 = vmatpush1.msra.mxu0 0.0
        %1388 = vmatprep.subr.mxu0 0.0
        %1389 = vmatpush1.msra.mxu0 0.0
        %1390 = vmatprep.subr.mxu0 0.0
        %1391 = vmatpush1.msra.mxu0 0.0
        %1392 = vmatprep.subr.mxu0 0.0
        %1393 = vmatpush1.msra.mxu0 0.0
        %1394 = vmatprep.subr.mxu0 0.0
        %1395 = vmatpush1.msra.mxu0 0.0
        %1396 = vmatprep.subr.mxu0 0.0
        %1397 = vmatpush1.msra.mxu0 0.0
        %1398 = vmatprep.subr.mxu0 0.0
        %1399 = vmatpush1.msra.mxu0 0.0
        %1400 = vmatprep.subr.mxu0 0.0
        %1401 = vmatpush1.msra.mxu0 0.0
        %1402 = vmatprep.subr.mxu0 0.0
        %1403 = vmatpush1.msra.mxu0 0.0
        %1404 = vmatprep.subr.mxu0 0.0
        %1405 = vmatpush1.msra.mxu0 0.0
        %1406 = vmatprep.subr.mxu0 0.0
        %1407 = vmatpush1.msra.mxu0 0.0
        %1408 = vmatprep.subr.mxu0 0.0
        %1409 = vmatpush1.msra.mxu0 0.0
        %1410 = vmatprep.subr.mxu0 0.0
        %1411 = vmatpush1.msra.mxu0 0.0
        %1412 = vmatprep.subr.mxu0 0.0
        %1413 = vmatpush1.msra.mxu0 0.0
        %1414 = vmatprep.subr.mxu0 0.0
        %1415 = vmatpush1.msra.mxu0 0.0
        %1416 = vmatprep.subr.mxu0 0.0
        %1417 = vmatpush1.msra.mxu0 0.0
        %1418 = vmatprep.subr.mxu0 0.0
        %1419 = vmatpush1.msra.mxu0 0.0
        %1420 = vmatprep.subr.mxu0 0.0
        %1421 = vmatpush1.msra.mxu0 0.0
        %1422 = vmatprep.subr.mxu0 0.0
        %1423 = vmatpush1.msra.mxu0 0.0
        %1424 = vmatprep.mubr.f32.mxu0 0.0
        %1425 = vmatmul.mubr.f32.gmra.mrb[0].mxu0 %v689
        %v1426 = vpop.f32.mrb[0].mxu0
        %v1427 = vadd.f32 0.0, %v1426
        %v1428 = vpop.f32.mrb[0].mxu0
        %1429 = vdwg.mxu0
        %s1430 = scalar_lea.vmem %s5, 48
        %v1431 = vld [vmem:[%s1430] sm:$0xff]
        %v1432 = vld [vmem:[%s1430 + $0x8] sm:$0xff]
        %v1433 = vld [vmem:[%s1430 + $0x10] sm:$0xff]
        %1434 = vmatprep.subr.mxu0 0.0
        %1435 = vmatpush1.msra.mxu0 %v1431
        %1436 = vmatprep.subr.mxu0 0.0
        %1437 = vmatpush1.msra.mxu0 %v1432
        %1438 = vmatprep.subr.mxu0 0.0
        %1439 = vmatpush1.msra.mxu0 %v1433
        %1440 = vmatprep.subr.mxu0 0.0
        %1441 = vmatpush1.msra.mxu0 0.0
        %1442 = vmatprep.subr.mxu0 0.0
        %1443 = vmatpush1.msra.mxu0 0.0
        %1444 = vmatprep.subr.mxu0 0.0
        %1445 = vmatpush1.msra.mxu0 0.0
        %1446 = vmatprep.subr.mxu0 0.0
        %1447 = vmatpush1.msra.mxu0 0.0
        %1448 = vmatprep.subr.mxu0 0.0
        %1449 = vmatpush1.msra.mxu0 0.0
        %1450 = vmatprep.subr.mxu0 0.0
        %1451 = vmatpush1.msra.mxu0 0.0
        %1452 = vmatprep.subr.mxu0 0.0
        %1453 = vmatpush1.msra.mxu0 0.0
        %1454 = vmatprep.subr.mxu0 0.0
        %1455 = vmatpush1.msra.mxu0 0.0
        %1456 = vmatprep.subr.mxu0 0.0
        %1457 = vmatpush1.msra.mxu0 0.0
        %1458 = vmatprep.subr.mxu0 0.0
        %1459 = vmatpush1.msra.mxu0 0.0
        %1460 = vmatprep.subr.mxu0 0.0
        %1461 = vmatpush1.msra.mxu0 0.0
        %1462 = vmatprep.subr.mxu0 0.0
        %1463 = vmatpush1.msra.mxu0 0.0
        %1464 = vmatprep.subr.mxu0 0.0
        %1465 = vmatpush1.msra.mxu0 0.0
        %1466 = vmatprep.subr.mxu0 0.0
        %1467 = vmatpush1.msra.mxu0 0.0
        %1468 = vmatprep.subr.mxu0 0.0
        %1469 = vmatpush1.msra.mxu0 0.0
        %1470 = vmatprep.subr.mxu0 0.0
        %1471 = vmatpush1.msra.mxu0 0.0
        %1472 = vmatprep.subr.mxu0 0.0
        %1473 = vmatpush1.msra.mxu0 0.0
        %1474 = vmatprep.subr.mxu0 0.0
        %1475 = vmatpush1.msra.mxu0 0.0
        %1476 = vmatprep.subr.mxu0 0.0
        %1477 = vmatpush1.msra.mxu0 0.0
        %1478 = vmatprep.subr.mxu0 0.0
        %1479 = vmatpush1.msra.mxu0 0.0
        %1480 = vmatprep.subr.mxu0 0.0
        %1481 = vmatpush1.msra.mxu0 0.0
        %1482 = vmatprep.subr.mxu0 0.0
        %1483 = vmatpush1.msra.mxu0 0.0
        %1484 = vmatprep.subr.mxu0 0.0
        %1485 = vmatpush1.msra.mxu0 0.0
        %1486 = vmatprep.subr.mxu0 0.0
        %1487 = vmatpush1.msra.mxu0 0.0
        %1488 = vmatprep.subr.mxu0 0.0
        %1489 = vmatpush1.msra.mxu0 0.0
        %1490 = vmatprep.subr.mxu0 0.0
        %1491 = vmatpush1.msra.mxu0 0.0
        %1492 = vmatprep.subr.mxu0 0.0
        %1493 = vmatpush1.msra.mxu0 0.0
        %1494 = vmatprep.subr.mxu0 0.0
        %1495 = vmatpush1.msra.mxu0 0.0
        %1496 = vmatprep.subr.mxu0 0.0
        %1497 = vmatpush1.msra.mxu0 0.0
        %1498 = vmatprep.mubr.f32.mxu0 0.0
        %1499 = vmatmul.mubr.f32.gmra.mrb[0].mxu0 %v766
        %v1500 = vpop.f32.mrb[0].mxu0
        %v1501 = vadd.f32 0.0, %v1500
        %v1502 = vpop.f32.mrb[0].mxu0
        %1503 = vdwg.mxu0
        %s1504 = scalar_lea.vmem [#allocation2], 16
        %v1505 = vld [vmem:[%s1504] sm:$0xff]
        %v1507 = vsel %vm839, %v1505, 0
        %v1510 = vsel %vm839, %v1427, 0
        %1512 = vmatprep.subr.mxu0 0.0
        %1513 = vmatpush1.xpose.msra.mxu0 %v1510
        %1514 = vmatprep.subr.mxu0 0.0
        %1515 = vmatpush1.xpose.msra.mxu0 0.0
        %1516 = vmatprep.subr.mxu0 0.0
        %1517 = vmatpush1.xpose.msra.mxu0 0.0
        %1518 = vmatprep.subr.mxu0 0.0
        %1519 = vmatpush1.xpose.msra.mxu0 0.0
        %1520 = vmatprep.subr.mxu0 0.0
        %1521 = vmatpush1.xpose.msra.mxu0 0.0
        %1522 = vmatprep.subr.mxu0 0.0
        %1523 = vmatpush1.xpose.msra.mxu0 0.0
        %1524 = vmatprep.subr.mxu0 0.0
        %1525 = vmatpush1.xpose.msra.mxu0 0.0
        %1526 = vmatprep.subr.mxu0 0.0
        %1527 = vmatpush1.xpose.msra.mxu0 0.0
        %1528 = vmatprep.subr.mxu0 0.0
        %1529 = vmatpush1.xpose.msra.mxu0 0.0
        %1530 = vmatprep.subr.mxu0 0.0
        %1531 = vmatpush1.xpose.msra.mxu0 0.0
        %1532 = vmatprep.subr.mxu0 0.0
        %1533 = vmatpush1.xpose.msra.mxu0 0.0
        %1534 = vmatprep.subr.mxu0 0.0
        %1535 = vmatpush1.xpose.msra.mxu0 0.0
        %1536 = vmatprep.subr.mxu0 0.0
        %1537 = vmatpush1.xpose.msra.mxu0 0.0
        %1538 = vmatprep.subr.mxu0 0.0
        %1539 = vmatpush1.xpose.msra.mxu0 0.0
        %1540 = vmatprep.subr.mxu0 0.0
        %1541 = vmatpush1.xpose.msra.mxu0 0.0
        %1542 = vmatprep.subr.mxu0 0.0
        %1543 = vmatpush1.xpose.msra.mxu0 0.0
        %1544 = vmatprep.subr.mxu0 0.0
        %1545 = vmatpush1.xpose.msra.mxu0 0.0
        %1546 = vmatprep.subr.mxu0 0.0
        %1547 = vmatpush1.xpose.msra.mxu0 0.0
        %1548 = vmatprep.subr.mxu0 0.0
        %1549 = vmatpush1.xpose.msra.mxu0 0.0
        %1550 = vmatprep.subr.mxu0 0.0
        %1551 = vmatpush1.xpose.msra.mxu0 0.0
        %1552 = vmatprep.subr.mxu0 0.0
        %1553 = vmatpush1.xpose.msra.mxu0 0.0
        %1554 = vmatprep.subr.mxu0 0.0
        %1555 = vmatpush1.xpose.msra.mxu0 0.0
        %1556 = vmatprep.subr.mxu0 0.0
        %1557 = vmatpush1.xpose.msra.mxu0 0.0
        %1558 = vmatprep.subr.mxu0 0.0
        %1559 = vmatpush1.xpose.msra.mxu0 0.0
        %1560 = vmatprep.subr.mxu0 0.0
        %1561 = vmatpush1.xpose.msra.mxu0 0.0
        %1562 = vmatprep.subr.mxu0 0.0
        %1563 = vmatpush1.xpose.msra.mxu0 0.0
        %1564 = vmatprep.subr.mxu0 0.0
        %1565 = vmatpush1.xpose.msra.mxu0 0.0
        %1566 = vmatprep.subr.mxu0 0.0
        %1567 = vmatpush1.xpose.msra.mxu0 0.0
        %1568 = vmatprep.subr.mxu0 0.0
        %1569 = vmatpush1.xpose.msra.mxu0 0.0
        %1570 = vmatprep.subr.mxu0 0.0
        %1571 = vmatpush1.xpose.msra.mxu0 0.0
        %1572 = vmatprep.subr.mxu0 0.0
        %1573 = vmatpush1.xpose.msra.mxu0 0.0
        %1574 = vmatprep.subr.mxu0 0.0
        %1575 = vmatpush1.xpose.msra.mxu0 0.0
        %1576 = vmatprep.mubr.f32.mxu0 0.0
        %1577 = vmatmul.mubr.f32.gmra.mrb[0].mxu0 %v1507
        %v1578 = vpop.f32.mrb[0].mxu0
        %v1579 = vadd.f32 0.0, %v1578
        %v1580 = vpop.f32.mrb[0].mxu0
        %1581 = vdwg.mxu0
        %s1582 = scalar_lea.vmem [#allocation3], 16
        %v1583 = vld [vmem:[%s1582] sm:$0xff]
        %v1584 = vsel %vm839, %v1579, -inf
        %1585 = vmax.xlane.f32.xlu0 %v1584
        %v1586 = vpop.xlane.xlu0 %1585
        %v1587 = vmax.f32 %v1583, %v1586
        %v1588 = vsub.f32 %v1583, %v1587
        %v1589 = vmul.f32 %v1588, 1.442695
        %v1590 = vpow.pop %v1589
        %1592 = vset.pattern.permute.xlu0 0
        %1593 = vperm.xlu0 %1592, %v1587
        %v1594 = vpop.permute.xlu0 %1593
        %v1596 = vsub.f32 %v1579, %v1594
        %v1597 = vmul.f32 %v1596, 1.442695
        %v1598 = vpow.pop %v1597
        %s1599 = scalar_lea.vmem [#allocation4], 16
        %v1600 = vld [vmem:[%s1599] sm:$0xff]
        %v1601 = vmul.f32 %v1590, %v1600
        %v1602 = vsel %vm839, %v1598, 0.0
        %1603 = vadd.xlane.f32.xlu0 %v1602
        %v1604 = vpop.xlane.xlu0 %1603
        %v1605 = vadd.f32 %v1601, %v1604
        %1606 = vst.msk [vmem:[%s1599] sm:$0xff] %vm938, %v1605
        %s1607 = scalar_lea.vmem [#allocation5], 16
        %v1608 = vld [vmem:[%s1607] sm:$0xff]
        %1610 = vset.pattern.permute.xlu0 0
        %1611 = vperm.xlu0 %1610, %v1590
        %v1612 = vpop.permute.xlu0 %1611
        %v1614 = vmul.f32 %v1612, %v1608
        %v1616 = vsel %vm839, %v1598, 0
        %1618 = vmatprep.subr.mxu0 0.0
        %1619 = vmatpush1.msra.mxu0 %v1501
        %1620 = vmatprep.subr.mxu0 0.0
        %1621 = vmatpush1.msra.mxu0 0.0
        %1622 = vmatprep.subr.mxu0 0.0
        %1623 = vmatpush1.msra.mxu0 0.0
        %1624 = vmatprep.subr.mxu0 0.0
        %1625 = vmatpush1.msra.mxu0 0.0
        %1626 = vmatprep.subr.mxu0 0.0
        %1627 = vmatpush1.msra.mxu0 0.0
        %1628 = vmatprep.subr.mxu0 0.0
        %1629 = vmatpush1.msra.mxu0 0.0
        %1630 = vmatprep.subr.mxu0 0.0
        %1631 = vmatpush1.msra.mxu0 0.0
        %1632 = vmatprep.subr.mxu0 0.0
        %1633 = vmatpush1.msra.mxu0 0.0
        %1634 = vmatprep.subr.mxu0 0.0
        %1635 = vmatpush1.msra.mxu0 0.0
        %1636 = vmatprep.subr.mxu0 0.0
        %1637 = vmatpush1.msra.mxu0 0.0
        %1638 = vmatprep.subr.mxu0 0.0
        %1639 = vmatpush1.msra.mxu0 0.0
        %1640 = vmatprep.subr.mxu0 0.0
        %1641 = vmatpush1.msra.mxu0 0.0
        %1642 = vmatprep.subr.mxu0 0.0
        %1643 = vmatpush1.msra.mxu0 0.0
        %1644 = vmatprep.subr.mxu0 0.0
        %1645 = vmatpush1.msra.mxu0 0.0
        %1646 = vmatprep.subr.mxu0 0.0
        %1647 = vmatpush1.msra.mxu0 0.0
        %1648 = vmatprep.subr.mxu0 0.0
        %1649 = vmatpush1.msra.mxu0 0.0
        %1650 = vmatprep.subr.mxu0 0.0
        %1651 = vmatpush1.msra.mxu0 0.0
        %1652 = vmatprep.subr.mxu0 0.0
        %1653 = vmatpush1.msra.mxu0 0.0
        %1654 = vmatprep.subr.mxu0 0.0
        %1655 = vmatpush1.msra.mxu0 0.0
        %1656 = vmatprep.subr.mxu0 0.0
        %1657 = vmatpush1.msra.mxu0 0.0
        %1658 = vmatprep.subr.mxu0 0.0
        %1659 = vmatpush1.msra.mxu0 0.0
        %1660 = vmatprep.subr.mxu0 0.0
        %1661 = vmatpush1.msra.mxu0 0.0
        %1662 = vmatprep.subr.mxu0 0.0
        %1663 = vmatpush1.msra.mxu0 0.0
        %1664 = vmatprep.subr.mxu0 0.0
        %1665 = vmatpush1.msra.mxu0 0.0
        %1666 = vmatprep.subr.mxu0 0.0
        %1667 = vmatpush1.msra.mxu0 0.0
        %1668 = vmatprep.subr.mxu0 0.0
        %1669 = vmatpush1.msra.mxu0 0.0
        %1670 = vmatprep.subr.mxu0 0.0
        %1671 = vmatpush1.msra.mxu0 0.0
        %1672 = vmatprep.subr.mxu0 0.0
        %1673 = vmatpush1.msra.mxu0 0.0
        %1674 = vmatprep.subr.mxu0 0.0
        %1675 = vmatpush1.msra.mxu0 0.0
        %1676 = vmatprep.subr.mxu0 0.0
        %1677 = vmatpush1.msra.mxu0 0.0
        %1678 = vmatprep.subr.mxu0 0.0
        %1679 = vmatpush1.msra.mxu0 0.0
        %1680 = vmatprep.subr.mxu0 0.0
        %1681 = vmatpush1.msra.mxu0 0.0
        %1682 = vmatprep.mubr.f32.mxu0 0.0
        %1683 = vmatmul.mubr.f32.gmra.mrb[0].mxu0 %v1616
        %v1684 = vpop.f32.mrb[0].mxu0
        %v1685 = vadd.f32 0.0, %v1684
        %v1686 = vpop.f32.mrb[0].mxu0
        %1687 = vdwg.mxu0
        %v1688 = vadd.f32 %v1614, %v1685
        %1689 = vst.msk [vmem:[%s1607] sm:$0xff] %vm839, %v1688
        %1690 = vst.msk [vmem:[%s1582] sm:$0xff] %vm938, %v1587
        %s1691 = scalar_lea.vmem %s4, 48
        %v1692 = vld [vmem:[%s1691] sm:$0xff]
        %v1693 = vld [vmem:[%s1691 + $0x8] sm:$0xff]
        %1694 = vmatprep.subr.mxu0 0.0
        %1695 = vmatpush1.msra.mxu0 %v1692
        %1696 = vmatprep.subr.mxu0 0.0
        %1697 = vmatpush1.msra.mxu0 %v1693
        %1698 = vmatprep.subr.mxu0 0.0
        %1699 = vmatpush1.msra.mxu0 0.0
        %1700 = vmatprep.subr.mxu0 0.0
        %1701 = vmatpush1.msra.mxu0 0.0
        %1702 = vmatprep.subr.mxu0 0.0
        %1703 = vmatpush1.msra.mxu0 0.0
        %1704 = vmatprep.subr.mxu0 0.0
        %1705 = vmatpush1.msra.mxu0 0.0
        %1706 = vmatprep.subr.mxu0 0.0
        %1707 = vmatpush1.msra.mxu0 0.0
        %1708 = vmatprep.subr.mxu0 0.0
        %1709 = vmatpush1.msra.mxu0 0.0
        %1710 = vmatprep.subr.mxu0 0.0
        %1711 = vmatpush1.msra.mxu0 0.0
        %1712 = vmatprep.subr.mxu0 0.0
        %1713 = vmatpush1.msra.mxu0 0.0
        %1714 = vmatprep.subr.mxu0 0.0
        %1715 = vmatpush1.msra.mxu0 0.0
        %1716 = vmatprep.subr.mxu0 0.0
        %1717 = vmatpush1.msra.mxu0 0.0
        %1718 = vmatprep.subr.mxu0 0.0
        %1719 = vmatpush1.msra.mxu0 0.0
        %1720 = vmatprep.subr.mxu0 0.0
        %1721 = vmatpush1.msra.mxu0 0.0
        %1722 = vmatprep.subr.mxu0 0.0
        %1723 = vmatpush1.msra.mxu0 0.0
        %1724 = vmatprep.subr.mxu0 0.0
        %1725 = vmatpush1.msra.mxu0 0.0
        %1726 = vmatprep.subr.mxu0 0.0
        %1727 = vmatpush1.msra.mxu0 0.0
        %1728 = vmatprep.subr.mxu0 0.0
        %1729 = vmatpush1.msra.mxu0 0.0
        %1730 = vmatprep.subr.mxu0 0.0
        %1731 = vmatpush1.msra.mxu0 0.0
        %1732 = vmatprep.subr.mxu0 0.0
        %1733 = vmatpush1.msra.mxu0 0.0
        %1734 = vmatprep.subr.mxu0 0.0
        %1735 = vmatpush1.msra.mxu0 0.0
        %1736 = vmatprep.subr.mxu0 0.0
        %1737 = vmatpush1.msra.mxu0 0.0
        %1738 = vmatprep.subr.mxu0 0.0
        %1739 = vmatpush1.msra.mxu0 0.0
        %1740 = vmatprep.subr.mxu0 0.0
        %1741 = vmatpush1.msra.mxu0 0.0
        %1742 = vmatprep.subr.mxu0 0.0
        %1743 = vmatpush1.msra.mxu0 0.0
        %1744 = vmatprep.subr.mxu0 0.0
        %1745 = vmatpush1.msra.mxu0 0.0
        %1746 = vmatprep.subr.mxu0 0.0
        %1747 = vmatpush1.msra.mxu0 0.0
        %1748 = vmatprep.subr.mxu0 0.0
        %1749 = vmatpush1.msra.mxu0 0.0
        %1750 = vmatprep.subr.mxu0 0.0
        %1751 = vmatpush1.msra.mxu0 0.0
        %1752 = vmatprep.subr.mxu0 0.0
        %1753 = vmatpush1.msra.mxu0 0.0
        %1754 = vmatprep.subr.mxu0 0.0
        %1755 = vmatpush1.msra.mxu0 0.0
        %1756 = vmatprep.subr.mxu0 0.0
        %1757 = vmatpush1.msra.mxu0 0.0
        %1758 = vmatprep.mubr.f32.mxu0 0.0
        %1759 = vmatmul.mubr.f32.gmra.mrb[0].mxu0 %v689
        %v1760 = vpop.f32.mrb[0].mxu0
        %v1761 = vadd.f32 0.0, %v1760
        %v1762 = vpop.f32.mrb[0].mxu0
        %1763 = vdwg.mxu0
        %s1764 = scalar_lea.vmem %s5, 72
        %v1765 = vld [vmem:[%s1764] sm:$0xff]
        %v1766 = vld [vmem:[%s1764 + $0x8] sm:$0xff]
        %v1767 = vld [vmem:[%s1764 + $0x10] sm:$0xff]
        %1768 = vmatprep.subr.mxu0 0.0
        %1769 = vmatpush1.msra.mxu0 %v1765
        %1770 = vmatprep.subr.mxu0 0.0
        %1771 = vmatpush1.msra.mxu0 %v1766
        %1772 = vmatprep.subr.mxu0 0.0
        %1773 = vmatpush1.msra.mxu0 %v1767
        %1774 = vmatprep.subr.mxu0 0.0
        %1775 = vmatpush1.msra.mxu0 0.0
        %1776 = vmatprep.subr.mxu0 0.0
        %1777 = vmatpush1.msra.mxu0 0.0
        %1778 = vmatprep.subr.mxu0 0.0
        %1779 = vmatpush1.msra.mxu0 0.0
        %1780 = vmatprep.subr.mxu0 0.0
        %1781 = vmatpush1.msra.mxu0 0.0
        %1782 = vmatprep.subr.mxu0 0.0
        %1783 = vmatpush1.msra.mxu0 0.0
        %1784 = vmatprep.subr.mxu0 0.0
        %1785 = vmatpush1.msra.mxu0 0.0
        %1786 = vmatprep.subr.mxu0 0.0
        %1787 = vmatpush1.msra.mxu0 0.0
        %1788 = vmatprep.subr.mxu0 0.0
        %1789 = vmatpush1.msra.mxu0 0.0
        %1790 = vmatprep.subr.mxu0 0.0
        %1791 = vmatpush1.msra.mxu0 0.0
        %1792 = vmatprep.subr.mxu0 0.0
        %1793 = vmatpush1.msra.mxu0 0.0
        %1794 = vmatprep.subr.mxu0 0.0
        %1795 = vmatpush1.msra.mxu0 0.0
        %1796 = vmatprep.subr.mxu0 0.0
        %1797 = vmatpush1.msra.mxu0 0.0
        %1798 = vmatprep.subr.mxu0 0.0
        %1799 = vmatpush1.msra.mxu0 0.0
        %1800 = vmatprep.subr.mxu0 0.0
        %1801 = vmatpush1.msra.mxu0 0.0
        %1802 = vmatprep.subr.mxu0 0.0
        %1803 = vmatpush1.msra.mxu0 0.0
        %1804 = vmatprep.subr.mxu0 0.0
        %1805 = vmatpush1.msra.mxu0 0.0
        %1806 = vmatprep.subr.mxu0 0.0
        %1807 = vmatpush1.msra.mxu0 0.0
        %1808 = vmatprep.subr.mxu0 0.0
        %1809 = vmatpush1.msra.mxu0 0.0
        %1810 = vmatprep.subr.mxu0 0.0
        %1811 = vmatpush1.msra.mxu0 0.0
        %1812 = vmatprep.subr.mxu0 0.0
        %1813 = vmatpush1.msra.mxu0 0.0
        %1814 = vmatprep.subr.mxu0 0.0
        %1815 = vmatpush1.msra.mxu0 0.0
        %1816 = vmatprep.subr.mxu0 0.0
        %1817 = vmatpush1.msra.mxu0 0.0
        %1818 = vmatprep.subr.mxu0 0.0
        %1819 = vmatpush1.msra.mxu0 0.0
        %1820 = vmatprep.subr.mxu0 0.0
        %1821 = vmatpush1.msra.mxu0 0.0
        %1822 = vmatprep.subr.mxu0 0.0
        %1823 = vmatpush1.msra.mxu0 0.0
        %1824 = vmatprep.subr.mxu0 0.0
        %1825 = vmatpush1.msra.mxu0 0.0
        %1826 = vmatprep.subr.mxu0 0.0
        %1827 = vmatpush1.msra.mxu0 0.0
        %1828 = vmatprep.subr.mxu0 0.0
        %1829 = vmatpush1.msra.mxu0 0.0
        %1830 = vmatprep.subr.mxu0 0.0
        %1831 = vmatpush1.msra.mxu0 0.0
        %1832 = vmatprep.mubr.f32.mxu0 0.0
        %1833 = vmatmul.mubr.f32.gmra.mrb[0].mxu0 %v766
        %v1834 = vpop.f32.mrb[0].mxu0
        %v1835 = vadd.f32 0.0, %v1834
        %v1836 = vpop.f32.mrb[0].mxu0
        %1837 = vdwg.mxu0
        %s1838 = scalar_lea.vmem [#allocation2], 24
        %v1839 = vld [vmem:[%s1838] sm:$0xff]
        %v1841 = vsel %vm839, %v1839, 0
        %v1844 = vsel %vm839, %v1761, 0
        %1846 = vmatprep.subr.mxu0 0.0
        %1847 = vmatpush1.xpose.msra.mxu0 %v1844
        %1848 = vmatprep.subr.mxu0 0.0
        %1849 = vmatpush1.xpose.msra.mxu0 0.0
        %1850 = vmatprep.subr.mxu0 0.0
        %1851 = vmatpush1.xpose.msra.mxu0 0.0
        %1852 = vmatprep.subr.mxu0 0.0
        %1853 = vmatpush1.xpose.msra.mxu0 0.0
        %1854 = vmatprep.subr.mxu0 0.0
        %1855 = vmatpush1.xpose.msra.mxu0 0.0
        %1856 = vmatprep.subr.mxu0 0.0
        %1857 = vmatpush1.xpose.msra.mxu0 0.0
        %1858 = vmatprep.subr.mxu0 0.0
        %1859 = vmatpush1.xpose.msra.mxu0 0.0
        %1860 = vmatprep.subr.mxu0 0.0
        %1861 = vmatpush1.xpose.msra.mxu0 0.0
        %1862 = vmatprep.subr.mxu0 0.0
        %1863 = vmatpush1.xpose.msra.mxu0 0.0
        %1864 = vmatprep.subr.mxu0 0.0
        %1865 = vmatpush1.xpose.msra.mxu0 0.0
        %1866 = vmatprep.subr.mxu0 0.0
        %1867 = vmatpush1.xpose.msra.mxu0 0.0
        %1868 = vmatprep.subr.mxu0 0.0
        %1869 = vmatpush1.xpose.msra.mxu0 0.0
        %1870 = vmatprep.subr.mxu0 0.0
        %1871 = vmatpush1.xpose.msra.mxu0 0.0
        %1872 = vmatprep.subr.mxu0 0.0
        %1873 = vmatpush1.xpose.msra.mxu0 0.0
        %1874 = vmatprep.subr.mxu0 0.0
        %1875 = vmatpush1.xpose.msra.mxu0 0.0
        %1876 = vmatprep.subr.mxu0 0.0
        %1877 = vmatpush1.xpose.msra.mxu0 0.0
        %1878 = vmatprep.subr.mxu0 0.0
        %1879 = vmatpush1.xpose.msra.mxu0 0.0
        %1880 = vmatprep.subr.mxu0 0.0
        %1881 = vmatpush1.xpose.msra.mxu0 0.0
        %1882 = vmatprep.subr.mxu0 0.0
        %1883 = vmatpush1.xpose.msra.mxu0 0.0
        %1884 = vmatprep.subr.mxu0 0.0
        %1885 = vmatpush1.xpose.msra.mxu0 0.0
        %1886 = vmatprep.subr.mxu0 0.0
        %1887 = vmatpush1.xpose.msra.mxu0 0.0
        %1888 = vmatprep.subr.mxu0 0.0
        %1889 = vmatpush1.xpose.msra.mxu0 0.0
        %1890 = vmatprep.subr.mxu0 0.0
        %1891 = vmatpush1.xpose.msra.mxu0 0.0
        %1892 = vmatprep.subr.mxu0 0.0
        %1893 = vmatpush1.xpose.msra.mxu0 0.0
        %1894 = vmatprep.subr.mxu0 0.0
        %1895 = vmatpush1.xpose.msra.mxu0 0.0
        %1896 = vmatprep.subr.mxu0 0.0
        %1897 = vmatpush1.xpose.msra.mxu0 0.0
        %1898 = vmatprep.subr.mxu0 0.0
        %1899 = vmatpush1.xpose.msra.mxu0 0.0
        %1900 = vmatprep.subr.mxu0 0.0
        %1901 = vmatpush1.xpose.msra.mxu0 0.0
        %1902 = vmatprep.subr.mxu0 0.0
        %1903 = vmatpush1.xpose.msra.mxu0 0.0
        %1904 = vmatprep.subr.mxu0 0.0
        %1905 = vmatpush1.xpose.msra.mxu0 0.0
        %1906 = vmatprep.subr.mxu0 0.0
        %1907 = vmatpush1.xpose.msra.mxu0 0.0
        %1908 = vmatprep.subr.mxu0 0.0
        %1909 = vmatpush1.xpose.msra.mxu0 0.0
        %1910 = vmatprep.mubr.f32.mxu0 0.0
        %1911 = vmatmul.mubr.f32.gmra.mrb[0].mxu0 %v1841
        %v1912 = vpop.f32.mrb[0].mxu0
        %v1913 = vadd.f32 0.0, %v1912
        %v1914 = vpop.f32.mrb[0].mxu0
        %1915 = vdwg.mxu0
        %s1916 = scalar_lea.vmem [#allocation3], 24
        %v1917 = vld [vmem:[%s1916] sm:$0xff]
        %v1918 = vsel %vm839, %v1913, -inf
        %1919 = vmax.xlane.f32.xlu0 %v1918
        %v1920 = vpop.xlane.xlu0 %1919
        %v1921 = vmax.f32 %v1917, %v1920
        %v1922 = vsub.f32 %v1917, %v1921
        %v1923 = vmul.f32 %v1922, 1.442695
        %v1924 = vpow.pop %v1923
        %1926 = vset.pattern.permute.xlu0 0
        %1927 = vperm.xlu0 %1926, %v1921
        %v1928 = vpop.permute.xlu0 %1927
        %v1930 = vsub.f32 %v1913, %v1928
        %v1931 = vmul.f32 %v1930, 1.442695
        %v1932 = vpow.pop %v1931
        %s1933 = scalar_lea.vmem [#allocation4], 24
        %v1934 = vld [vmem:[%s1933] sm:$0xff]
        %v1935 = vmul.f32 %v1924, %v1934
        %v1936 = vsel %vm839, %v1932, 0.0
        %1937 = vadd.xlane.f32.xlu0 %v1936
        %v1938 = vpop.xlane.xlu0 %1937
        %v1939 = vadd.f32 %v1935, %v1938
        %1940 = vst.msk [vmem:[%s1933] sm:$0xff] %vm938, %v1939
        %s1941 = scalar_lea.vmem [#allocation5], 24
        %v1942 = vld [vmem:[%s1941] sm:$0xff]
        %1944 = vset.pattern.permute.xlu0 0
        %1945 = vperm.xlu0 %1944, %v1924
        %v1946 = vpop.permute.xlu0 %1945
        %v1948 = vmul.f32 %v1946, %v1942
        %v1950 = vsel %vm839, %v1932, 0
        %1952 = vmatprep.subr.mxu0 0.0
        %1953 = vmatpush1.msra.mxu0 %v1835
        %1954 = vmatprep.subr.mxu0 0.0
        %1955 = vmatpush1.msra.mxu0 0.0
        %1956 = vmatprep.subr.mxu0 0.0
        %1957 = vmatpush1.msra.mxu0 0.0
        %1958 = vmatprep.subr.mxu0 0.0
        %1959 = vmatpush1.msra.mxu0 0.0
        %1960 = vmatprep.subr.mxu0 0.0
        %1961 = vmatpush1.msra.mxu0 0.0
        %1962 = vmatprep.subr.mxu0 0.0
        %1963 = vmatpush1.msra.mxu0 0.0
        %1964 = vmatprep.subr.mxu0 0.0
        %1965 = vmatpush1.msra.mxu0 0.0
        %1966 = vmatprep.subr.mxu0 0.0
        %1967 = vmatpush1.msra.mxu0 0.0
        %1968 = vmatprep.subr.mxu0 0.0
        %1969 = vmatpush1.msra.mxu0 0.0
        %1970 = vmatprep.subr.mxu0 0.0
        %1971 = vmatpush1.msra.mxu0 0.0
        %1972 = vmatprep.subr.mxu0 0.0
        %1973 = vmatpush1.msra.mxu0 0.0
        %1974 = vmatprep.subr.mxu0 0.0
        %1975 = vmatpush1.msra.mxu0 0.0
        %1976 = vmatprep.subr.mxu0 0.0
        %1977 = vmatpush1.msra.mxu0 0.0
        %1978 = vmatprep.subr.mxu0 0.0
        %1979 = vmatpush1.msra.mxu0 0.0
        %1980 = vmatprep.subr.mxu0 0.0
        %1981 = vmatpush1.msra.mxu0 0.0
        %1982 = vmatprep.subr.mxu0 0.0
        %1983 = vmatpush1.msra.mxu0 0.0
        %1984 = vmatprep.subr.mxu0 0.0
        %1985 = vmatpush1.msra.mxu0 0.0
        %1986 = vmatprep.subr.mxu0 0.0
        %1987 = vmatpush1.msra.mxu0 0.0
        %1988 = vmatprep.subr.mxu0 0.0
        %1989 = vmatpush1.msra.mxu0 0.0
        %1990 = vmatprep.subr.mxu0 0.0
        %1991 = vmatpush1.msra.mxu0 0.0
        %1992 = vmatprep.subr.mxu0 0.0
        %1993 = vmatpush1.msra.mxu0 0.0
        %1994 = vmatprep.subr.mxu0 0.0
        %1995 = vmatpush1.msra.mxu0 0.0
        %1996 = vmatprep.subr.mxu0 0.0
        %1997 = vmatpush1.msra.mxu0 0.0
        %1998 = vmatprep.subr.mxu0 0.0
        %1999 = vmatpush1.msra.mxu0 0.0
        %2000 = vmatprep.subr.mxu0 0.0
        %2001 = vmatpush1.msra.mxu0 0.0
        %2002 = vmatprep.subr.mxu0 0.0
        %2003 = vmatpush1.msra.mxu0 0.0
        %2004 = vmatprep.subr.mxu0 0.0
        %2005 = vmatpush1.msra.mxu0 0.0
        %2006 = vmatprep.subr.mxu0 0.0
        %2007 = vmatpush1.msra.mxu0 0.0
        %2008 = vmatprep.subr.mxu0 0.0
        %2009 = vmatpush1.msra.mxu0 0.0
        %2010 = vmatprep.subr.mxu0 0.0
        %2011 = vmatpush1.msra.mxu0 0.0
        %2012 = vmatprep.subr.mxu0 0.0
        %2013 = vmatpush1.msra.mxu0 0.0
        %2014 = vmatprep.subr.mxu0 0.0
        %2015 = vmatpush1.msra.mxu0 0.0
        %2016 = vmatprep.mubr.f32.mxu0 0.0
        %2017 = vmatmul.mubr.f32.gmra.mrb[0].mxu0 %v1950
        %v2018 = vpop.f32.mrb[0].mxu0
        %v2019 = vadd.f32 0.0, %v2018
        %v2020 = vpop.f32.mrb[0].mxu0
        %2021 = vdwg.mxu0
        %v2022 = vadd.f32 %v1948, %v2019
        %2023 = vst.msk [vmem:[%s1941] sm:$0xff] %vm839, %v2022
        %2024 = vst.msk [vmem:[%s1916] sm:$0xff] %vm938, %v1921
        // Predicated region
        $region53: #{tpu_custom_call.1} parent=47 // pred_check
          %p2025 = pneg %p362
        $region54: #{tpu_custom_call.1} parent=47 // pred_check_branch
          %2027 = sbr.rel (%p2025) target = $region56
        $region55: #{tpu_custom_call.1} parent=47 // pred_region
          %v2028 = vld [vmem:[#allocation5] sm:$0xff]
          %v2029 = vld [vmem:[#allocation4] sm:$0xff]
          %v2030 = vrcp.pop %v2029
          %2032 = vset.pattern.permute.xlu0 0
          %2033 = vperm.xlu0 %2032, %v2030
          %v2034 = vpop.permute.xlu0 %2033
          %v2036 = vmul.f32 %v2028, %v2034
          %v2037 = vld [vmem:[%s6] sm:$0xff]
          %v2038 = vld [vmem:[%s1273] sm:$0xff]
          %v2039 = vld [vmem:[%s1265] sm:$0xff]
          %v2040 = vrcp.pop %v2039
          %2042 = vset.pattern.permute.xlu0 0
          %2043 = vperm.xlu0 %2042, %v2040
          %v2044 = vpop.permute.xlu0 %2043
          %v2046 = vmul.f32 %v2038, %v2044
          %s2047 = scalar_lea.vmem %s6, 8
          %v2048 = vld [vmem:[%s2047] sm:$0xff]
          %v2050 = vsel %vm839, %v2046, 0
          %2052 = vmatprep.subr.mxu0 0.0
          %2053 = vmatpush1.msra.mxu0 %v2048
          %2054 = vmatprep.subr.mxu0 0.0
          %2055 = vmatpush1.msra.mxu0 0.0
          %2056 = vmatprep.subr.mxu0 0.0
          %2057 = vmatpush1.msra.mxu0 0.0
          %2058 = vmatprep.subr.mxu0 0.0
          %2059 = vmatpush1.msra.mxu0 0.0
          %2060 = vmatprep.subr.mxu0 0.0
          %2061 = vmatpush1.msra.mxu0 0.0
          %2062 = vmatprep.subr.mxu0 0.0
          %2063 = vmatpush1.msra.mxu0 0.0
          %2064 = vmatprep.subr.mxu0 0.0
          %2065 = vmatpush1.msra.mxu0 0.0
          %2066 = vmatprep.subr.mxu0 0.0
          %2067 = vmatpush1.msra.mxu0 0.0
          %2068 = vmatprep.subr.mxu0 0.0
          %2069 = vmatpush1.msra.mxu0 0.0
          %2070 = vmatprep.subr.mxu0 0.0
          %2071 = vmatpush1.msra.mxu0 0.0
          %2072 = vmatprep.subr.mxu0 0.0
          %2073 = vmatpush1.msra.mxu0 0.0
          %2074 = vmatprep.subr.mxu0 0.0
          %2075 = vmatpush1.msra.mxu0 0.0
          %2076 = vmatprep.subr.mxu0 0.0
          %2077 = vmatpush1.msra.mxu0 0.0
          %2078 = vmatprep.subr.mxu0 0.0
          %2079 = vmatpush1.msra.mxu0 0.0
          %2080 = vmatprep.subr.mxu0 0.0
          %2081 = vmatpush1.msra.mxu0 0.0
          %2082 = vmatprep.subr.mxu0 0.0
          %2083 = vmatpush1.msra.mxu0 0.0
          %2084 = vmatprep.subr.mxu0 0.0
          %2085 = vmatpush1.msra.mxu0 0.0
          %2086 = vmatprep.subr.mxu0 0.0
          %2087 = vmatpush1.msra.mxu0 0.0
          %2088 = vmatprep.subr.mxu0 0.0
          %2089 = vmatpush1.msra.mxu0 0.0
          %2090 = vmatprep.subr.mxu0 0.0
          %2091 = vmatpush1.msra.mxu0 0.0
          %2092 = vmatprep.subr.mxu0 0.0
          %2093 = vmatpush1.msra.mxu0 0.0
          %2094 = vmatprep.subr.mxu0 0.0
          %2095 = vmatpush1.msra.mxu0 0.0
          %2096 = vmatprep.subr.mxu0 0.0
          %2097 = vmatpush1.msra.mxu0 0.0
          %2098 = vmatprep.subr.mxu0 0.0
          %2099 = vmatpush1.msra.mxu0 0.0
          %2100 = vmatprep.subr.mxu0 0.0
          %2101 = vmatpush1.msra.mxu0 0.0
          %2102 = vmatprep.subr.mxu0 0.0
          %2103 = vmatpush1.msra.mxu0 0.0
          %2104 = vmatprep.subr.mxu0 0.0
          %2105 = vmatpush1.msra.mxu0 0.0
          %2106 = vmatprep.subr.mxu0 0.0
          %2107 = vmatpush1.msra.mxu0 0.0
          %2108 = vmatprep.subr.mxu0 0.0
          %2109 = vmatpush1.msra.mxu0 0.0
          %2110 = vmatprep.subr.mxu0 0.0
          %2111 = vmatpush1.msra.mxu0 0.0
          %2112 = vmatprep.subr.mxu0 0.0
          %2113 = vmatpush1.msra.mxu0 0.0
          %2114 = vmatprep.subr.mxu0 0.0
          %2115 = vmatpush1.msra.mxu0 0.0
          %2116 = vmatprep.mubr.f32.mxu0 0.0
          %2117 = vmatmul.mubr.f32.gmra.mrb[0].mxu0 %v2050
          %v2118 = vpop.f32.mrb[0].mxu0
          %v2119 = vadd.f32 0.0, %v2118
          %v2120 = vpop.f32.mrb[0].mxu0
          %2121 = vdwg.mxu0
          %v2123 = vsel %vm839, %v2036, 0
          %2125 = vmatprep.subr.mxu0 0.0
          %2126 = vmatpush1.msra.mxu0 %v2037
          %2127 = vmatprep.subr.mxu0 0.0
          %2128 = vmatpush1.msra.mxu0 0.0
          %2129 = vmatprep.subr.mxu0 0.0
          %2130 = vmatpush1.msra.mxu0 0.0
          %2131 = vmatprep.subr.mxu0 0.0
          %2132 = vmatpush1.msra.mxu0 0.0
          %2133 = vmatprep.subr.mxu0 0.0
          %2134 = vmatpush1.msra.mxu0 0.0
          %2135 = vmatprep.subr.mxu0 0.0
          %2136 = vmatpush1.msra.mxu0 0.0
          %2137 = vmatprep.subr.mxu0 0.0
          %2138 = vmatpush1.msra.mxu0 0.0
          %2139 = vmatprep.subr.mxu0 0.0
          %2140 = vmatpush1.msra.mxu0 0.0
          %2141 = vmatprep.subr.mxu0 0.0
          %2142 = vmatpush1.msra.mxu0 0.0
          %2143 = vmatprep.subr.mxu0 0.0
          %2144 = vmatpush1.msra.mxu0 0.0
          %2145 = vmatprep.subr.mxu0 0.0
          %2146 = vmatpush1.msra.mxu0 0.0
          %2147 = vmatprep.subr.mxu0 0.0
          %2148 = vmatpush1.msra.mxu0 0.0
          %2149 = vmatprep.subr.mxu0 0.0
          %2150 = vmatpush1.msra.mxu0 0.0
          %2151 = vmatprep.subr.mxu0 0.0
          %2152 = vmatpush1.msra.mxu0 0.0
          %2153 = vmatprep.subr.mxu0 0.0
          %2154 = vmatpush1.msra.mxu0 0.0
          %2155 = vmatprep.subr.mxu0 0.0
          %2156 = vmatpush1.msra.mxu0 0.0
          %2157 = vmatprep.subr.mxu0 0.0
          %2158 = vmatpush1.msra.mxu0 0.0
          %2159 = vmatprep.subr.mxu0 0.0
          %2160 = vmatpush1.msra.mxu0 0.0
          %2161 = vmatprep.subr.mxu0 0.0
          %2162 = vmatpush1.msra.mxu0 0.0
          %2163 = vmatprep.subr.mxu0 0.0
          %2164 = vmatpush1.msra.mxu0 0.0
          %2165 = vmatprep.subr.mxu0 0.0
          %2166 = vmatpush1.msra.mxu0 0.0
          %2167 = vmatprep.subr.mxu0 0.0
          %2168 = vmatpush1.msra.mxu0 0.0
          %2169 = vmatprep.subr.mxu0 0.0
          %2170 = vmatpush1.msra.mxu0 0.0
          %2171 = vmatprep.subr.mxu0 0.0
          %2172 = vmatpush1.msra.mxu0 0.0
          %2173 = vmatprep.subr.mxu0 0.0
          %2174 = vmatpush1.msra.mxu0 0.0
          %2175 = vmatprep.subr.mxu0 0.0
          %2176 = vmatpush1.msra.mxu0 0.0
          %2177 = vmatprep.subr.mxu0 0.0
          %2178 = vmatpush1.msra.mxu0 0.0
          %2179 = vmatprep.subr.mxu0 0.0
          %2180 = vmatpush1.msra.mxu0 0.0
          %2181 = vmatprep.subr.mxu0 0.0
          %2182 = vmatpush1.msra.mxu0 0.0
          %2183 = vmatprep.subr.mxu0 0.0
          %2184 = vmatpush1.msra.mxu0 0.0
          %2185 = vmatprep.subr.mxu0 0.0
          %2186 = vmatpush1.msra.mxu0 0.0
          %2187 = vmatprep.subr.mxu0 0.0
          %2188 = vmatpush1.msra.mxu0 0.0
          %2189 = vmatprep.mubr.f32.mxu0 0.0
          %2190 = vmatmul.mubr.f32.gmra.mrb[0].mxu0 %v2123
          %v2191 = vpop.f32.mrb[0].mxu0
          %v2192 = vadd.f32 %v2119, %v2191
          %v2193 = vpop.f32.mrb[0].mxu0
          %2194 = vdwg.mxu0
          %v2195 = vld [vmem:[%s1607] sm:$0xff]
          %v2196 = vld [vmem:[%s1599] sm:$0xff]
          %v2197 = vrcp.pop %v2196
          %2199 = vset.pattern.permute.xlu0 0
          %2200 = vperm.xlu0 %2199, %v2197
          %v2201 = vpop.permute.xlu0 %2200
          %v2203 = vmul.f32 %v2195, %v2201
          %s2204 = scalar_lea.vmem %s6, 16
          %v2205 = vld [vmem:[%s2204] sm:$0xff]
          %v2207 = vsel %vm839, %v2203, 0
          %2209 = vmatprep.subr.mxu0 0.0
          %2210 = vmatpush1.msra.mxu0 %v2205
          %2211 = vmatprep.subr.mxu0 0.0
          %2212 = vmatpush1.msra.mxu0 0.0
          %2213 = vmatprep.subr.mxu0 0.0
          %2214 = vmatpush1.msra.mxu0 0.0
          %2215 = vmatprep.subr.mxu0 0.0
          %2216 = vmatpush1.msra.mxu0 0.0
          %2217 = vmatprep.subr.mxu0 0.0
          %2218 = vmatpush1.msra.mxu0 0.0
          %2219 = vmatprep.subr.mxu0 0.0
          %2220 = vmatpush1.msra.mxu0 0.0
          %2221 = vmatprep.subr.mxu0 0.0
          %2222 = vmatpush1.msra.mxu0 0.0
          %2223 = vmatprep.subr.mxu0 0.0
          %2224 = vmatpush1.msra.mxu0 0.0
          %2225 = vmatprep.subr.mxu0 0.0
          %2226 = vmatpush1.msra.mxu0 0.0
          %2227 = vmatprep.subr.mxu0 0.0
          %2228 = vmatpush1.msra.mxu0 0.0
          %2229 = vmatprep.subr.mxu0 0.0
          %2230 = vmatpush1.msra.mxu0 0.0
          %2231 = vmatprep.subr.mxu0 0.0
          %2232 = vmatpush1.msra.mxu0 0.0
          %2233 = vmatprep.subr.mxu0 0.0
          %2234 = vmatpush1.msra.mxu0 0.0
          %2235 = vmatprep.subr.mxu0 0.0
          %2236 = vmatpush1.msra.mxu0 0.0
          %2237 = vmatprep.subr.mxu0 0.0
          %2238 = vmatpush1.msra.mxu0 0.0
          %2239 = vmatprep.subr.mxu0 0.0
          %2240 = vmatpush1.msra.mxu0 0.0
          %2241 = vmatprep.subr.mxu0 0.0
          %2242 = vmatpush1.msra.mxu0 0.0
          %2243 = vmatprep.subr.mxu0 0.0
          %2244 = vmatpush1.msra.mxu0 0.0
          %2245 = vmatprep.subr.mxu0 0.0
          %2246 = vmatpush1.msra.mxu0 0.0
          %2247 = vmatprep.subr.mxu0 0.0
          %2248 = vmatpush1.msra.mxu0 0.0
          %2249 = vmatprep.subr.mxu0 0.0
          %2250 = vmatpush1.msra.mxu0 0.0
          %2251 = vmatprep.subr.mxu0 0.0
          %2252 = vmatpush1.msra.mxu0 0.0
          %2253 = vmatprep.subr.mxu0 0.0
          %2254 = vmatpush1.msra.mxu0 0.0
          %2255 = vmatprep.subr.mxu0 0.0
          %2256 = vmatpush1.msra.mxu0 0.0
          %2257 = vmatprep.subr.mxu0 0.0
          %2258 = vmatpush1.msra.mxu0 0.0
          %2259 = vmatprep.subr.mxu0 0.0
          %2260 = vmatpush1.msra.mxu0 0.0
          %2261 = vmatprep.subr.mxu0 0.0
          %2262 = vmatpush1.msra.mxu0 0.0
          %2263 = vmatprep.subr.mxu0 0.0
          %2264 = vmatpush1.msra.mxu0 0.0
          %2265 = vmatprep.subr.mxu0 0.0
          %2266 = vmatpush1.msra.mxu0 0.0
          %2267 = vmatprep.subr.mxu0 0.0
          %2268 = vmatpush1.msra.mxu0 0.0
          %2269 = vmatprep.subr.mxu0 0.0
          %2270 = vmatpush1.msra.mxu0 0.0
          %2271 = vmatprep.subr.mxu0 0.0
          %2272 = vmatpush1.msra.mxu0 0.0
          %2273 = vmatprep.mubr.f32.mxu0 0.0
          %2274 = vmatmul.mubr.f32.gmra.mrb[0].mxu0 %v2207
          %v2275 = vpop.f32.mrb[0].mxu0
          %v2276 = vadd.f32 0.0, %v2275
          %v2277 = vpop.f32.mrb[0].mxu0
          %2278 = vdwg.mxu0
          %v2279 = vadd.f32 %v2192, %v2276
          %v2280 = vld [vmem:[%s1941] sm:$0xff]
          %v2281 = vld [vmem:[%s1933] sm:$0xff]
          %v2282 = vrcp.pop %v2281
          %2284 = vset.pattern.permute.xlu0 0
          %2285 = vperm.xlu0 %2284, %v2282
          %v2286 = vpop.permute.xlu0 %2285
          %v2288 = vmul.f32 %v2280, %v2286
          %s2289 = scalar_lea.vmem %s6, 24
          %v2290 = vld [vmem:[%s2289] sm:$0xff]
          %v2292 = vsel %vm839, %v2288, 0
          %2294 = vmatprep.subr.mxu0 0.0
          %2295 = vmatpush1.msra.mxu0 %v2290
          %2296 = vmatprep.subr.mxu0 0.0
          %2297 = vmatpush1.msra.mxu0 0.0
          %2298 = vmatprep.subr.mxu0 0.0
          %2299 = vmatpush1.msra.mxu0 0.0
          %2300 = vmatprep.subr.mxu0 0.0
          %2301 = vmatpush1.msra.mxu0 0.0
          %2302 = vmatprep.subr.mxu0 0.0
          %2303 = vmatpush1.msra.mxu0 0.0
          %2304 = vmatprep.subr.mxu0 0.0
          %2305 = vmatpush1.msra.mxu0 0.0
          %2306 = vmatprep.subr.mxu0 0.0
          %2307 = vmatpush1.msra.mxu0 0.0
          %2308 = vmatprep.subr.mxu0 0.0
          %2309 = vmatpush1.msra.mxu0 0.0
          %2310 = vmatprep.subr.mxu0 0.0
          %2311 = vmatpush1.msra.mxu0 0.0
          %2312 = vmatprep.subr.mxu0 0.0
          %2313 = vmatpush1.msra.mxu0 0.0
          %2314 = vmatprep.subr.mxu0 0.0
          %2315 = vmatpush1.msra.mxu0 0.0
          %2316 = vmatprep.subr.mxu0 0.0
          %2317 = vmatpush1.msra.mxu0 0.0
          %2318 = vmatprep.subr.mxu0 0.0
          %2319 = vmatpush1.msra.mxu0 0.0
          %2320 = vmatprep.subr.mxu0 0.0
          %2321 = vmatpush1.msra.mxu0 0.0
          %2322 = vmatprep.subr.mxu0 0.0
          %2323 = vmatpush1.msra.mxu0 0.0
          %2324 = vmatprep.subr.mxu0 0.0
          %2325 = vmatpush1.msra.mxu0 0.0
          %2326 = vmatprep.subr.mxu0 0.0
          %2327 = vmatpush1.msra.mxu0 0.0
          %2328 = vmatprep.subr.mxu0 0.0
          %2329 = vmatpush1.msra.mxu0 0.0
          %2330 = vmatprep.subr.mxu0 0.0
          %2331 = vmatpush1.msra.mxu0 0.0
          %2332 = vmatprep.subr.mxu0 0.0
          %2333 = vmatpush1.msra.mxu0 0.0
          %2334 = vmatprep.subr.mxu0 0.0
          %2335 = vmatpush1.msra.mxu0 0.0
          %2336 = vmatprep.subr.mxu0 0.0
          %2337 = vmatpush1.msra.mxu0 0.0
          %2338 = vmatprep.subr.mxu0 0.0
          %2339 = vmatpush1.msra.mxu0 0.0
          %2340 = vmatprep.subr.mxu0 0.0
          %2341 = vmatpush1.msra.mxu0 0.0
          %2342 = vmatprep.subr.mxu0 0.0
          %2343 = vmatpush1.msra.mxu0 0.0
          %2344 = vmatprep.subr.mxu0 0.0
          %2345 = vmatpush1.msra.mxu0 0.0
          %2346 = vmatprep.subr.mxu0 0.0
          %2347 = vmatpush1.msra.mxu0 0.0
          %2348 = vmatprep.subr.mxu0 0.0
          %2349 = vmatpush1.msra.mxu0 0.0
          %2350 = vmatprep.subr.mxu0 0.0
          %2351 = vmatpush1.msra.mxu0 0.0
          %2352 = vmatprep.subr.mxu0 0.0
          %2353 = vmatpush1.msra.mxu0 0.0
          %2354 = vmatprep.subr.mxu0 0.0
          %2355 = vmatpush1.msra.mxu0 0.0
          %2356 = vmatprep.subr.mxu0 0.0
          %2357 = vmatpush1.msra.mxu0 0.0
          %2358 = vmatprep.mubr.f32.mxu0 0.0
          %2359 = vmatmul.mubr.f32.gmra.mrb[0].mxu0 %v2292
          %v2360 = vpop.f32.mrb[0].mxu0
          %v2361 = vadd.f32 0.0, %v2360
          %v2362 = vpop.f32.mrb[0].mxu0
          %2363 = vdwg.mxu0
          %v2364 = vadd.f32 %v2279, %v2361
          %vm2365 = vcmask 261120
          %2366 = vst.msk [vmem:[%s340] sm:$0xff] %vm2365, %v2364
        $region56: #{tpu_custom_call.1} parent=47 // pred_fallthru
          _
        %s2367 = sand.u32 %s218, 1
        %s2368 = scalar_lea.sflag [#allocation7], %s2367
        %s2369 = sand.u32 %s218, 1
        %s2370 = smul.addr %s2369, 8
        %s2371 = scalar_lea.vmem [#allocation6], %s2370
        // Predicated region
        $region57: #{tpu_custom_call.1} parent=47 // pred_check
          %p2372 = pneg %p228
        $region58: #{tpu_custom_call.1} parent=47 // pred_check_branch
          %2374 = sbr.rel (%p2372) target = $region60
        $region59: #{tpu_custom_call.1} parent=47 // pred_region
          %s2376 = ssub.s32 128, 128
          %2377 = vsyncadd %s2368, %s2376
          %s2378 = sadd.s32 %s27, %s26
          %s2379 = smul.addr %s2378, 128
          %s2380 = scalar_lea.hbm %s7, %s2379
          %s2382 = sshll.u32 %s2371, 4
          %s2383 = int_to_ptr.vmem [resolvable:$true] %s2382
          %2385 = dma.vmem_to_hbm [thread:$0]  %s2383, 128, %s2380, %s2368
        $region60: #{tpu_custom_call.1} parent=47 // pred_fallthru
          _
      $region48: #{tpu_custom_call.1} parent=5 // pred_fallthru
        _
      %p2386 = scmp.le.s32.totalorder 2, %s16
      // Predicated region
      $region61: #{tpu_custom_call.1} parent=5 // pred_check
        %p2387 = pneg %p2386
      $region62: #{tpu_custom_call.1} parent=5 // pred_check_branch
        %2389 = sbr.rel (%p2387) target = $region64
      $region63: #{tpu_custom_call.1} parent=5 // pred_region
        %s2390 = ssub.s32 %s16, 2
        // Predicated region
        $region65: #{tpu_custom_call.1} parent=63 // pred_check
          %p2391 = pneg %p234
        $region66: #{tpu_custom_call.1} parent=63 // pred_check_branch
          %2393 = sbr.rel (%p2391) target = $region68
        $region67: #{tpu_custom_call.1} parent=63 // pred_region
          %s2394 = sand.u32 %s219, 1
          %s2395 = scalar_lea.sflag [#allocation7], %s2394
          %s2396 = sand.u32 %s219, 1
          %s2397 = smul.addr %s2396, 8
          %s2398 = scalar_lea.vmem [#allocation6], %s2397
          %2399 = dma.done %s2395, 128
        $region68: #{tpu_custom_call.1} parent=63 // pred_fallthru
          _
      $region64: #{tpu_custom_call.1} parent=5 // pred_fallthru
        _
    $region6: #{tpu_custom_call.1} parent=1 // loop_footer
      %s20 = sadd.s32 1, %s16
    $region7: #{tpu_custom_call.1} parent=1 // loop_footer_branch
      %15 = sbr.rel target = $region3
    $region8: #{tpu_custom_call.1} parent=1 // loop_exit
      _
    %2400 = vsyncpa [#allocation7], 1
    %s2401 = scalar_lea.sflag [#allocation7], 1
    %2402 = vsyncpa %s2401, 1

</llo_original>
